<compile_context>
chip_gen: v7x
topology: tpu7x:2x2x1
jax: 0.10.0
libtpu: 0.0.40
codegen_flags: <defaults>
</compile_context>

<pallas_src>
import jax
import jax.numpy as jnp
from jax.experimental import pallas as pl
from jax.experimental.pallas import tpu as pltpu

# ---------------- configuration (run_config equivalent) ----------------
RUN_CONFIG = {
    "LATENT_SPACE_FEAT": 1024,          # forced by x.view(-1, 1024) in PointNetfeat
    "POINTNET_LAST_LAYER_SIZE": 256,
    "DROPOUT_PROB_CLS": 0.3,            # eval-mode => identity
    "CLS_USE_BN": False,                # BatchNorms are nn.Identity
}
NUM_CLASSES = 16
CIN = 3


def _round_up(a, m):
    return (a + m - 1) // m * m


def _device_config():
    """Per-generation tiling / dtype choices (safe fallback for unknown chips)."""
    try:
        kind = jax.devices()[0].device_kind.lower()
    except Exception:
        kind = ""
    if "v7" in kind:
        # 64 MiB physical VMEM, 2 TensorCores/chip, bf16 VPU path available.
        return dict(tn_cap=2048, vmem_bytes=44 << 20, pool_dtype=jnp.bfloat16,
                    two_core=True)
    if "v6" in kind:
        # 128 MiB VMEM, bf16 VPU path available.
        return dict(tn_cap=4096, vmem_bytes=96 << 20, pool_dtype=jnp.bfloat16,
                    two_core=False)
    if "v5" in kind:
        # 128 MiB VMEM, no bf16 VPU path -> keep conv3 output / pooling in f32.
        return dict(tn_cap=4096, vmem_bytes=96 << 20, pool_dtype=jnp.float32,
                    two_core=False)
    # Unknown / older chip: conservative choices.
    return dict(tn_cap=1024, vmem_bytes=40 << 20, pool_dtype=jnp.float32,
                two_core=False)


# ---------------- feature kernel: per-cloud point MLP + running max-pool ----------------
def pointnet_feat_kernel(x_ref, w1_ref, b1_ref, w2_ref, b2_ref, w3_ref, b3_ref,
                         feat_ref, maxacc_ref):
    """grid = (B * split, num_point_tiles); one (pseudo-)cloud per b, one point tile per t."""
    t = pl.program_id(1)

    @pl.when(t == 0)
    def _():
        maxacc_ref[...] = jnp.full(maxacc_ref.shape, -jnp.inf, maxacc_ref.dtype)

    x = x_ref[0]                                        # (TN, 3) f32

    # conv1 (3 -> 64, kernel size 1) as 3 VPU broadcast-FMAs, all in f32.
    w1 = w1_ref[...]                                    # (3, 64) f32
    h = (x[:, 0:1] * w1[0:1, :]
         + x[:, 1:2] * w1[1:2, :]
         + x[:, 2:3] * w1[2:3, :]
         + b1_ref[...])                                 # (TN, 64) f32
    h = jnp.maximum(h, 0.0)

    # conv2 (64 -> 128): bf16 MXU operands, f32 accumulation.
    h = jnp.dot(h.astype(jnp.bfloat16), w2_ref[...],
                preferred_element_type=jnp.float32) + b2_ref[...]
    h = jnp.maximum(h, 0.0)                             # (TN, 128) f32

    # conv3 (128 -> 1024): b3 hoisted to the epilogue (max commutes with +b3).
    # Output dtype == running-max dtype (bf16 on v6e/v7x, f32 on v5e/unknown).
    h3 = jnp.dot(h.astype(jnp.bfloat16), w3_ref[...],
                 preferred_element_type=maxacc_ref.dtype)   # (TN, 1024)

    # running global max over point tiles (torch.max(x, 2)[0])
    maxacc_ref[...] = jnp.maximum(maxacc_ref[...],
                                  jnp.max(h3, axis=0, keepdims=True))

    @pl.when(t == pl.num_programs(1) - 1)
    def _():
        feat_ref[0] = maxacc_ref[...].astype(jnp.float32) + b3_ref[...]


# ---------------- classifier-head kernel: batch-tile matmul chain ----------------
def pointnet_head_kernel(f_ref, wf1_ref, bf1_ref, wf2_ref, bf2_ref, wf3_ref, bf3_ref,
                         o_ref):
    y = jnp.dot(f_ref[...].astype(jnp.bfloat16), wf1_ref[...],
                preferred_element_type=jnp.float32) + bf1_ref[...]
    y = jnp.maximum(y, 0.0)                             # (TB, 512)
    y = jnp.dot(y.astype(jnp.bfloat16), wf2_ref[...],
                preferred_element_type=jnp.float32) + bf2_ref[...]
    # TODO(synk): Dropout is implemented as eval-mode identity (inference semantics).
    y = jnp.maximum(y, 0.0)                             # (TB, 256)
    o_ref[...] = jnp.dot(y.astype(jnp.bfloat16), wf3_ref[...],
                         preferred_element_type=jnp.float32) + bf3_ref[...]   # (TB, 16)


# ---------------- wrapper ----------------
def pointnet_forward(x, params, tn=None, split=None, pool_dtype=None):
    """x: (B, 3, N) float32 (PyTorch NCW). Returns logits (B, NUM_CLASSES)."""
    B, C, N = x.shape
    assert C == CIN
    lat = RUN_CONFIG["LATENT_SPACE_FEAT"]
    last = RUN_CONFIG["POINTNET_LAST_LAYER_SIZE"]
    k = NUM_CLASSES
    assert lat == 1024  # hard-coded x.view(-1, 1024) in PointNetfeat

    cfg = _device_config()
    if pool_dtype is None:
        pool_dtype = cfg["pool_dtype"]
    if split is None:
        # v7x has 2 TensorCores/chip; with a tiny batch, split the point (reduction)
        # axis into pseudo-clouds so both cores contribute.  Correct on any chip.
        split = 2 if (cfg["two_core"] and B == 1 and N >= 1024) else 1

    ns = (N + split - 1) // split                # points per pseudo-cloud (pre-padding)

    # Point-tile size: as large as the VMEM cap allows, balanced to minimize padding.
    if tn is None:
        nt_min = max(1, -(-ns // cfg["tn_cap"]))        # ceil(ns / cap)
        tn = _round_up(max(-(-ns // nt_min), 8), 8)     # balanced tiles, 8-aligned
    tn = max(8, _round_up(tn, 8))
    ns_pad = _round_up(max(ns, tn), tn)
    nt = ns_pad // tn
    n_pad = ns_pad * split

    # NCW -> (B, N, 3); pad points by replicating the last point (max-pool invariant).
    xt = jnp.transpose(x, (0, 2, 1)).astype(jnp.float32)
    if n_pad != N:
        xt = jnp.pad(xt, ((0, 0), (0, n_pad - N), (0, 0)), mode="edge")
    xt = xt.reshape(B * split, ns_pad, CIN)

    # bf16 MXU operands; conv1 weights and all biases stay f32 (VPU path).
    w2 = params["w2"].astype(jnp.bfloat16)
    w3 = params["w3"].astype(jnp.bfloat16)
    wf1 = params["wf1"].astype(jnp.bfloat16)
    wf2 = params["wf2"].astype(jnp.bfloat16)
    wf3 = params["wf3"].astype(jnp.bfloat16)

    const = lambda shape: pl.BlockSpec(shape, lambda b, t: (0,) * len(shape))

    feats = pl.pallas_call(
        pointnet_feat_kernel,
        out_shape=jax.ShapeDtypeStruct((B * split, 1, lat), jnp.float32),
        grid_spec=pltpu.PrefetchScalarGridSpec(
            num_scalar_prefetch=0,
            grid=(B * split, nt),
            in_specs=[
                pl.BlockSpec((1, tn, CIN), lambda b, t: (b, t, 0)),   # points
                const((CIN, 64)), const((1, 64)),                     # conv1 (f32, VPU)
                const((64, 128)), const((1, 128)),                    # conv2 (bf16 W)
                const((128, lat)), const((1, lat)),                   # conv3 (bf16 W)
            ],
            out_specs=pl.BlockSpec((1, 1, lat), lambda b, t: (b, 0, 0)),
            scratch_shapes=[pltpu.VMEM((1, lat), pool_dtype)],        # running max
        ),
        compiler_params=pltpu.CompilerParams(
            dimension_semantics=("parallel", "arbitrary"),
            vmem_limit_bytes=cfg["vmem_bytes"],
        ),
    )(xt, params["w1"], params["b1"], w2, params["b2"], w3, params["b3"])

    # Combine per-pseudo-cloud partial maxes (no-op when split == 1; b3 was added to
    # every partial, and max(a+b3, b+b3) == max(a, b)+b3 exactly).
    feats2d = jnp.max(feats.reshape(B, split, lat), axis=1)           # (B, 1024)

    # ---- classifier head: one matmul chain for all clouds; tile B only when huge ----
    tb = B if B <= 1024 else 256
    b_pad = _round_up(B, tb)
    f_in = feats2d if b_pad == B else jnp.pad(feats2d, ((0, b_pad - B), (0, 0)))

    cst = lambda shape: pl.BlockSpec(shape, lambda i: (0,) * len(shape))
    logits = pl.pallas_call(
        pointnet_head_kernel,
        out_shape=jax.ShapeDtypeStruct((b_pad, k), jnp.float32),
        grid_spec=pltpu.PrefetchScalarGridSpec(
            num_scalar_prefetch=0,
            grid=(b_pad // tb,),
            in_specs=[
                pl.BlockSpec((tb, lat), lambda i: (i, 0)),
                cst((lat, 512)), cst((1, 512)),
                cst((512, last)), cst((1, last)),
                cst((last, k)), cst((1, k)),
            ],
            out_specs=pl.BlockSpec((tb, k), lambda i: (i, 0)),
        ),
        compiler_params=pltpu.CompilerParams(
            dimension_semantics=("parallel",),
            vmem_limit_bytes=cfg["vmem_bytes"],
        ),
    )(f_in, wf1, params["bf1"], wf2, params["bf2"], wf3, params["bf3"])

    return logits[:B]


# ---------------- pure-JAX references (for sanity checks) ----------------
def pointnet_ref(x, params, matmul_dtype=jnp.float32, pool_dtype=jnp.float32):
    """matmul_dtype/pool_dtype mirror the kernel's MXU/pooling dtypes (f32 accumulation)."""
    def mm(a, w):
        return jnp.dot(a.astype(matmul_dtype), w.astype(matmul_dtype),
                       preferred_element_type=jnp.float32)

    xt = jnp.transpose(x, (0, 2, 1)).astype(jnp.float32)     # (B, N, 3)
    h = jax.nn.relu(xt @ params["w1"] + params["b1"])        # conv1 stays f32
    h = jax.nn.relu(mm(h, params["w2"]) + params["b2"])
    h3 = mm(h, params["w3"]).astype(pool_dtype)              # bias after pooling (identical)
    feat = jnp.max(h3, axis=1).astype(jnp.float32) + params["b3"]   # (B, 1024)
    y = jax.nn.relu(mm(feat, params["wf1"]) + params["bf1"])
    y = jax.nn.relu(mm(y, params["wf2"]) + params["bf2"])    # dropout = identity (eval)
    y = mm(y, params["wf3"]) + params["bf3"]
    return y


# ---------------- deterministic parameter init (PyTorch-style uniform) ----------------
def init_params(key):
    lat = RUN_CONFIG["LATENT_SPACE_FEAT"]
    last = RUN_CONFIG["POINTNET_LAST_LAYER_SIZE"]
    k = NUM_CLASSES
    shapes = {
        "w1": (CIN, 64),    "b1": (1, 64),
        "w2": (64, 128),    "b2": (1, 128),
        "w3": (128, lat),   "b3": (1, lat),
        "wf1": (lat, 512),  "bf1": (1, 512),
        "wf2": (512, last), "bf2": (1, last),
        "wf3": (last, k),   "bf3": (1, k),
    }
    fan_in = {
        "w1": CIN, "b1": CIN, "w2": 64, "b2": 64, "w3": 128, "b3": 128,
        "wf1": lat, "bf1": lat, "wf2": 512, "bf2": 512, "wf3": last, "bf3": last,
    }
    params = {}
    keys = jax.random.split(key, len(shapes))
    for sub, (name, shape) in zip(keys, sorted(shapes.items())):
        bound = 1.0 / jnp.sqrt(float(fan_in[name]))
        params[name] = jax.random.uniform(
            sub, shape, jnp.float32, minval=-bound, maxval=bound)
    return params


if __name__ == "__main__":
    key = jax.random.PRNGKey(0)
    pkey, xkey = jax.random.split(key)
    params = init_params(pkey)
    cfg = _device_config()

    # Small test: 2 clouds x 200 points (PyTorch NCW layout).
    B, N = 2, 200
    x = jax.random.normal(xkey, (B, CIN, N), dtype=jnp.float32)

    fwd = jax.jit(pointnet_forward, static_argnames=("tn", "split", "pool_dtype"))

    # Default configuration (single point tile per cloud at this small N).
    out = jax.block_until_ready(fwd(x, params))
    assert out.shape == (B, NUM_CLASSES), out.shape

    # Multi-tile running-max + edge-padding path (tn=64 -> 4 tiles, 200 -> 256 points).
    out_tiled = jax.block_until_ready(fwd(x, params, tn=64))

    # Split-reduction path (v7x two-core shape; numerically valid on any chip).
    out_split = jax.block_until_ready(fwd(x[:1], params, split=2))

    # Tight check against a reference that matches the kernel's MXU / pooling dtypes.
    pool_dtype = cfg["pool_dtype"]
    ref_matched = jax.block_until_ready(
        pointnet_ref(x, params, matmul_dtype=jnp.bfloat16, pool_dtype=pool_dtype))
    tol = 3e-2 if pool_dtype == jnp.bfloat16 else 1e-2
    for name, got, want in (("default", out, ref_matched),
                            ("tiled", out_tiled, ref_matched),
                            ("split", out_split, ref_matched[:1])):
        err = float(jnp.max(jnp.abs(got - want)))
        assert jnp.allclose(got, want, atol=tol, rtol=tol), (
            f"{name}: matched-ref mismatch, max abs err {err}")

    # Loose sanity check against the full-f32 reference (bf16 operands => ~1% error).
    ref_f32 = jax.block_until_ready(pointnet_ref(x, params))
    err = float(jnp.max(jnp.abs(out - ref_f32)))
    scale = float(jnp.max(jnp.abs(ref_f32)))
    assert err <= 0.1 * scale + 5e-3, f"f32-ref deviation too large: {err} (scale {scale})"

    print("KERNEL_OK")
</pallas_src>

<mosaic_0001>
module attributes {stable_mosaic.version = 11 : i64} {
  func.func @pointnet_feat_kernel(%arg0: i32, %arg1: i32, %arg2: memref<1x200x3xf32, #tpu.memory_space<vmem>>, %arg3: memref<3x64xf32, #tpu.memory_space<vmem>>, %arg4: memref<1x64xf32, #tpu.memory_space<vmem>>, %arg5: memref<64x128xbf16, #tpu.memory_space<vmem>>, %arg6: memref<1x128xf32, #tpu.memory_space<vmem>>, %arg7: memref<128x1024xbf16, #tpu.memory_space<vmem>>, %arg8: memref<1x1024xf32, #tpu.memory_space<vmem>>, %arg9: memref<1x1x1024xf32, #tpu.memory_space<vmem>>, %arg10: memref<1x1024xf32, #tpu.memory_space<vmem>>) attributes {dimension_semantics = [#tpu.dimension_semantics<parallel>, #tpu.dimension_semantics<arbitrary>], iteration_bounds = array<i64: 2, 1>, scalar_prefetch = 0 : i64, scratch_operands = 1 : i64, tpu.core_type = #tpu.core_type<tc>, window_params = [{transform_indices = @transform_0, window_bounds = array<i64: 1, 200, 3>}, {pipeline_mode = #tpu.pipeline_mode<synchronous>, transform_indices = @transform_1, window_bounds = array<i64: 3, 64>}, {pipeline_mode = #tpu.pipeline_mode<synchronous>, transform_indices = @transform_2, window_bounds = array<i64: 1, 64>}, {pipeline_mode = #tpu.pipeline_mode<synchronous>, transform_indices = @transform_3, window_bounds = array<i64: 64, 128>}, {pipeline_mode = #tpu.pipeline_mode<synchronous>, transform_indices = @transform_4, window_bounds = array<i64: 1, 128>}, {pipeline_mode = #tpu.pipeline_mode<synchronous>, transform_indices = @transform_5, window_bounds = array<i64: 128, 1024>}, {pipeline_mode = #tpu.pipeline_mode<synchronous>, transform_indices = @transform_6, window_bounds = array<i64: 1, 1024>}, {transform_indices = @transform_7, window_bounds = array<i64: 1, 1, 1024>}]} {
    %c0_i32 = arith.constant 0 : i32
    %0 = arith.cmpi eq, %arg1, %c0_i32 : i32
    %1 = arith.extui %0 : i1 to i32
    %c0_i32_0 = arith.constant 0 : i32
    %2 = arith.cmpi ne, %1, %c0_i32_0 : i32
    scf.if %2 {
      %cst_23 = arith.constant 0xFF800000 : f32
      %47 = vector.broadcast %cst_23 : f32 to vector<1x1024xf32>
      %c0_24 = arith.constant 0 : index
      %c0_25 = arith.constant 0 : index
      %48 = vector.load %arg10[%c0_24, %c0_25] : memref<1x1024xf32, #tpu.memory_space<vmem>>, vector<1x1024xf32>
      tpu.vector_store %arg10[%c0_24, %c0_25], %47 {strides = array<i32>} : memref<1x1024xf32, #tpu.memory_space<vmem>>, vector<1x1024xf32>,
    } else {
    }
    %c0 = arith.constant 0 : index
    %c0_1 = arith.constant 0 : index
    %c0_2 = arith.constant 0 : index
    %3 = vector.load %arg2[%c0, %c0_1, %c0_2] : memref<1x200x3xf32, #tpu.memory_space<vmem>>, vector<1x200x3xf32>
    %4 = vector.shape_cast %3 : vector<1x200x3xf32> to vector<200x3xf32>
    %c0_3 = arith.constant 0 : index
    %c0_4 = arith.constant 0 : index
    %5 = vector.load %arg3[%c0_3, %c0_4] : memref<3x64xf32, #tpu.memory_space<vmem>>, vector<3x64xf32>
    %6 = vector.extract_strided_slice %4 {offsets = [0, 0], sizes = [200, 1], strides = [1, 1]} : vector<200x3xf32> to vector<200x1xf32>
    %7 = vector.extract_strided_slice %5 {offsets = [0, 0], sizes = [1, 64], strides = [1, 1]} : vector<3x64xf32> to vector<1x64xf32>
    %8 = vector.broadcast %6 : vector<200x1xf32> to vector<200x64xf32>
    %9 = vector.broadcast %7 : vector<1x64xf32> to vector<200x64xf32>
    %10 = arith.mulf %8, %9 : vector<200x64xf32>
    %11 = vector.extract_strided_slice %4 {offsets = [0, 1], sizes = [200, 1], strides = [1, 1]} : vector<200x3xf32> to vector<200x1xf32>
    %12 = vector.extract_strided_slice %5 {offsets = [1, 0], sizes = [1, 64], strides = [1, 1]} : vector<3x64xf32> to vector<1x64xf32>
    %13 = vector.broadcast %11 : vector<200x1xf32> to vector<200x64xf32>
    %14 = vector.broadcast %12 : vector<1x64xf32> to vector<200x64xf32>
    %15 = arith.mulf %13, %14 : vector<200x64xf32>
    %16 = arith.addf %10, %15 : vector<200x64xf32>
    %17 = vector.extract_strided_slice %4 {offsets = [0, 2], sizes = [200, 1], strides = [1, 1]} : vector<200x3xf32> to vector<200x1xf32>
    %18 = vector.extract_strided_slice %5 {offsets = [2, 0], sizes = [1, 64], strides = [1, 1]} : vector<3x64xf32> to vector<1x64xf32>
    %19 = vector.broadcast %17 : vector<200x1xf32> to vector<200x64xf32>
    %20 = vector.broadcast %18 : vector<1x64xf32> to vector<200x64xf32>
    %21 = arith.mulf %19, %20 : vector<200x64xf32>
    %22 = arith.addf %16, %21 : vector<200x64xf32>
    %c0_5 = arith.constant 0 : index
    %c0_6 = arith.constant 0 : index
    %23 = vector.load %arg4[%c0_5, %c0_6] : memref<1x64xf32, #tpu.memory_space<vmem>>, vector<1x64xf32>
    %24 = vector.broadcast %23 : vector<1x64xf32> to vector<200x64xf32>
    %25 = arith.addf %22, %24 : vector<200x64xf32>
    %cst = arith.constant 0.000000e+00 : f32
    %26 = vector.broadcast %cst : f32 to vector<200x64xf32>
    %27 = arith.maximumf %25, %26 : vector<200x64xf32>
    %28 = arith.truncf %27 : vector<200x64xf32> to vector<200x64xbf16>
    %c0_7 = arith.constant 0 : index
    %c0_8 = arith.constant 0 : index
    %29 = vector.load %arg5[%c0_7, %c0_8] : memref<64x128xbf16, #tpu.memory_space<vmem>>, vector<64x128xbf16>
    %cst_9 = arith.constant dense<0.000000e+00> : vector<200x128xf32>
    %30 = tpu.matmul %28, %29, %cst_9 {dimension_numbers = #tpu.dot_dimension_numbers<[1], [0], [0], [1], [0, 0, 1, 1], [], []>} : vector<200x64xbf16>, vector<64x128xbf16>, vector<200x128xf32> -> vector<200x128xf32>
    %c0_10 = arith.constant 0 : index
    %c0_11 = arith.constant 0 : index
    %31 = vector.load %arg6[%c0_10, %c0_11] : memref<1x128xf32, #tpu.memory_space<vmem>>, vector<1x128xf32>
    %32 = vector.broadcast %31 : vector<1x128xf32> to vector<200x128xf32>
    %33 = arith.addf %30, %32 : vector<200x128xf32>
    %cst_12 = arith.constant 0.000000e+00 : f32
    %34 = vector.broadcast %cst_12 : f32 to vector<200x128xf32>
    %35 = arith.maximumf %33, %34 : vector<200x128xf32>
    %36 = arith.truncf %35 : vector<200x128xf32> to vector<200x128xbf16>
    %c0_13 = arith.constant 0 : index
    %c0_14 = arith.constant 0 : index
    %37 = vector.load %arg7[%c0_13, %c0_14] : memref<128x1024xbf16, #tpu.memory_space<vmem>>, vector<128x1024xbf16>
    %cst_15 = arith.constant dense<0.000000e+00> : vector<200x1024xf32>
    %38 = tpu.matmul %36, %37, %cst_15 {dimension_numbers = #tpu.dot_dimension_numbers<[1], [0], [0], [1], [0, 0, 1, 1], [], []>} : vector<200x128xbf16>, vector<128x1024xbf16>, vector<200x1024xf32> -> vector<200x1024xf32>
    %c0_16 = arith.constant 0 : index
    %c0_17 = arith.constant 0 : index
    %39 = vector.load %arg10[%c0_16, %c0_17] : memref<1x1024xf32, #tpu.memory_space<vmem>>, vector<1x1024xf32>
    %cst_18 = arith.constant dense<0xFF800000> : vector<1024xf32>
    %40 = vector.multi_reduction <maximumf>, %38, %cst_18 [0] : vector<200x1024xf32> to vector<1024xf32>
    %41 = vector.shape_cast %40 : vector<1024xf32> to vector<1x1024xf32>
    %42 = arith.maximumf %39, %41 : vector<1x1024xf32>
    %c0_19 = arith.constant 0 : index
    %c0_20 = arith.constant 0 : index
    %43 = vector.load %arg10[%c0_19, %c0_20] : memref<1x1024xf32, #tpu.memory_space<vmem>>, vector<1x1024xf32>
    tpu.vector_store %arg10[%c0_19, %c0_20], %42 {strides = array<i32>} : memref<1x1024xf32, #tpu.memory_space<vmem>>, vector<1x1024xf32>,
    %c0_i32_21 = arith.constant 0 : i32
    %44 = arith.cmpi eq, %arg1, %c0_i32_21 : i32
    %45 = arith.extui %44 : i1 to i32
    %c0_i32_22 = arith.constant 0 : i32
    %46 = arith.cmpi ne, %45, %c0_i32_22 : i32
    scf.if %46 {
      %c0_23 = arith.constant 0 : index
      %c0_24 = arith.constant 0 : index
      %47 = vector.load %arg10[%c0_23, %c0_24] : memref<1x1024xf32, #tpu.memory_space<vmem>>, vector<1x1024xf32>
      %c0_25 = arith.constant 0 : index
      %c0_26 = arith.constant 0 : index
      %48 = vector.load %arg8[%c0_25, %c0_26] : memref<1x1024xf32, #tpu.memory_space<vmem>>, vector<1x1024xf32>
      %49 = arith.addf %47, %48 : vector<1x1024xf32>
      %c0_27 = arith.constant 0 : index
      %c0_28 = arith.constant 0 : index
      %c0_29 = arith.constant 0 : index
      %50 = vector.load %arg9[%c0_27, %c0_28, %c0_29] : memref<1x1x1024xf32, #tpu.memory_space<vmem>>, vector<1x1x1024xf32>
      %51 = vector.shape_cast %50 : vector<1x1x1024xf32> to vector<1x1024xf32>
      %52 = vector.shape_cast %49 : vector<1x1024xf32> to vector<1x1x1024xf32>
      tpu.vector_store %arg9[%c0_27, %c0_28, %c0_29], %52 {strides = array<i32>} : memref<1x1x1024xf32, #tpu.memory_space<vmem>>, vector<1x1x1024xf32>,
    } else {
    }
    return
  }
  func.func @transform_0(%arg0: i32, %arg1: i32) -> (i32, i32, i32) {
    %c0_i32 = arith.constant 0 : i32
    %c0_i32_0 = arith.constant 0 : i32
    return %arg0, %arg1, %c0_i32 : i32, i32, i32
  }
  func.func @transform_1(%arg0: i32, %arg1: i32) -> (i32, i32) {
    %c0_i32 = arith.constant 0 : i32
    %c0_i32_0 = arith.constant 0 : i32
    %c0_i32_1 = arith.constant 0 : i32
    return %c0_i32, %c0_i32_0 : i32, i32
  }
  func.func @transform_2(%arg0: i32, %arg1: i32) -> (i32, i32) {
    %c0_i32 = arith.constant 0 : i32
    %c0_i32_0 = arith.constant 0 : i32
    %c0_i32_1 = arith.constant 0 : i32
    return %c0_i32, %c0_i32_0 : i32, i32
  }
  func.func @transform_3(%arg0: i32, %arg1: i32) -> (i32, i32) {
    %c0_i32 = arith.constant 0 : i32
    %c0_i32_0 = arith.constant 0 : i32
    %c0_i32_1 = arith.constant 0 : i32
    return %c0_i32, %c0_i32_0 : i32, i32
  }
  func.func @transform_4(%arg0: i32, %arg1: i32) -> (i32, i32) {
    %c0_i32 = arith.constant 0 : i32
    %c0_i32_0 = arith.constant 0 : i32
    %c0_i32_1 = arith.constant 0 : i32
    return %c0_i32, %c0_i32_0 : i32, i32
  }
  func.func @transform_5(%arg0: i32, %arg1: i32) -> (i32, i32) {
    %c0_i32 = arith.constant 0 : i32
    %c0_i32_0 = arith.constant 0 : i32
    %c0_i32_1 = arith.constant 0 : i32
    return %c0_i32, %c0_i32_0 : i32, i32
  }
  func.func @transform_6(%arg0: i32, %arg1: i32) -> (i32, i32) {
    %c0_i32 = arith.constant 0 : i32
    %c0_i32_0 = arith.constant 0 : i32
    %c0_i32_1 = arith.constant 0 : i32
    return %c0_i32, %c0_i32_0 : i32, i32
  }
  func.func @transform_7(%arg0: i32, %arg1: i32) -> (i32, i32, i32) {
    %c0_i32 = arith.constant 0 : i32
    %c0_i32_0 = arith.constant 0 : i32
    %c0_i32_1 = arith.constant 0 : i32
    return %arg0, %c0_i32, %c0_i32_0 : i32, i32, i32
  }
}

module attributes {stable_mosaic.version = 11 : i64} {
  func.func @pointnet_head_kernel(%arg0: i32, %arg1: memref<2x1024xf32, #tpu.memory_space<vmem>>, %arg2: memref<1024x512xbf16, #tpu.memory_space<vmem>>, %arg3: memref<1x512xf32, #tpu.memory_space<vmem>>, %arg4: memref<512x256xbf16, #tpu.memory_space<vmem>>, %arg5: memref<1x256xf32, #tpu.memory_space<vmem>>, %arg6: memref<256x16xbf16, #tpu.memory_space<vmem>>, %arg7: memref<1x16xf32, #tpu.memory_space<vmem>>, %arg8: memref<2x16xf32, #tpu.memory_space<vmem>>) attributes {dimension_semantics = [#tpu.dimension_semantics<parallel>], iteration_bounds = array<i64: 1>, scalar_prefetch = 0 : i64, scratch_operands = 0 : i64, tpu.core_type = #tpu.core_type<tc>, window_params = [{transform_indices = @transform_0, window_bounds = array<i64: 2, 1024>}, {pipeline_mode = #tpu.pipeline_mode<synchronous>, transform_indices = @transform_1, window_bounds = array<i64: 1024, 512>}, {pipeline_mode = #tpu.pipeline_mode<synchronous>, transform_indices = @transform_2, window_bounds = array<i64: 1, 512>}, {pipeline_mode = #tpu.pipeline_mode<synchronous>, transform_indices = @transform_3, window_bounds = array<i64: 512, 256>}, {pipeline_mode = #tpu.pipeline_mode<synchronous>, transform_indices = @transform_4, window_bounds = array<i64: 1, 256>}, {pipeline_mode = #tpu.pipeline_mode<synchronous>, transform_indices = @transform_5, window_bounds = array<i64: 256, 16>}, {pipeline_mode = #tpu.pipeline_mode<synchronous>, transform_indices = @transform_6, window_bounds = array<i64: 1, 16>}, {transform_indices = @transform_7, window_bounds = array<i64: 2, 16>}]} {
    %c0 = arith.constant 0 : index
    %c0_0 = arith.constant 0 : index
    %0 = vector.load %arg1[%c0, %c0_0] : memref<2x1024xf32, #tpu.memory_space<vmem>>, vector<2x1024xf32>
    %1 = arith.truncf %0 : vector<2x1024xf32> to vector<2x1024xbf16>
    %c0_1 = arith.constant 0 : index
    %c0_2 = arith.constant 0 : index
    %2 = vector.load %arg2[%c0_1, %c0_2] : memref<1024x512xbf16, #tpu.memory_space<vmem>>, vector<1024x512xbf16>
    %cst = arith.constant dense<0.000000e+00> : vector<2x512xf32>
    %3 = tpu.matmul %1, %2, %cst {dimension_numbers = #tpu.dot_dimension_numbers<[1], [0], [0], [1], [0, 0, 1, 1], [], []>} : vector<2x1024xbf16>, vector<1024x512xbf16>, vector<2x512xf32> -> vector<2x512xf32>
    %c0_3 = arith.constant 0 : index
    %c0_4 = arith.constant 0 : index
    %4 = vector.load %arg3[%c0_3, %c0_4] : memref<1x512xf32, #tpu.memory_space<vmem>>, vector<1x512xf32>
    %5 = vector.broadcast %4 : vector<1x512xf32> to vector<2x512xf32>
    %6 = arith.addf %3, %5 : vector<2x512xf32>
    %cst_5 = arith.constant 0.000000e+00 : f32
    %7 = vector.broadcast %cst_5 : f32 to vector<2x512xf32>
    %8 = arith.maximumf %6, %7 : vector<2x512xf32>
    %9 = arith.truncf %8 : vector<2x512xf32> to vector<2x512xbf16>
    %c0_6 = arith.constant 0 : index
    %c0_7 = arith.constant 0 : index
    %10 = vector.load %arg4[%c0_6, %c0_7] : memref<512x256xbf16, #tpu.memory_space<vmem>>, vector<512x256xbf16>
    %cst_8 = arith.constant dense<0.000000e+00> : vector<2x256xf32>
    %11 = tpu.matmul %9, %10, %cst_8 {dimension_numbers = #tpu.dot_dimension_numbers<[1], [0], [0], [1], [0, 0, 1, 1], [], []>} : vector<2x512xbf16>, vector<512x256xbf16>, vector<2x256xf32> -> vector<2x256xf32>
    %c0_9 = arith.constant 0 : index
    %c0_10 = arith.constant 0 : index
    %12 = vector.load %arg5[%c0_9, %c0_10] : memref<1x256xf32, #tpu.memory_space<vmem>>, vector<1x256xf32>
    %13 = vector.broadcast %12 : vector<1x256xf32> to vector<2x256xf32>
    %14 = arith.addf %11, %13 : vector<2x256xf32>
    %cst_11 = arith.constant 0.000000e+00 : f32
    %15 = vector.broadcast %cst_11 : f32 to vector<2x256xf32>
    %16 = arith.maximumf %14, %15 : vector<2x256xf32>
    %17 = arith.truncf %16 : vector<2x256xf32> to vector<2x256xbf16>
    %c0_12 = arith.constant 0 : index
    %c0_13 = arith.constant 0 : index
    %18 = vector.load %arg6[%c0_12, %c0_13] : memref<256x16xbf16, #tpu.memory_space<vmem>>, vector<256x16xbf16>
    %cst_14 = arith.constant dense<0.000000e+00> : vector<2x16xf32>
    %19 = tpu.matmul %17, %18, %cst_14 {dimension_numbers = #tpu.dot_dimension_numbers<[1], [0], [0], [1], [0, 0, 1, 1], [], []>} : vector<2x256xbf16>, vector<256x16xbf16>, vector<2x16xf32> -> vector<2x16xf32>
    %c0_15 = arith.constant 0 : index
    %c0_16 = arith.constant 0 : index
    %20 = vector.load %arg7[%c0_15, %c0_16] : memref<1x16xf32, #tpu.memory_space<vmem>>, vector<1x16xf32>
    %21 = vector.broadcast %20 : vector<1x16xf32> to vector<2x16xf32>
    %22 = arith.addf %19, %21 : vector<2x16xf32>
    %c0_17 = arith.constant 0 : index
    %c0_18 = arith.constant 0 : index
    %23 = vector.load %arg8[%c0_17, %c0_18] : memref<2x16xf32, #tpu.memory_space<vmem>>, vector<2x16xf32>
    tpu.vector_store %arg8[%c0_17, %c0_18], %22 {strides = array<i32>} : memref<2x16xf32, #tpu.memory_space<vmem>>, vector<2x16xf32>,
    return
  }
  func.func @transform_0(%arg0: i32) -> (i32, i32) {
    %c0_i32 = arith.constant 0 : i32
    %c0_i32_0 = arith.constant 0 : i32
    return %arg0, %c0_i32 : i32, i32
  }
  func.func @transform_1(%arg0: i32) -> (i32, i32) {
    %c0_i32 = arith.constant 0 : i32
    %c0_i32_0 = arith.constant 0 : i32
    %c0_i32_1 = arith.constant 0 : i32
    return %c0_i32, %c0_i32_0 : i32, i32
  }
  func.func @transform_2(%arg0: i32) -> (i32, i32) {
    %c0_i32 = arith.constant 0 : i32
    %c0_i32_0 = arith.constant 0 : i32
    %c0_i32_1 = arith.constant 0 : i32
    return %c0_i32, %c0_i32_0 : i32, i32
  }
  func.func @transform_3(%arg0: i32) -> (i32, i32) {
    %c0_i32 = arith.constant 0 : i32
    %c0_i32_0 = arith.constant 0 : i32
    %c0_i32_1 = arith.constant 0 : i32
    return %c0_i32, %c0_i32_0 : i32, i32
  }
  func.func @transform_4(%arg0: i32) -> (i32, i32) {
    %c0_i32 = arith.constant 0 : i32
    %c0_i32_0 = arith.constant 0 : i32
    %c0_i32_1 = arith.constant 0 : i32
    return %c0_i32, %c0_i32_0 : i32, i32
  }
  func.func @transform_5(%arg0: i32) -> (i32, i32) {
    %c0_i32 = arith.constant 0 : i32
    %c0_i32_0 = arith.constant 0 : i32
    %c0_i32_1 = arith.constant 0 : i32
    return %c0_i32, %c0_i32_0 : i32, i32
  }
  func.func @transform_6(%arg0: i32) -> (i32, i32) {
    %c0_i32 = arith.constant 0 : i32
    %c0_i32_0 = arith.constant 0 : i32
    %c0_i32_1 = arith.constant 0 : i32
    return %c0_i32, %c0_i32_0 : i32, i32
  }
  func.func @transform_7(%arg0: i32) -> (i32, i32) {
    %c0_i32 = arith.constant 0 : i32
    %c0_i32_0 = arith.constant 0 : i32
    return %arg0, %c0_i32 : i32, i32
  }
}

</mosaic_0001>

<llo_original>
// kernel: pointnet_forward.2
$region0: #{pointnet_forward.2}
  #allocation0 [shape = 'u32[]', space=smem, size = 0x4, offset = 0x4, fixed_abs, tag = 'smem constant byte address 0x4 - core index']
  #allocation1 [shape = 'u32[144,128]{1,0:T(1,128)}', space=vmem, size = 0x12000, scoped, tag = 'internal scratch']
  #allocation2 [shape = 'f32[1,1024]{1,0:T(1,128)}', space=vmem, size = 0x1000, scoped, tag = 'scratch operand']
  %s0 = inlined_call_operand.vmem [shape: f32[2,200,3], index: 0, kind: input, shape index: {}]
  %s1 = inlined_call_operand.hbm [shape: f32[3,64], index: 1, kind: input, shape index: {}]
  %s2 = inlined_call_operand.hbm [shape: f32[1,64], index: 2, kind: input, shape index: {}]
  %s3 = inlined_call_operand.vmem [shape: bf16[64,128], index: 3, kind: input, shape index: {}]
  %s4 = inlined_call_operand.hbm [shape: f32[1,128], index: 4, kind: input, shape index: {}]
  %s5 = inlined_call_operand.vmem [shape: bf16[128,1024], index: 5, kind: input, shape index: {}]
  %s6 = inlined_call_operand.hbm [shape: f32[1,1024], index: 6, kind: input, shape index: {}]
  %s7 = inlined_call_operand.vmem [shape: f32[2,1,1024], index: 7, kind: output, shape index: {}]
  %s8 = sld [smem:[#allocation0]]
  $region85: #{pointnet_forward.2} parent=0
    _
  %s10 = ssub.s32 1, %s8
  %s11 = scalar_select 0, %s10, %s8
  $region1: #{pointnet_forward.2} parent=0
    #allocation3 [shape = 'u8[2048]{0}', space=vmem, size = 0x800, scoped, tag = 'input window, operand 1, single buffered']
    #allocation4 [shape = 's32[2]{0}', space=sflag, size = 0x8, scoped, tag = 'scoped memory for pointnet_forward.2']
    #allocation5 [shape = 'u8[512]{0}', space=vmem, size = 0x400, scoped, tag = 'input window, operand 2, single buffered']
    #allocation6 [shape = 's32[1]{0}', space=sflag, size = 0x4, scoped, tag = 'scoped memory for pointnet_forward.2']
    #allocation7 [shape = 'u8[512]{0}', space=vmem, size = 0x400, scoped, tag = 'input window, operand 4, single buffered']
    #allocation8 [shape = 'u8[4096]{0}', space=vmem, size = 0x1000, scoped, tag = 'input window, operand 6, single buffered']
    #allocation9 [shape = 's32[1]{0}', space=sflag, size = 0x4, scoped, tag = 'scoped memory for pointnet_forward.2']
    %12 = vsyncpa [#allocation4], 0
    %13 = vsyncpa [#allocation6], 0
    %14 = vsyncpa [#allocation9], 0
    loop: start=0, step=1, limit=4
    $region2: #{pointnet_forward.2} parent=1 // loop_pre_header
      _
    $region3: #{pointnet_forward.2} parent=1 // loop_header
      %s16 = sphi 0, %s20
      %p17 = scmp.ge.s32.totalorder %s16, 4
      %s23 = sphi 0, %s35
      %s24 = sphi 0, %s31
      %s25 = sphi 0, %s23
      %s26 = sphi 0, %s24
      %s27 = sphi 0, %s25
      %s28 = sphi 0, %s26
      %s40 = sphi 0, %s42
      %s43 = sphi 0, %s40
      %s44 = sphi 0, %s43
      %s60 = sphi 0, %s44
      %s64 = sphi 0, %s64
      %s66 = sphi 0, %s64
      %s67 = sphi 0, %s66
      %s81 = sphi 0, %s67
      %s85 = sphi 0, %s85
      %s87 = sphi 0, %s85
      %s88 = sphi 0, %s87
      %s102 = sphi 0, %s88
      %s106 = sphi 0, %s106
      %s108 = sphi 0, %s106
      %s109 = sphi 0, %s108
      %s123 = sphi 0, %s109
      %s127 = sphi 0, %s127
      %s129 = sphi 0, %s127
      %s130 = sphi 0, %s129
      %s144 = sphi 0, %s130
      %s148 = sphi 0, %s148
      %s150 = sphi 0, %s148
      %s151 = sphi 0, %s150
      %s165 = sphi 0, %s151
      %s169 = sphi 0, %s169
      %s171 = sphi 0, %s169
      %s172 = sphi 0, %s171
      %s186 = sphi 0, %s172
      %s192 = sphi 0, %s194
      %s195 = sphi 0, %s192
      %s196 = sphi 0, %s195
      %s212 = sphi 0, %s196
    $region4: #{pointnet_forward.2} parent=1 // loop_header_branch
      %19 = sbr.rel (%p17) target = $region8
    $region5: #{pointnet_forward.2} parent=1 // loop_body
      %s21 = ssub.s32 %s16, 1
      %s22 = ssub.s32 %s16, 2
      %s29 = sadd.s32 1, %s24
      %p30 = scmp.ge.s32.totalorder %s29, 1
      %s31 = scalar_select %p30, 0, %s29
      %s32 = sadd.s32 1, %s23
      %s33 = scalar_select %p30, %s32, %s23
      %p34 = scmp.ge.s32.totalorder %s33, 2
      %s35 = scalar_select %p34, 0, %s33
      %s36 = ssub.s32 %s23, %s35
      %s37 = ssub.s32 %s24, %s31
      %s38 = sor.u32 %s36, %s37
      %p39 = scmp.eq.s32.totalorder %s38, 0
      %s41 = sadd.s32 %s40, 1
      %s42 = scalar_select %p39, %s40, %s41
      %p45 = pneg %p39
      %p46 = scmp.eq.s32.totalorder %s16, 1
      %p47 = por %p45, %p46
      %p48 = scmp.ne.s32.totalorder %s40, %s43
      %p49 = scmp.eq.s32.totalorder %s16, 0
      %p50 = por %p48, %p49
      %p51 = scmp.ne.s32.totalorder %s40, %s43
      %p52 = scmp.eq.s32.totalorder %s21, 1
      %p53 = por %p51, %p52
      %p54 = scmp.ne.s32.totalorder %s43, %s44
      %p55 = scmp.eq.s32.totalorder %s21, 0
      %p56 = por %p54, %p55
      %p57 = scmp.ne.s32.totalorder %s43, %s44
      %p58 = scmp.eq.s32.totalorder %s22, 1
      %p59 = por %p57, %p58
      %p61 = scmp.ne.s32.totalorder %s44, %s60
      %p62 = scmp.eq.s32.totalorder %s22, 0
      %p63 = por %p61, %p62
      %s65 = sadd.s32 %s64, 1
      %p68 = scmp.eq.s32.totalorder %s16, 1
      %p69 = scmp.ne.s32.totalorder %s64, %s66
      %p70 = scmp.eq.s32.totalorder %s16, 0
      %p71 = por %p69, %p70
      %p72 = scmp.ne.s32.totalorder %s64, %s66
      %p73 = scmp.eq.s32.totalorder %s21, 1
      %p74 = por %p72, %p73
      %p75 = scmp.ne.s32.totalorder %s66, %s67
      %p76 = scmp.eq.s32.totalorder %s21, 0
      %p77 = por %p75, %p76
      %p78 = scmp.ne.s32.totalorder %s66, %s67
      %p79 = scmp.eq.s32.totalorder %s22, 1
      %p80 = por %p78, %p79
      %p82 = scmp.ne.s32.totalorder %s67, %s81
      %p83 = scmp.eq.s32.totalorder %s22, 0
      %p84 = por %p82, %p83
      %s86 = sadd.s32 %s85, 1
      %p89 = scmp.eq.s32.totalorder %s16, 1
      %p90 = scmp.ne.s32.totalorder %s85, %s87
      %p91 = scmp.eq.s32.totalorder %s16, 0
      %p92 = por %p90, %p91
      %p93 = scmp.ne.s32.totalorder %s85, %s87
      %p94 = scmp.eq.s32.totalorder %s21, 1
      %p95 = por %p93, %p94
      %p96 = scmp.ne.s32.totalorder %s87, %s88
      %p97 = scmp.eq.s32.totalorder %s21, 0
      %p98 = por %p96, %p97
      %p99 = scmp.ne.s32.totalorder %s87, %s88
      %p100 = scmp.eq.s32.totalorder %s22, 1
      %p101 = por %p99, %p100
      %p103 = scmp.ne.s32.totalorder %s88, %s102
      %p104 = scmp.eq.s32.totalorder %s22, 0
      %p105 = por %p103, %p104
      %s107 = sadd.s32 %s106, 1
      %p110 = scmp.eq.s32.totalorder %s16, 1
      %p111 = scmp.ne.s32.totalorder %s106, %s108
      %p112 = scmp.eq.s32.totalorder %s16, 0
      %p113 = por %p111, %p112
      %p114 = scmp.ne.s32.totalorder %s106, %s108
      %p115 = scmp.eq.s32.totalorder %s21, 1
      %p116 = por %p114, %p115
      %p117 = scmp.ne.s32.totalorder %s108, %s109
      %p118 = scmp.eq.s32.totalorder %s21, 0
      %p119 = por %p117, %p118
      %p120 = scmp.ne.s32.totalorder %s108, %s109
      %p121 = scmp.eq.s32.totalorder %s22, 1
      %p122 = por %p120, %p121
      %p124 = scmp.ne.s32.totalorder %s109, %s123
      %p125 = scmp.eq.s32.totalorder %s22, 0
      %p126 = por %p124, %p125
      %s128 = sadd.s32 %s127, 1
      %p131 = scmp.eq.s32.totalorder %s16, 1
      %p132 = scmp.ne.s32.totalorder %s127, %s129
      %p133 = scmp.eq.s32.totalorder %s16, 0
      %p134 = por %p132, %p133
      %p135 = scmp.ne.s32.totalorder %s127, %s129
      %p136 = scmp.eq.s32.totalorder %s21, 1
      %p137 = por %p135, %p136
      %p138 = scmp.ne.s32.totalorder %s129, %s130
      %p139 = scmp.eq.s32.totalorder %s21, 0
      %p140 = por %p138, %p139
      %p141 = scmp.ne.s32.totalorder %s129, %s130
      %p142 = scmp.eq.s32.totalorder %s22, 1
      %p143 = por %p141, %p142
      %p145 = scmp.ne.s32.totalorder %s130, %s144
      %p146 = scmp.eq.s32.totalorder %s22, 0
      %p147 = por %p145, %p146
      %s149 = sadd.s32 %s148, 1
      %p152 = scmp.eq.s32.totalorder %s16, 1
      %p153 = scmp.ne.s32.totalorder %s148, %s150
      %p154 = scmp.eq.s32.totalorder %s16, 0
      %p155 = por %p153, %p154
      %p156 = scmp.ne.s32.totalorder %s148, %s150
      %p157 = scmp.eq.s32.totalorder %s21, 1
      %p158 = por %p156, %p157
      %p159 = scmp.ne.s32.totalorder %s150, %s151
      %p160 = scmp.eq.s32.totalorder %s21, 0
      %p161 = por %p159, %p160
      %p162 = scmp.ne.s32.totalorder %s150, %s151
      %p163 = scmp.eq.s32.totalorder %s22, 1
      %p164 = por %p162, %p163
      %p166 = scmp.ne.s32.totalorder %s151, %s165
      %p167 = scmp.eq.s32.totalorder %s22, 0
      %p168 = por %p166, %p167
      %s170 = sadd.s32 %s169, 1
      %p173 = scmp.eq.s32.totalorder %s16, 1
      %p174 = scmp.ne.s32.totalorder %s169, %s171
      %p175 = scmp.eq.s32.totalorder %s16, 0
      %p176 = por %p174, %p175
      %p177 = scmp.ne.s32.totalorder %s169, %s171
      %p178 = scmp.eq.s32.totalorder %s21, 1
      %p179 = por %p177, %p178
      %p180 = scmp.ne.s32.totalorder %s171, %s172
      %p181 = scmp.eq.s32.totalorder %s21, 0
      %p182 = por %p180, %p181
      %p183 = scmp.ne.s32.totalorder %s171, %s172
      %p184 = scmp.eq.s32.totalorder %s22, 1
      %p185 = por %p183, %p184
      %p187 = scmp.ne.s32.totalorder %s172, %s186
      %p188 = scmp.eq.s32.totalorder %s22, 0
      %p189 = por %p187, %p188
      %s190 = ssub.s32 %s23, %s35
      %p191 = scmp.eq.s32.totalorder %s190, 0
      %s193 = sadd.s32 %s192, 1
      %s194 = scalar_select %p191, %s192, %s193
      %p197 = pneg %p191
      %p198 = scmp.eq.s32.totalorder %s16, 1
      %p199 = por %p197, %p198
      %p200 = scmp.ne.s32.totalorder %s192, %s195
      %p201 = scmp.eq.s32.totalorder %s16, 0
      %p202 = por %p200, %p201
      %p203 = scmp.ne.s32.totalorder %s192, %s195
      %p204 = scmp.eq.s32.totalorder %s21, 1
      %p205 = por %p203, %p204
      %p206 = scmp.ne.s32.totalorder %s195, %s196
      %p207 = scmp.eq.s32.totalorder %s21, 0
      %p208 = por %p206, %p207
      %p209 = scmp.ne.s32.totalorder %s195, %s196
      %p210 = scmp.eq.s32.totalorder %s22, 1
      %p211 = por %p209, %p210
      %p213 = scmp.ne.s32.totalorder %s196, %s212
      %p214 = scmp.eq.s32.totalorder %s22, 0
      %p215 = por %p213, %p214
      %p216 = scmp.le.s32.totalorder 1, %s16
      %p217 = scmp.lt.s32.totalorder %s16, 3
      %p218 = pnand %p216, %p217
      %p219 = pneg %p218
      // Predicated region
      $region9: #{pointnet_forward.2} parent=5 // pred_check
        _
      $region10: #{pointnet_forward.2} parent=5 // pred_check_branch
        %221 = sbr.rel (%p218) target = $region12
      $region11: #{pointnet_forward.2} parent=5 // pred_region
        %s222 = ssub.s32 %s16, 1
        // Predicated region
        $region13: #{pointnet_forward.2} parent=11 // pred_check
          %p223 = pneg %p77
        $region14: #{pointnet_forward.2} parent=11 // pred_check_branch
          %225 = sbr.rel (%p223) target = $region16
        $region15: #{pointnet_forward.2} parent=11 // pred_region
          %s227 = ssub.s32 64, 64
          %228 = vsyncadd [#allocation4], %s227
          %s230 = sshll.u32 [#allocation3], 4
          %s231 = int_to_ptr.vmem [resolvable:$true] %s230
          %233 = dma.hbm_to_vmem [thread:$0]  %s1, 64, %s231, [#allocation4]
        $region16: #{pointnet_forward.2} parent=11 // pred_fallthru
          _
        // Predicated region
        $region17: #{pointnet_forward.2} parent=11 // pred_check
          %p234 = pneg %p98
        $region18: #{pointnet_forward.2} parent=11 // pred_check_branch
          %236 = sbr.rel (%p234) target = $region20
        $region19: #{pointnet_forward.2} parent=11 // pred_region
          %s238 = ssub.s32 16, 16
          %239 = vsyncadd [#allocation6], %s238
          %s241 = sshll.u32 [#allocation5], 4
          %s242 = int_to_ptr.vmem [resolvable:$true] %s241
          %244 = dma.hbm_to_vmem [thread:$0]  %s2, 16, %s242, [#allocation6]
        $region20: #{pointnet_forward.2} parent=11 // pred_fallthru
          _
        // Predicated region
        $region21: #{pointnet_forward.2} parent=11 // pred_check
          %p245 = pneg %p119
        $region22: #{pointnet_forward.2} parent=11 // pred_check_branch
          %247 = sbr.rel (%p245) target = $region24
        $region23: #{pointnet_forward.2} parent=11 // pred_region
          _
        $region24: #{pointnet_forward.2} parent=11 // pred_fallthru
          _
        // Predicated region
        $region25: #{pointnet_forward.2} parent=11 // pred_check
          %p248 = pneg %p140
        $region26: #{pointnet_forward.2} parent=11 // pred_check_branch
          %250 = sbr.rel (%p248) target = $region28
        $region27: #{pointnet_forward.2} parent=11 // pred_region
          %s252 = ssub.s32 16, 16
          %253 = vsyncadd [#allocation6], %s252
          %s255 = sshll.u32 [#allocation7], 4
          %s256 = int_to_ptr.vmem [resolvable:$true] %s255
          %258 = dma.hbm_to_vmem [thread:$0]  %s4, 16, %s256, [#allocation6]
        $region28: #{pointnet_forward.2} parent=11 // pred_fallthru
          _
        // Predicated region
        $region29: #{pointnet_forward.2} parent=11 // pred_check
          %p259 = pneg %p161
        $region30: #{pointnet_forward.2} parent=11 // pred_check_branch
          %261 = sbr.rel (%p259) target = $region32
        $region31: #{pointnet_forward.2} parent=11 // pred_region
          _
        $region32: #{pointnet_forward.2} parent=11 // pred_fallthru
          _
        // Predicated region
        $region33: #{pointnet_forward.2} parent=11 // pred_check
          %p262 = pneg %p182
        $region34: #{pointnet_forward.2} parent=11 // pred_check_branch
          %264 = sbr.rel (%p262) target = $region36
        $region35: #{pointnet_forward.2} parent=11 // pred_region
          %s266 = ssub.s32 128, 128
          %267 = vsyncadd [#allocation9], %s266
          %s269 = sshll.u32 [#allocation8], 4
          %s270 = int_to_ptr.vmem [resolvable:$true] %s269
          %272 = dma.hbm_to_vmem [thread:$0]  %s6, 128, %s270, [#allocation9]
        $region36: #{pointnet_forward.2} parent=11 // pred_fallthru
          _
      $region12: #{pointnet_forward.2} parent=5 // pred_fallthru
        _
      %p273 = scmp.lt.s32.totalorder %s16, 2
      // Predicated region
      $region37: #{pointnet_forward.2} parent=5 // pred_check
        %p274 = pneg %p273
      $region38: #{pointnet_forward.2} parent=5 // pred_check_branch
        %276 = sbr.rel (%p274) target = $region40
      $region39: #{pointnet_forward.2} parent=5 // pred_region
        // Predicated region
        $region41: #{pointnet_forward.2} parent=39 // pred_check
          %p277 = pneg %p50
        $region42: #{pointnet_forward.2} parent=39 // pred_check_branch
          %279 = sbr.rel (%p277) target = $region44
        $region43: #{pointnet_forward.2} parent=39 // pred_region
          %s280 = smul.u32 25, %s24
          %p281 = scmp.lt.s32.totalorder %s23, 1
          %s282 = scalar_select %p281, %s23, 1
          %p283 = scmp.lt.s32.totalorder %s280, 24
          %s284 = scalar_select %p283, %s280, 24
          %s285 = smul.addr %s282, 25
          %s286 = sadd.s32 %s284, %s285
          %s287 = smul.addr %s286, 8
          %s288 = scalar_lea.vmem %s0, %s287
          %s289 = smul.u32 25, %s24
        $region44: #{pointnet_forward.2} parent=39 // pred_fallthru
          _
      $region40: #{pointnet_forward.2} parent=5 // pred_fallthru
        _
      %p290 = scmp.le.s32.totalorder 1, %s16
      %p291 = scmp.lt.s32.totalorder %s16, 3
      %p292 = pnand %p290, %p291
      %p293 = pneg %p292
      // Predicated region
      $region45: #{pointnet_forward.2} parent=5 // pred_check
        _
      $region46: #{pointnet_forward.2} parent=5 // pred_check_branch
        %295 = sbr.rel (%p292) target = $region48
      $region47: #{pointnet_forward.2} parent=5 // pred_region
        %s296 = ssub.s32 %s16, 1
        // Predicated region
        $region49: #{pointnet_forward.2} parent=47 // pred_check
          %p297 = pneg %p77
        $region50: #{pointnet_forward.2} parent=47 // pred_check_branch
          %299 = sbr.rel (%p297) target = $region52
        $region51: #{pointnet_forward.2} parent=47 // pred_region
          %300 = dma.done [#allocation4], 64
        $region52: #{pointnet_forward.2} parent=47 // pred_fallthru
          _
        // Predicated region
        $region53: #{pointnet_forward.2} parent=47 // pred_check
          %p301 = pneg %p98
        $region54: #{pointnet_forward.2} parent=47 // pred_check_branch
          %303 = sbr.rel (%p301) target = $region56
        $region55: #{pointnet_forward.2} parent=47 // pred_region
          %304 = dma.done [#allocation6], 16
        $region56: #{pointnet_forward.2} parent=47 // pred_fallthru
          _
        // Predicated region
        $region57: #{pointnet_forward.2} parent=47 // pred_check
          %p305 = pneg %p140
        $region58: #{pointnet_forward.2} parent=47 // pred_check_branch
          %307 = sbr.rel (%p305) target = $region60
        $region59: #{pointnet_forward.2} parent=47 // pred_region
          %308 = dma.done [#allocation6], 16
        $region60: #{pointnet_forward.2} parent=47 // pred_fallthru
          _
        // Predicated region
        $region61: #{pointnet_forward.2} parent=47 // pred_check
          %p309 = pneg %p182
        $region62: #{pointnet_forward.2} parent=47 // pred_check_branch
          %311 = sbr.rel (%p309) target = $region64
        $region63: #{pointnet_forward.2} parent=47 // pred_region
          %312 = dma.done [#allocation9], 128
        $region64: #{pointnet_forward.2} parent=47 // pred_fallthru
          _
        %s313 = smul.u32 25, %s26
        %p314 = scmp.lt.s32.totalorder %s25, 1
        %s315 = scalar_select %p314, %s25, 1
        %p316 = scmp.lt.s32.totalorder %s313, 24
        %s317 = scalar_select %p316, %s313, 24
        %s318 = smul.addr %s315, 25
        %s319 = sadd.s32 %s317, %s318
        %s320 = smul.addr %s319, 8
        %s321 = scalar_lea.vmem %s0, %s320
        %p322 = pneg %p56
        %p323 = pneg %p53
        %p324 = pneg %p77
        %p325 = pneg %p74
        %p326 = pneg %p98
        %p327 = pneg %p95
        %p328 = pneg %p119
        %p329 = pneg %p116
        %p330 = pneg %p140
        %p331 = pneg %p137
        %p332 = pneg %p161
        %p333 = pneg %p158
        %p334 = pneg %p182
        %p335 = pneg %p179
        %p336 = pneg %p208
        %p337 = pneg %p205
        %p338 = scmp.lt.s32.totalorder %s25, 1
        %s339 = scalar_select %p338, %s25, 1
        %s340 = smul.addr %s339, 8
        %s341 = scalar_lea.vmem %s7, %s340
        %s342 = smul.u32 25, %s26
        %p343 = scmp.lt.s32.totalorder %s25, 1
        %s344 = scalar_select %p343, %s25, 1
        %p345 = scmp.lt.s32.totalorder %s342, 24
        %s346 = scalar_select %p345, %s342, 24
        %s347 = smul.addr %s344, 25
        %s348 = sadd.s32 %s346, %s347
        %s349 = smul.addr %s348, 8
        %s350 = scalar_lea.vmem %s0, %s349
        %s351 = smul.u32 25, %s26
        %p352 = scmp.lt.s32.totalorder %s25, 1
        %s353 = scalar_select %p352, %s25, 1
        %s354 = smul.addr %s353, 8
        %s355 = scalar_lea.vmem %s7, %s354
        %p357 = scmp.eq.s32.totalorder %s26, 0
        // Predicated region
        $region65: #{pointnet_forward.2} parent=47 // pred_check
          %p358 = pneg %p357
        $region66: #{pointnet_forward.2} parent=47 // pred_check_branch
          %360 = sbr.rel (%p358) target = $region68
        $region67: #{pointnet_forward.2} parent=47 // pred_region
          %361 = vst [vmem:[#allocation2] sm:$0xff] -inf
        $region68: #{pointnet_forward.2} parent=47 // pred_fallthru
          _
        %v362 = vld [vmem:[%s350] sm:$0xff]
        %v363 = vld [vmem:[%s350 + $0x8] sm:$0xff]
        %v364 = vld [vmem:[%s350 + $0x10] sm:$0xff]
        %v365 = vld [vmem:[%s350 + $0x18] sm:$0xff]
        %v366 = vld [vmem:[%s350 + $0x20] sm:$0xff]
        %v367 = vld [vmem:[%s350 + $0x28] sm:$0xff]
        %v368 = vld [vmem:[%s350 + $0x30] sm:$0xff]
        %v369 = vld [vmem:[%s350 + $0x38] sm:$0xff]
        %v370 = vld [vmem:[%s350 + $0x40] sm:$0xff]
        %v371 = vld [vmem:[%s350 + $0x48] sm:$0xff]
        %v372 = vld [vmem:[%s350 + $0x50] sm:$0xff]
        %v373 = vld [vmem:[%s350 + $0x58] sm:$0xff]
        %v374 = vld [vmem:[%s350 + $0x60] sm:$0xff]
        %v375 = vld [vmem:[%s350 + $0x68] sm:$0xff]
        %v376 = vld [vmem:[%s350 + $0x70] sm:$0xff]
        %v377 = vld [vmem:[%s350 + $0x78] sm:$0xff]
        %v378 = vld [vmem:[%s350 + $0x80] sm:$0xff]
        %v379 = vld [vmem:[%s350 + $0x88] sm:$0xff]
        %v380 = vld [vmem:[%s350 + $0x90] sm:$0xff]
        %v381 = vld [vmem:[%s350 + $0x98] sm:$0xff]
        %v382 = vld [vmem:[%s350 + $0xa0] sm:$0xff]
        %v383 = vld [vmem:[%s350 + $0xa8] sm:$0xff]
        %v384 = vld [vmem:[%s350 + $0xb0] sm:$0xff]
        %v385 = vld [vmem:[%s350 + $0xb8] sm:$0xff]
        %v386 = vld [vmem:[%s350 + $0xc0] sm:$0xff]
        %v387 = vld [vmem:[#allocation3] sm:$0x7]
        %389 = vset.pattern.permute.xlu0 0
        %390 = vperm.xlu0 %389, %v362
        %v391 = vpop.permute.xlu0 %390
        %394 = vset.pattern.permute.xlu0 0
        %395 = vperm.xlu0 %394, %v363
        %v396 = vpop.permute.xlu0 %395
        %399 = vset.pattern.permute.xlu0 0
        %400 = vperm.xlu0 %399, %v364
        %v401 = vpop.permute.xlu0 %400
        %404 = vset.pattern.permute.xlu0 0
        %405 = vperm.xlu0 %404, %v365
        %v406 = vpop.permute.xlu0 %405
        %409 = vset.pattern.permute.xlu0 0
        %410 = vperm.xlu0 %409, %v366
        %v411 = vpop.permute.xlu0 %410
        %414 = vset.pattern.permute.xlu0 0
        %415 = vperm.xlu0 %414, %v367
        %v416 = vpop.permute.xlu0 %415
        %419 = vset.pattern.permute.xlu0 0
        %420 = vperm.xlu0 %419, %v368
        %v421 = vpop.permute.xlu0 %420
        %424 = vset.pattern.permute.xlu0 0
        %425 = vperm.xlu0 %424, %v369
        %v426 = vpop.permute.xlu0 %425
        %429 = vset.pattern.permute.xlu0 0
        %430 = vperm.xlu0 %429, %v370
        %v431 = vpop.permute.xlu0 %430
        %434 = vset.pattern.permute.xlu0 0
        %435 = vperm.xlu0 %434, %v371
        %v436 = vpop.permute.xlu0 %435
        %439 = vset.pattern.permute.xlu0 0
        %440 = vperm.xlu0 %439, %v372
        %v441 = vpop.permute.xlu0 %440
        %444 = vset.pattern.permute.xlu0 0
        %445 = vperm.xlu0 %444, %v373
        %v446 = vpop.permute.xlu0 %445
        %449 = vset.pattern.permute.xlu0 0
        %450 = vperm.xlu0 %449, %v374
        %v451 = vpop.permute.xlu0 %450
        %454 = vset.pattern.permute.xlu0 0
        %455 = vperm.xlu0 %454, %v375
        %v456 = vpop.permute.xlu0 %455
        %459 = vset.pattern.permute.xlu0 0
        %460 = vperm.xlu0 %459, %v376
        %v461 = vpop.permute.xlu0 %460
        %464 = vset.pattern.permute.xlu0 0
        %465 = vperm.xlu0 %464, %v377
        %v466 = vpop.permute.xlu0 %465
        %469 = vset.pattern.permute.xlu0 0
        %470 = vperm.xlu0 %469, %v378
        %v471 = vpop.permute.xlu0 %470
        %474 = vset.pattern.permute.xlu0 0
        %475 = vperm.xlu0 %474, %v379
        %v476 = vpop.permute.xlu0 %475
        %479 = vset.pattern.permute.xlu0 0
        %480 = vperm.xlu0 %479, %v380
        %v481 = vpop.permute.xlu0 %480
        %484 = vset.pattern.permute.xlu0 0
        %485 = vperm.xlu0 %484, %v381
        %v486 = vpop.permute.xlu0 %485
        %489 = vset.pattern.permute.xlu0 0
        %490 = vperm.xlu0 %489, %v382
        %v491 = vpop.permute.xlu0 %490
        %494 = vset.pattern.permute.xlu0 0
        %495 = vperm.xlu0 %494, %v383
        %v496 = vpop.permute.xlu0 %495
        %499 = vset.pattern.permute.xlu0 0
        %500 = vperm.xlu0 %499, %v384
        %v501 = vpop.permute.xlu0 %500
        %504 = vset.pattern.permute.xlu0 0
        %505 = vperm.xlu0 %504, %v385
        %v506 = vpop.permute.xlu0 %505
        %509 = vset.pattern.permute.xlu0 0
        %510 = vperm.xlu0 %509, %v386
        %v511 = vpop.permute.xlu0 %510
        %v513 = vlaneseq
        %v514 = vshrl.u32 %v513, 7
        %v515 = vsub.s32 0, %v514
        %v516 = vrot.slane %v387, %v515
        %v517 = vmul.f32 %v391, %v516
        %v518 = vmul.f32 %v396, %v516
        %v519 = vmul.f32 %v401, %v516
        %v520 = vmul.f32 %v406, %v516
        %v521 = vmul.f32 %v411, %v516
        %v522 = vmul.f32 %v416, %v516
        %v523 = vmul.f32 %v421, %v516
        %v524 = vmul.f32 %v426, %v516
        %v525 = vmul.f32 %v431, %v516
        %v526 = vmul.f32 %v436, %v516
        %v527 = vmul.f32 %v441, %v516
        %v528 = vmul.f32 %v446, %v516
        %v529 = vmul.f32 %v451, %v516
        %v530 = vmul.f32 %v456, %v516
        %v531 = vmul.f32 %v461, %v516
        %v532 = vmul.f32 %v466, %v516
        %v533 = vmul.f32 %v471, %v516
        %v534 = vmul.f32 %v476, %v516
        %v535 = vmul.f32 %v481, %v516
        %v536 = vmul.f32 %v486, %v516
        %v537 = vmul.f32 %v491, %v516
        %v538 = vmul.f32 %v496, %v516
        %v539 = vmul.f32 %v501, %v516
        %v540 = vmul.f32 %v506, %v516
        %v541 = vmul.f32 %v511, %v516
        %542 = vset.pattern.permute.xlu0 1
        %543 = vperm.xlu0 %542, %v362
        %v544 = vpop.permute.xlu0 %543
        %546 = vset.pattern.permute.xlu0 1
        %547 = vperm.xlu0 %546, %v363
        %v548 = vpop.permute.xlu0 %547
        %550 = vset.pattern.permute.xlu0 1
        %551 = vperm.xlu0 %550, %v364
        %v552 = vpop.permute.xlu0 %551
        %554 = vset.pattern.permute.xlu0 1
        %555 = vperm.xlu0 %554, %v365
        %v556 = vpop.permute.xlu0 %555
        %558 = vset.pattern.permute.xlu0 1
        %559 = vperm.xlu0 %558, %v366
        %v560 = vpop.permute.xlu0 %559
        %562 = vset.pattern.permute.xlu0 1
        %563 = vperm.xlu0 %562, %v367
        %v564 = vpop.permute.xlu0 %563
        %566 = vset.pattern.permute.xlu0 1
        %567 = vperm.xlu0 %566, %v368
        %v568 = vpop.permute.xlu0 %567
        %570 = vset.pattern.permute.xlu0 1
        %571 = vperm.xlu0 %570, %v369
        %v572 = vpop.permute.xlu0 %571
        %574 = vset.pattern.permute.xlu0 1
        %575 = vperm.xlu0 %574, %v370
        %v576 = vpop.permute.xlu0 %575
        %578 = vset.pattern.permute.xlu0 1
        %579 = vperm.xlu0 %578, %v371
        %v580 = vpop.permute.xlu0 %579
        %582 = vset.pattern.permute.xlu0 1
        %583 = vperm.xlu0 %582, %v372
        %v584 = vpop.permute.xlu0 %583
        %586 = vset.pattern.permute.xlu0 1
        %587 = vperm.xlu0 %586, %v373
        %v588 = vpop.permute.xlu0 %587
        %590 = vset.pattern.permute.xlu0 1
        %591 = vperm.xlu0 %590, %v374
        %v592 = vpop.permute.xlu0 %591
        %594 = vset.pattern.permute.xlu0 1
        %595 = vperm.xlu0 %594, %v375
        %v596 = vpop.permute.xlu0 %595
        %598 = vset.pattern.permute.xlu0 1
        %599 = vperm.xlu0 %598, %v376
        %v600 = vpop.permute.xlu0 %599
        %602 = vset.pattern.permute.xlu0 1
        %603 = vperm.xlu0 %602, %v377
        %v604 = vpop.permute.xlu0 %603
        %606 = vset.pattern.permute.xlu0 1
        %607 = vperm.xlu0 %606, %v378
        %v608 = vpop.permute.xlu0 %607
        %610 = vset.pattern.permute.xlu0 1
        %611 = vperm.xlu0 %610, %v379
        %v612 = vpop.permute.xlu0 %611
        %614 = vset.pattern.permute.xlu0 1
        %615 = vperm.xlu0 %614, %v380
        %v616 = vpop.permute.xlu0 %615
        %618 = vset.pattern.permute.xlu0 1
        %619 = vperm.xlu0 %618, %v381
        %v620 = vpop.permute.xlu0 %619
        %622 = vset.pattern.permute.xlu0 1
        %623 = vperm.xlu0 %622, %v382
        %v624 = vpop.permute.xlu0 %623
        %626 = vset.pattern.permute.xlu0 1
        %627 = vperm.xlu0 %626, %v383
        %v628 = vpop.permute.xlu0 %627
        %630 = vset.pattern.permute.xlu0 1
        %631 = vperm.xlu0 %630, %v384
        %v632 = vpop.permute.xlu0 %631
        %634 = vset.pattern.permute.xlu0 1
        %635 = vperm.xlu0 %634, %v385
        %v636 = vpop.permute.xlu0 %635
        %638 = vset.pattern.permute.xlu0 1
        %639 = vperm.xlu0 %638, %v386
        %v640 = vpop.permute.xlu0 %639
        %v642 = vlaneseq
        %v643 = vshrl.u32 %v642, 7
        %v644 = vsub.s32 1, %v643
        %v645 = vrot.slane %v387, %v644
        %v646 = vmul.f32 %v544, %v645
        %v647 = vmul.f32 %v548, %v645
        %v648 = vmul.f32 %v552, %v645
        %v649 = vmul.f32 %v556, %v645
        %v650 = vmul.f32 %v560, %v645
        %v651 = vmul.f32 %v564, %v645
        %v652 = vmul.f32 %v568, %v645
        %v653 = vmul.f32 %v572, %v645
        %v654 = vmul.f32 %v576, %v645
        %v655 = vmul.f32 %v580, %v645
        %v656 = vmul.f32 %v584, %v645
        %v657 = vmul.f32 %v588, %v645
        %v658 = vmul.f32 %v592, %v645
        %v659 = vmul.f32 %v596, %v645
        %v660 = vmul.f32 %v600, %v645
        %v661 = vmul.f32 %v604, %v645
        %v662 = vmul.f32 %v608, %v645
        %v663 = vmul.f32 %v612, %v645
        %v664 = vmul.f32 %v616, %v645
        %v665 = vmul.f32 %v620, %v645
        %v666 = vmul.f32 %v624, %v645
        %v667 = vmul.f32 %v628, %v645
        %v668 = vmul.f32 %v632, %v645
        %v669 = vmul.f32 %v636, %v645
        %v670 = vmul.f32 %v640, %v645
        %v671 = vadd.f32 %v517, %v646
        %v672 = vadd.f32 %v518, %v647
        %v673 = vadd.f32 %v519, %v648
        %v674 = vadd.f32 %v520, %v649
        %v675 = vadd.f32 %v521, %v650
        %v676 = vadd.f32 %v522, %v651
        %v677 = vadd.f32 %v523, %v652
        %v678 = vadd.f32 %v524, %v653
        %v679 = vadd.f32 %v525, %v654
        %v680 = vadd.f32 %v526, %v655
        %v681 = vadd.f32 %v527, %v656
        %v682 = vadd.f32 %v528, %v657
        %v683 = vadd.f32 %v529, %v658
        %v684 = vadd.f32 %v530, %v659
        %v685 = vadd.f32 %v531, %v660
        %v686 = vadd.f32 %v532, %v661
        %v687 = vadd.f32 %v533, %v662
        %v688 = vadd.f32 %v534, %v663
        %v689 = vadd.f32 %v535, %v664
        %v690 = vadd.f32 %v536, %v665
        %v691 = vadd.f32 %v537, %v666
        %v692 = vadd.f32 %v538, %v667
        %v693 = vadd.f32 %v539, %v668
        %v694 = vadd.f32 %v540, %v669
        %v695 = vadd.f32 %v541, %v670
        %696 = vset.pattern.permute.xlu0 2
        %697 = vperm.xlu0 %696, %v362
        %v698 = vpop.permute.xlu0 %697
        %700 = vset.pattern.permute.xlu0 2
        %701 = vperm.xlu0 %700, %v363
        %v702 = vpop.permute.xlu0 %701
        %704 = vset.pattern.permute.xlu0 2
        %705 = vperm.xlu0 %704, %v364
        %v706 = vpop.permute.xlu0 %705
        %708 = vset.pattern.permute.xlu0 2
        %709 = vperm.xlu0 %708, %v365
        %v710 = vpop.permute.xlu0 %709
        %712 = vset.pattern.permute.xlu0 2
        %713 = vperm.xlu0 %712, %v366
        %v714 = vpop.permute.xlu0 %713
        %716 = vset.pattern.permute.xlu0 2
        %717 = vperm.xlu0 %716, %v367
        %v718 = vpop.permute.xlu0 %717
        %720 = vset.pattern.permute.xlu0 2
        %721 = vperm.xlu0 %720, %v368
        %v722 = vpop.permute.xlu0 %721
        %724 = vset.pattern.permute.xlu0 2
        %725 = vperm.xlu0 %724, %v369
        %v726 = vpop.permute.xlu0 %725
        %728 = vset.pattern.permute.xlu0 2
        %729 = vperm.xlu0 %728, %v370
        %v730 = vpop.permute.xlu0 %729
        %732 = vset.pattern.permute.xlu0 2
        %733 = vperm.xlu0 %732, %v371
        %v734 = vpop.permute.xlu0 %733
        %736 = vset.pattern.permute.xlu0 2
        %737 = vperm.xlu0 %736, %v372
        %v738 = vpop.permute.xlu0 %737
        %740 = vset.pattern.permute.xlu0 2
        %741 = vperm.xlu0 %740, %v373
        %v742 = vpop.permute.xlu0 %741
        %744 = vset.pattern.permute.xlu0 2
        %745 = vperm.xlu0 %744, %v374
        %v746 = vpop.permute.xlu0 %745
        %748 = vset.pattern.permute.xlu0 2
        %749 = vperm.xlu0 %748, %v375
        %v750 = vpop.permute.xlu0 %749
        %752 = vset.pattern.permute.xlu0 2
        %753 = vperm.xlu0 %752, %v376
        %v754 = vpop.permute.xlu0 %753
        %756 = vset.pattern.permute.xlu0 2
        %757 = vperm.xlu0 %756, %v377
        %v758 = vpop.permute.xlu0 %757
        %760 = vset.pattern.permute.xlu0 2
        %761 = vperm.xlu0 %760, %v378
        %v762 = vpop.permute.xlu0 %761
        %764 = vset.pattern.permute.xlu0 2
        %765 = vperm.xlu0 %764, %v379
        %v766 = vpop.permute.xlu0 %765
        %768 = vset.pattern.permute.xlu0 2
        %769 = vperm.xlu0 %768, %v380
        %v770 = vpop.permute.xlu0 %769
        %772 = vset.pattern.permute.xlu0 2
        %773 = vperm.xlu0 %772, %v381
        %v774 = vpop.permute.xlu0 %773
        %776 = vset.pattern.permute.xlu0 2
        %777 = vperm.xlu0 %776, %v382
        %v778 = vpop.permute.xlu0 %777
        %780 = vset.pattern.permute.xlu0 2
        %781 = vperm.xlu0 %780, %v383
        %v782 = vpop.permute.xlu0 %781
        %784 = vset.pattern.permute.xlu0 2
        %785 = vperm.xlu0 %784, %v384
        %v786 = vpop.permute.xlu0 %785
        %788 = vset.pattern.permute.xlu0 2
        %789 = vperm.xlu0 %788, %v385
        %v790 = vpop.permute.xlu0 %789
        %792 = vset.pattern.permute.xlu0 2
        %793 = vperm.xlu0 %792, %v386
        %v794 = vpop.permute.xlu0 %793
        %v796 = vlaneseq
        %v797 = vshrl.u32 %v796, 7
        %v798 = vsub.s32 2, %v797
        %v799 = vrot.slane %v387, %v798
        %v800 = vmul.f32 %v698, %v799
        %v801 = vmul.f32 %v702, %v799
        %v802 = vmul.f32 %v706, %v799
        %v803 = vmul.f32 %v710, %v799
        %v804 = vmul.f32 %v714, %v799
        %v805 = vmul.f32 %v718, %v799
        %v806 = vmul.f32 %v722, %v799
        %v807 = vmul.f32 %v726, %v799
        %v808 = vmul.f32 %v730, %v799
        %v809 = vmul.f32 %v734, %v799
        %v810 = vmul.f32 %v738, %v799
        %v811 = vmul.f32 %v742, %v799
        %v812 = vmul.f32 %v746, %v799
        %v813 = vmul.f32 %v750, %v799
        %v814 = vmul.f32 %v754, %v799
        %v815 = vmul.f32 %v758, %v799
        %v816 = vmul.f32 %v762, %v799
        %v817 = vmul.f32 %v766, %v799
        %v818 = vmul.f32 %v770, %v799
        %v819 = vmul.f32 %v774, %v799
        %v820 = vmul.f32 %v778, %v799
        %v821 = vmul.f32 %v782, %v799
        %v822 = vmul.f32 %v786, %v799
        %v823 = vmul.f32 %v790, %v799
        %v824 = vmul.f32 %v794, %v799
        %v825 = vadd.f32 %v671, %v800
        %v826 = vadd.f32 %v672, %v801
        %v827 = vadd.f32 %v673, %v802
        %v828 = vadd.f32 %v674, %v803
        %v829 = vadd.f32 %v675, %v804
        %v830 = vadd.f32 %v676, %v805
        %v831 = vadd.f32 %v677, %v806
        %v832 = vadd.f32 %v678, %v807
        %v833 = vadd.f32 %v679, %v808
        %v834 = vadd.f32 %v680, %v809
        %v835 = vadd.f32 %v681, %v810
        %v836 = vadd.f32 %v682, %v811
        %v837 = vadd.f32 %v683, %v812
        %v838 = vadd.f32 %v684, %v813
        %v839 = vadd.f32 %v685, %v814
        %v840 = vadd.f32 %v686, %v815
        %v841 = vadd.f32 %v687, %v816
        %v842 = vadd.f32 %v688, %v817
        %v843 = vadd.f32 %v689, %v818
        %v844 = vadd.f32 %v690, %v819
        %v845 = vadd.f32 %v691, %v820
        %v846 = vadd.f32 %v692, %v821
        %v847 = vadd.f32 %v693, %v822
        %v848 = vadd.f32 %v694, %v823
        %v849 = vadd.f32 %v695, %v824
        %v850 = vld [vmem:[#allocation5] sm:$0x1]
        %v852 = vlaneseq
        %v853 = vshrl.u32 %v852, 7
        %v854 = vsub.s32 0, %v853
        %v855 = vrot.slane %v850, %v854
        %v857 = vadd.f32 %v825, %v855
        %v858 = vadd.f32 %v826, %v855
        %v859 = vadd.f32 %v827, %v855
        %v860 = vadd.f32 %v828, %v855
        %v861 = vadd.f32 %v829, %v855
        %v862 = vadd.f32 %v830, %v855
        %v863 = vadd.f32 %v831, %v855
        %v864 = vadd.f32 %v832, %v855
        %v865 = vadd.f32 %v833, %v855
        %v866 = vadd.f32 %v834, %v855
        %v867 = vadd.f32 %v835, %v855
        %v868 = vadd.f32 %v836, %v855
        %v869 = vadd.f32 %v837, %v855
        %v870 = vadd.f32 %v838, %v855
        %v871 = vadd.f32 %v839, %v855
        %v872 = vadd.f32 %v840, %v855
        %v873 = vadd.f32 %v841, %v855
        %v874 = vadd.f32 %v842, %v855
        %v875 = vadd.f32 %v843, %v855
        %v876 = vadd.f32 %v844, %v855
        %v877 = vadd.f32 %v845, %v855
        %v878 = vadd.f32 %v846, %v855
        %v879 = vadd.f32 %v847, %v855
        %v880 = vadd.f32 %v848, %v855
        %v881 = vadd.f32 %v849, %v855
        %v882 = vmax.f32 %v857, 0.0
        %v883 = vmax.f32 %v858, 0.0
        %v884 = vmax.f32 %v859, 0.0
        %v885 = vmax.f32 %v860, 0.0
        %v886 = vmax.f32 %v861, 0.0
        %v887 = vmax.f32 %v862, 0.0
        %v888 = vmax.f32 %v863, 0.0
        %v889 = vmax.f32 %v864, 0.0
        %v890 = vmax.f32 %v865, 0.0
        %v891 = vmax.f32 %v866, 0.0
        %v892 = vmax.f32 %v867, 0.0
        %v893 = vmax.f32 %v868, 0.0
        %v894 = vmax.f32 %v869, 0.0
        %v895 = vmax.f32 %v870, 0.0
        %v896 = vmax.f32 %v871, 0.0
        %v897 = vmax.f32 %v872, 0.0
        %v898 = vmax.f32 %v873, 0.0
        %v899 = vmax.f32 %v874, 0.0
        %v900 = vmax.f32 %v875, 0.0
        %v901 = vmax.f32 %v876, 0.0
        %v902 = vmax.f32 %v877, 0.0
        %v903 = vmax.f32 %v878, 0.0
        %v904 = vmax.f32 %v879, 0.0
        %v905 = vmax.f32 %v880, 0.0
        %v906 = vmax.f32 %v881, 0.0
        %v907 = vpack.c.bf16 %v883, %v882
        %v908 = vpack.c.bf16 %v885, %v884
        %v909 = vpack.c.bf16 %v887, %v886
        %v910 = vpack.c.bf16 %v889, %v888
        %v911 = vpack.c.bf16 %v891, %v890
        %v912 = vpack.c.bf16 %v893, %v892
        %v913 = vpack.c.bf16 %v895, %v894
        %v914 = vpack.c.bf16 %v897, %v896
        %v915 = vpack.c.bf16 %v899, %v898
        %v916 = vpack.c.bf16 %v901, %v900
        %v917 = vpack.c.bf16 %v903, %v902
        %v918 = vpack.c.bf16 %v905, %v904
        %v919 = vpack.c.bf16 %v906, %v906
        %v920 = vld [vmem:[%s3] sm:$0xf]
        %v921 = vld [vmem:[%s3 + $0x4] sm:$0xf]
        %v922 = vld [vmem:[%s3 + $0x8] sm:$0xf]
        %v923 = vld [vmem:[%s3 + $0xc] sm:$0xf]
        %v924 = vld [vmem:[%s3 + $0x10] sm:$0xf]
        %v925 = vld [vmem:[%s3 + $0x14] sm:$0xf]
        %v926 = vld [vmem:[%s3 + $0x18] sm:$0xf]
        %v927 = vld [vmem:[%s3 + $0x1c] sm:$0xf]
        %v928 = vld [vmem:[#allocation7] sm:$0x1]
        %v930 = vlaneseq
        %v931 = vshrl.u32 %v930, 7
        %v932 = vsub.s32 0, %v931
        %v933 = vrot.slane %v928, %v932
        %v943 = vunpack.c.l.b16 %v920
        %v944 = vunpack.c.l.b16 %v921
        %v945 = vunpack.c.l.b16 %v922
        %v946 = vunpack.c.l.b16 %v923
        %v947 = vunpack.c.l.b16 %v924
        %v948 = vunpack.c.l.b16 %v925
        %v949 = vunpack.c.l.b16 %v926
        %v950 = vunpack.c.l.b16 %v927
        %v951 = vpack.c.b16 %v944, %v943
        %v952 = vpack.c.b16 %v946, %v945
        %v953 = vpack.c.b16 %v948, %v947
        %v954 = vpack.c.b16 %v950, %v949
        %vm959 = vcmask 523264
        %v961 = vsel %vm959, %v907, 0
        %v964 = vsel %vm959, %v908, 0
        %v967 = vsel %vm959, %v909, 0
        %v970 = vsel %vm959, %v910, 0
        %v973 = vsel %vm959, %v911, 0
        %v976 = vsel %vm959, %v912, 0
        %v979 = vsel %vm959, %v913, 0
        %v982 = vsel %vm959, %v914, 0
        %v985 = vsel %vm959, %v915, 0
        %v988 = vsel %vm959, %v916, 0
        %v991 = vsel %vm959, %v917, 0
        %v994 = vsel %vm959, %v918, 0
        %v997 = vsel %vm959, %v919, 0
        %999 = vmatprep.subr.bf16.mxu0 0
        %1000 = vmatpush1.bf16.msra.mxu0 %v951
        %1001 = vmatprep.subr.bf16.mxu0 0
        %1002 = vmatpush1.bf16.msra.mxu0 %v952
        %1003 = vmatprep.subr.bf16.mxu0 0
        %1004 = vmatpush1.bf16.msra.mxu0 %v953
        %1005 = vmatprep.subr.bf16.mxu0 0
        %1006 = vmatpush1.bf16.msra.mxu0 %v954
        %1007 = vmatprep.subr.bf16.mxu0 0
        %1008 = vmatpush1.bf16.msra.mxu0 0
        %1009 = vmatprep.subr.bf16.mxu0 0
        %1010 = vmatpush1.bf16.msra.mxu0 0
        %1011 = vmatprep.subr.bf16.mxu0 0
        %1012 = vmatpush1.bf16.msra.mxu0 0
        %1013 = vmatprep.subr.bf16.mxu0 0
        %1014 = vmatpush1.bf16.msra.mxu0 0
        %1015 = vmatprep.subr.bf16.mxu0 0
        %1016 = vmatpush1.bf16.msra.mxu0 0
        %1017 = vmatprep.subr.bf16.mxu0 0
        %1018 = vmatpush1.bf16.msra.mxu0 0
        %1019 = vmatprep.subr.bf16.mxu0 0
        %1020 = vmatpush1.bf16.msra.mxu0 0
        %1021 = vmatprep.subr.bf16.mxu0 0
        %1022 = vmatpush1.bf16.msra.mxu0 0
        %1023 = vmatprep.subr.bf16.mxu0 0
        %1024 = vmatpush1.bf16.msra.mxu0 0
        %1025 = vmatprep.subr.bf16.mxu0 0
        %1026 = vmatpush1.bf16.msra.mxu0 0
        %1027 = vmatprep.subr.bf16.mxu0 0
        %1028 = vmatpush1.bf16.msra.mxu0 0
        %1029 = vmatprep.subr.bf16.mxu0 0
        %1030 = vmatpush1.bf16.msra.mxu0 0
        %1031 = vmatprep.mubr.bf16.mxu0 0
        %1032 = vmatmul.mubr.bf16.gmra.mrb[0].mxu0 %v961
        %v1033 = vpop.f32.mrb[0].mxu0
        %v1034 = vadd.f32 %v933, %v1033
        %v1035 = vpop.f32.mrb[0].mxu0
        %v1036 = vpop.f32.mrb[0].mxu0
        %v1037 = vadd.f32 %v933, %v1036
        %v1038 = vpop.f32.mrb[0].mxu0
        %1039 = vmatprep.mubr.bf16.mxu0 0
        %1040 = vmatmul.mubr.bf16.gmra.mrb[0].mxu0 %v964
        %v1041 = vpop.f32.mrb[0].mxu0
        %v1042 = vadd.f32 %v933, %v1041
        %v1043 = vpop.f32.mrb[0].mxu0
        %v1044 = vpop.f32.mrb[0].mxu0
        %v1045 = vadd.f32 %v933, %v1044
        %v1046 = vpop.f32.mrb[0].mxu0
        %1047 = vmatprep.mubr.bf16.mxu0 0
        %1048 = vmatmul.mubr.bf16.gmra.mrb[0].mxu0 %v967
        %v1049 = vpop.f32.mrb[0].mxu0
        %v1050 = vadd.f32 %v933, %v1049
        %v1051 = vpop.f32.mrb[0].mxu0
        %v1052 = vpop.f32.mrb[0].mxu0
        %v1053 = vadd.f32 %v933, %v1052
        %v1054 = vpop.f32.mrb[0].mxu0
        %1055 = vmatprep.mubr.bf16.mxu0 0
        %1056 = vmatmul.mubr.bf16.gmra.mrb[0].mxu0 %v970
        %v1057 = vpop.f32.mrb[0].mxu0
        %v1058 = vadd.f32 %v933, %v1057
        %v1059 = vpop.f32.mrb[0].mxu0
        %v1060 = vpop.f32.mrb[0].mxu0
        %v1061 = vadd.f32 %v933, %v1060
        %v1062 = vpop.f32.mrb[0].mxu0
        %1063 = vmatprep.mubr.bf16.mxu0 0
        %1064 = vmatmul.mubr.bf16.gmra.mrb[0].mxu0 %v973
        %v1065 = vpop.f32.mrb[0].mxu0
        %v1066 = vadd.f32 %v933, %v1065
        %v1067 = vpop.f32.mrb[0].mxu0
        %v1068 = vpop.f32.mrb[0].mxu0
        %v1069 = vadd.f32 %v933, %v1068
        %v1070 = vpop.f32.mrb[0].mxu0
        %1071 = vmatprep.mubr.bf16.mxu0 0
        %1072 = vmatmul.mubr.bf16.gmra.mrb[0].mxu0 %v976
        %v1073 = vpop.f32.mrb[0].mxu0
        %v1074 = vadd.f32 %v933, %v1073
        %v1075 = vpop.f32.mrb[0].mxu0
        %v1076 = vpop.f32.mrb[0].mxu0
        %v1077 = vadd.f32 %v933, %v1076
        %v1078 = vpop.f32.mrb[0].mxu0
        %1079 = vmatprep.mubr.bf16.mxu0 0
        %1080 = vmatmul.mubr.bf16.gmra.mrb[0].mxu0 %v979
        %v1081 = vpop.f32.mrb[0].mxu0
        %v1082 = vadd.f32 %v933, %v1081
        %v1083 = vpop.f32.mrb[0].mxu0
        %v1084 = vpop.f32.mrb[0].mxu0
        %v1085 = vadd.f32 %v933, %v1084
        %v1086 = vpop.f32.mrb[0].mxu0
        %1087 = vmatprep.mubr.bf16.mxu0 0
        %1088 = vmatmul.mubr.bf16.gmra.mrb[0].mxu0 %v982
        %v1089 = vpop.f32.mrb[0].mxu0
        %v1090 = vadd.f32 %v933, %v1089
        %v1091 = vpop.f32.mrb[0].mxu0
        %v1092 = vpop.f32.mrb[0].mxu0
        %v1093 = vadd.f32 %v933, %v1092
        %v1094 = vpop.f32.mrb[0].mxu0
        %1095 = vmatprep.mubr.bf16.mxu0 0
        %1096 = vmatmul.mubr.bf16.gmra.mrb[0].mxu0 %v985
        %v1097 = vpop.f32.mrb[0].mxu0
        %v1098 = vadd.f32 %v933, %v1097
        %v1099 = vpop.f32.mrb[0].mxu0
        %v1100 = vpop.f32.mrb[0].mxu0
        %v1101 = vadd.f32 %v933, %v1100
        %v1102 = vpop.f32.mrb[0].mxu0
        %1103 = vmatprep.mubr.bf16.mxu0 0
        %1104 = vmatmul.mubr.bf16.gmra.mrb[0].mxu0 %v988
        %v1105 = vpop.f32.mrb[0].mxu0
        %v1106 = vadd.f32 %v933, %v1105
        %v1107 = vpop.f32.mrb[0].mxu0
        %v1108 = vpop.f32.mrb[0].mxu0
        %v1109 = vadd.f32 %v933, %v1108
        %v1110 = vpop.f32.mrb[0].mxu0
        %1111 = vmatprep.mubr.bf16.mxu0 0
        %1112 = vmatmul.mubr.bf16.gmra.mrb[0].mxu0 %v991
        %v1113 = vpop.f32.mrb[0].mxu0
        %v1114 = vadd.f32 %v933, %v1113
        %v1115 = vpop.f32.mrb[0].mxu0
        %v1116 = vpop.f32.mrb[0].mxu0
        %v1117 = vadd.f32 %v933, %v1116
        %v1118 = vpop.f32.mrb[0].mxu0
        %1119 = vmatprep.mubr.bf16.mxu0 0
        %1120 = vmatmul.mubr.bf16.gmra.mrb[0].mxu0 %v994
        %v1121 = vpop.f32.mrb[0].mxu0
        %v1122 = vadd.f32 %v933, %v1121
        %v1123 = vpop.f32.mrb[0].mxu0
        %v1124 = vpop.f32.mrb[0].mxu0
        %v1125 = vadd.f32 %v933, %v1124
        %v1126 = vpop.f32.mrb[0].mxu0
        %1127 = vmatprep.mubr.bf16.mxu0 0
        %1128 = vmatmul.mubr.bf16.gmra.mrb[0].mxu0 %v997
        %v1129 = vpop.f32.mrb[0].mxu0
        %v1130 = vadd.f32 %v933, %v1129
        %v1131 = vpop.f32.mrb[0].mxu0
        %v1132 = vpop.f32.mrb[0].mxu0
        %v1133 = vpop.f32.mrb[0].mxu0
        %1134 = vdwg.mxu0
        %v1135 = vmax.f32 %v1034, 0.0
        %v1136 = vmax.f32 %v1037, 0.0
        %v1137 = vmax.f32 %v1042, 0.0
        %v1138 = vmax.f32 %v1045, 0.0
        %v1139 = vmax.f32 %v1050, 0.0
        %v1140 = vmax.f32 %v1053, 0.0
        %v1141 = vmax.f32 %v1058, 0.0
        %v1142 = vmax.f32 %v1061, 0.0
        %v1143 = vmax.f32 %v1066, 0.0
        %v1144 = vmax.f32 %v1069, 0.0
        %v1145 = vmax.f32 %v1074, 0.0
        %v1146 = vmax.f32 %v1077, 0.0
        %v1147 = vmax.f32 %v1082, 0.0
        %v1148 = vmax.f32 %v1085, 0.0
        %v1149 = vmax.f32 %v1090, 0.0
        %v1150 = vmax.f32 %v1093, 0.0
        %v1151 = vmax.f32 %v1098, 0.0
        %v1152 = vmax.f32 %v1101, 0.0
        %v1153 = vmax.f32 %v1106, 0.0
        %v1154 = vmax.f32 %v1109, 0.0
        %v1155 = vmax.f32 %v1114, 0.0
        %v1156 = vmax.f32 %v1117, 0.0
        %v1157 = vmax.f32 %v1122, 0.0
        %v1158 = vmax.f32 %v1125, 0.0
        %v1159 = vmax.f32 %v1130, 0.0
        %v1160 = vpack.c.bf16 %v1136, %v1135
        %v1161 = vpack.c.bf16 %v1138, %v1137
        %v1162 = vpack.c.bf16 %v1140, %v1139
        %v1163 = vpack.c.bf16 %v1142, %v1141
        %v1164 = vpack.c.bf16 %v1144, %v1143
        %v1165 = vpack.c.bf16 %v1146, %v1145
        %v1166 = vpack.c.bf16 %v1148, %v1147
        %v1167 = vpack.c.bf16 %v1150, %v1149
        %v1168 = vpack.c.bf16 %v1152, %v1151
        %v1169 = vpack.c.bf16 %v1154, %v1153
        %v1170 = vpack.c.bf16 %v1156, %v1155
        %v1171 = vpack.c.bf16 %v1158, %v1157
        %v1172 = vpack.c.bf16 %v1159, %v1159
        %v1173 = vld [vmem:[%s5] sm:$0xff]
        %v1174 = vld [vmem:[%s5 + $0x8] sm:$0xff]
        %v1175 = vld [vmem:[%s5 + $0x10] sm:$0xff]
        %v1176 = vld [vmem:[%s5 + $0x18] sm:$0xff]
        %v1177 = vld [vmem:[%s5 + $0x20] sm:$0xff]
        %v1178 = vld [vmem:[%s5 + $0x28] sm:$0xff]
        %v1179 = vld [vmem:[%s5 + $0x30] sm:$0xff]
        %v1180 = vld [vmem:[%s5 + $0x38] sm:$0xff]
        %v1181 = vld [vmem:[%s5 + $0x40] sm:$0xff]
        %v1182 = vld [vmem:[%s5 + $0x48] sm:$0xff]
        %v1183 = vld [vmem:[%s5 + $0x50] sm:$0xff]
        %v1184 = vld [vmem:[%s5 + $0x58] sm:$0xff]
        %v1185 = vld [vmem:[%s5 + $0x60] sm:$0xff]
        %v1186 = vld [vmem:[%s5 + $0x68] sm:$0xff]
        %v1187 = vld [vmem:[%s5 + $0x70] sm:$0xff]
        %v1188 = vld [vmem:[%s5 + $0x78] sm:$0xff]
        %v1189 = vld [vmem:[%s5 + $0x80] sm:$0xff]
        %v1190 = vld [vmem:[%s5 + $0x88] sm:$0xff]
        %v1191 = vld [vmem:[%s5 + $0x90] sm:$0xff]
        %v1192 = vld [vmem:[%s5 + $0x98] sm:$0xff]
        %v1193 = vld [vmem:[%s5 + $0xa0] sm:$0xff]
        %v1194 = vld [vmem:[%s5 + $0xa8] sm:$0xff]
        %v1195 = vld [vmem:[%s5 + $0xb0] sm:$0xff]
        %v1196 = vld [vmem:[%s5 + $0xb8] sm:$0xff]
        %v1197 = vld [vmem:[%s5 + $0xc0] sm:$0xff]
        %v1198 = vld [vmem:[%s5 + $0xc8] sm:$0xff]
        %v1199 = vld [vmem:[%s5 + $0xd0] sm:$0xff]
        %v1200 = vld [vmem:[%s5 + $0xd8] sm:$0xff]
        %v1201 = vld [vmem:[%s5 + $0xe0] sm:$0xff]
        %v1202 = vld [vmem:[%s5 + $0xe8] sm:$0xff]
        %v1203 = vld [vmem:[%s5 + $0xf0] sm:$0xff]
        %v1204 = vld [vmem:[%s5 + $0xf8] sm:$0xff]
        %v1205 = vld [vmem:[%s5 + $0x100] sm:$0xff]
        %v1206 = vld [vmem:[%s5 + $0x108] sm:$0xff]
        %v1207 = vld [vmem:[%s5 + $0x110] sm:$0xff]
        %v1208 = vld [vmem:[%s5 + $0x118] sm:$0xff]
        %v1209 = vld [vmem:[%s5 + $0x120] sm:$0xff]
        %v1210 = vld [vmem:[%s5 + $0x128] sm:$0xff]
        %v1211 = vld [vmem:[%s5 + $0x130] sm:$0xff]
        %v1212 = vld [vmem:[%s5 + $0x138] sm:$0xff]
        %v1213 = vld [vmem:[%s5 + $0x140] sm:$0xff]
        %v1214 = vld [vmem:[%s5 + $0x148] sm:$0xff]
        %v1215 = vld [vmem:[%s5 + $0x150] sm:$0xff]
        %v1216 = vld [vmem:[%s5 + $0x158] sm:$0xff]
        %v1217 = vld [vmem:[%s5 + $0x160] sm:$0xff]
        %v1218 = vld [vmem:[%s5 + $0x168] sm:$0xff]
        %v1219 = vld [vmem:[%s5 + $0x170] sm:$0xff]
        %v1220 = vld [vmem:[%s5 + $0x178] sm:$0xff]
        %v1221 = vld [vmem:[%s5 + $0x180] sm:$0xff]
        %v1222 = vld [vmem:[%s5 + $0x188] sm:$0xff]
        %v1223 = vld [vmem:[%s5 + $0x190] sm:$0xff]
        %v1224 = vld [vmem:[%s5 + $0x198] sm:$0xff]
        %v1225 = vld [vmem:[%s5 + $0x1a0] sm:$0xff]
        %v1226 = vld [vmem:[%s5 + $0x1a8] sm:$0xff]
        %v1227 = vld [vmem:[%s5 + $0x1b0] sm:$0xff]
        %v1228 = vld [vmem:[%s5 + $0x1b8] sm:$0xff]
        %v1229 = vld [vmem:[%s5 + $0x1c0] sm:$0xff]
        %v1230 = vld [vmem:[%s5 + $0x1c8] sm:$0xff]
        %v1231 = vld [vmem:[%s5 + $0x1d0] sm:$0xff]
        %v1232 = vld [vmem:[%s5 + $0x1d8] sm:$0xff]
        %v1233 = vld [vmem:[%s5 + $0x1e0] sm:$0xff]
        %v1234 = vld [vmem:[%s5 + $0x1e8] sm:$0xff]
        %v1235 = vld [vmem:[%s5 + $0x1f0] sm:$0xff]
        %v1236 = vld [vmem:[%s5 + $0x1f8] sm:$0xff]
        %v1301 = vunpack.c.l.b16 %v1173
        %v1302 = vunpack.c.h.b16 %v1173
        %v1303 = vunpack.c.l.b16 %v1174
        %v1304 = vunpack.c.h.b16 %v1174
        %v1305 = vunpack.c.l.b16 %v1175
        %v1306 = vunpack.c.h.b16 %v1175
        %v1307 = vunpack.c.l.b16 %v1176
        %v1308 = vunpack.c.h.b16 %v1176
        %v1309 = vunpack.c.l.b16 %v1177
        %v1310 = vunpack.c.h.b16 %v1177
        %v1311 = vunpack.c.l.b16 %v1178
        %v1312 = vunpack.c.h.b16 %v1178
        %v1313 = vunpack.c.l.b16 %v1179
        %v1314 = vunpack.c.h.b16 %v1179
        %v1315 = vunpack.c.l.b16 %v1180
        %v1316 = vunpack.c.h.b16 %v1180
        %v1317 = vunpack.c.l.b16 %v1181
        %v1318 = vunpack.c.h.b16 %v1181
        %v1319 = vunpack.c.l.b16 %v1182
        %v1320 = vunpack.c.h.b16 %v1182
        %v1321 = vunpack.c.l.b16 %v1183
        %v1322 = vunpack.c.h.b16 %v1183
        %v1323 = vunpack.c.l.b16 %v1184
        %v1324 = vunpack.c.h.b16 %v1184
        %v1325 = vunpack.c.l.b16 %v1185
        %v1326 = vunpack.c.h.b16 %v1185
        %v1327 = vunpack.c.l.b16 %v1186
        %v1328 = vunpack.c.h.b16 %v1186
        %v1329 = vunpack.c.l.b16 %v1187
        %v1330 = vunpack.c.h.b16 %v1187
        %v1331 = vunpack.c.l.b16 %v1188
        %v1332 = vunpack.c.h.b16 %v1188
        %v1333 = vunpack.c.l.b16 %v1189
        %v1334 = vunpack.c.h.b16 %v1189
        %v1335 = vunpack.c.l.b16 %v1190
        %v1336 = vunpack.c.h.b16 %v1190
        %v1337 = vunpack.c.l.b16 %v1191
        %v1338 = vunpack.c.h.b16 %v1191
        %v1339 = vunpack.c.l.b16 %v1192
        %v1340 = vunpack.c.h.b16 %v1192
        %v1341 = vunpack.c.l.b16 %v1193
        %v1342 = vunpack.c.h.b16 %v1193
        %v1343 = vunpack.c.l.b16 %v1194
        %v1344 = vunpack.c.h.b16 %v1194
        %v1345 = vunpack.c.l.b16 %v1195
        %v1346 = vunpack.c.h.b16 %v1195
        %v1347 = vunpack.c.l.b16 %v1196
        %v1348 = vunpack.c.h.b16 %v1196
        %v1349 = vunpack.c.l.b16 %v1197
        %v1350 = vunpack.c.h.b16 %v1197
        %v1351 = vunpack.c.l.b16 %v1198
        %v1352 = vunpack.c.h.b16 %v1198
        %v1353 = vunpack.c.l.b16 %v1199
        %v1354 = vunpack.c.h.b16 %v1199
        %v1355 = vunpack.c.l.b16 %v1200
        %v1356 = vunpack.c.h.b16 %v1200
        %v1357 = vunpack.c.l.b16 %v1201
        %v1358 = vunpack.c.h.b16 %v1201
        %v1359 = vunpack.c.l.b16 %v1202
        %v1360 = vunpack.c.h.b16 %v1202
        %v1361 = vunpack.c.l.b16 %v1203
        %v1362 = vunpack.c.h.b16 %v1203
        %v1363 = vunpack.c.l.b16 %v1204
        %v1364 = vunpack.c.h.b16 %v1204
        %v1365 = vunpack.c.l.b16 %v1205
        %v1366 = vunpack.c.h.b16 %v1205
        %v1367 = vunpack.c.l.b16 %v1206
        %v1368 = vunpack.c.h.b16 %v1206
        %v1369 = vunpack.c.l.b16 %v1207
        %v1370 = vunpack.c.h.b16 %v1207
        %v1371 = vunpack.c.l.b16 %v1208
        %v1372 = vunpack.c.h.b16 %v1208
        %v1373 = vunpack.c.l.b16 %v1209
        %v1374 = vunpack.c.h.b16 %v1209
        %v1375 = vunpack.c.l.b16 %v1210
        %v1376 = vunpack.c.h.b16 %v1210
        %v1377 = vunpack.c.l.b16 %v1211
        %v1378 = vunpack.c.h.b16 %v1211
        %v1379 = vunpack.c.l.b16 %v1212
        %v1380 = vunpack.c.h.b16 %v1212
        %v1381 = vunpack.c.l.b16 %v1213
        %v1382 = vunpack.c.h.b16 %v1213
        %v1383 = vunpack.c.l.b16 %v1214
        %v1384 = vunpack.c.h.b16 %v1214
        %v1385 = vunpack.c.l.b16 %v1215
        %v1386 = vunpack.c.h.b16 %v1215
        %v1387 = vunpack.c.l.b16 %v1216
        %v1388 = vunpack.c.h.b16 %v1216
        %v1389 = vunpack.c.l.b16 %v1217
        %v1390 = vunpack.c.h.b16 %v1217
        %v1391 = vunpack.c.l.b16 %v1218
        %v1392 = vunpack.c.h.b16 %v1218
        %v1393 = vunpack.c.l.b16 %v1219
        %v1394 = vunpack.c.h.b16 %v1219
        %v1395 = vunpack.c.l.b16 %v1220
        %v1396 = vunpack.c.h.b16 %v1220
        %v1397 = vunpack.c.l.b16 %v1221
        %v1398 = vunpack.c.h.b16 %v1221
        %v1399 = vunpack.c.l.b16 %v1222
        %v1400 = vunpack.c.h.b16 %v1222
        %v1401 = vunpack.c.l.b16 %v1223
        %v1402 = vunpack.c.h.b16 %v1223
        %v1403 = vunpack.c.l.b16 %v1224
        %v1404 = vunpack.c.h.b16 %v1224
        %v1405 = vunpack.c.l.b16 %v1225
        %v1406 = vunpack.c.h.b16 %v1225
        %v1407 = vunpack.c.l.b16 %v1226
        %v1408 = vunpack.c.h.b16 %v1226
        %v1409 = vunpack.c.l.b16 %v1227
        %v1410 = vunpack.c.h.b16 %v1227
        %v1411 = vunpack.c.l.b16 %v1228
        %v1412 = vunpack.c.h.b16 %v1228
        %v1413 = vunpack.c.l.b16 %v1229
        %v1414 = vunpack.c.h.b16 %v1229
        %v1415 = vunpack.c.l.b16 %v1230
        %v1416 = vunpack.c.h.b16 %v1230
        %v1417 = vunpack.c.l.b16 %v1231
        %v1418 = vunpack.c.h.b16 %v1231
        %v1419 = vunpack.c.l.b16 %v1232
        %v1420 = vunpack.c.h.b16 %v1232
        %v1421 = vunpack.c.l.b16 %v1233
        %v1422 = vunpack.c.h.b16 %v1233
        %v1423 = vunpack.c.l.b16 %v1234
        %v1424 = vunpack.c.h.b16 %v1234
        %v1425 = vunpack.c.l.b16 %v1235
        %v1426 = vunpack.c.h.b16 %v1235
        %v1427 = vunpack.c.l.b16 %v1236
        %v1428 = vunpack.c.h.b16 %v1236
        %v1429 = vpack.c.b16 %v1309, %v1301
        %v1430 = vpack.c.b16 %v1310, %v1302
        %v1431 = vpack.c.b16 %v1311, %v1303
        %v1432 = vpack.c.b16 %v1312, %v1304
        %v1433 = vpack.c.b16 %v1313, %v1305
        %v1434 = vpack.c.b16 %v1314, %v1306
        %v1435 = vpack.c.b16 %v1315, %v1307
        %v1436 = vpack.c.b16 %v1316, %v1308
        %v1437 = vpack.c.b16 %v1325, %v1317
        %v1438 = vpack.c.b16 %v1326, %v1318
        %v1439 = vpack.c.b16 %v1327, %v1319
        %v1440 = vpack.c.b16 %v1328, %v1320
        %v1441 = vpack.c.b16 %v1329, %v1321
        %v1442 = vpack.c.b16 %v1330, %v1322
        %v1443 = vpack.c.b16 %v1331, %v1323
        %v1444 = vpack.c.b16 %v1332, %v1324
        %v1445 = vpack.c.b16 %v1341, %v1333
        %v1446 = vpack.c.b16 %v1342, %v1334
        %v1447 = vpack.c.b16 %v1343, %v1335
        %v1448 = vpack.c.b16 %v1344, %v1336
        %v1449 = vpack.c.b16 %v1345, %v1337
        %v1450 = vpack.c.b16 %v1346, %v1338
        %v1451 = vpack.c.b16 %v1347, %v1339
        %v1452 = vpack.c.b16 %v1348, %v1340
        %v1453 = vpack.c.b16 %v1357, %v1349
        %v1454 = vpack.c.b16 %v1358, %v1350
        %v1455 = vpack.c.b16 %v1359, %v1351
        %v1456 = vpack.c.b16 %v1360, %v1352
        %v1457 = vpack.c.b16 %v1361, %v1353
        %v1458 = vpack.c.b16 %v1362, %v1354
        %v1459 = vpack.c.b16 %v1363, %v1355
        %v1460 = vpack.c.b16 %v1364, %v1356
        %v1461 = vpack.c.b16 %v1373, %v1365
        %v1462 = vpack.c.b16 %v1374, %v1366
        %v1463 = vpack.c.b16 %v1375, %v1367
        %v1464 = vpack.c.b16 %v1376, %v1368
        %v1465 = vpack.c.b16 %v1377, %v1369
        %v1466 = vpack.c.b16 %v1378, %v1370
        %v1467 = vpack.c.b16 %v1379, %v1371
        %v1468 = vpack.c.b16 %v1380, %v1372
        %v1469 = vpack.c.b16 %v1389, %v1381
        %v1470 = vpack.c.b16 %v1390, %v1382
        %v1471 = vpack.c.b16 %v1391, %v1383
        %v1472 = vpack.c.b16 %v1392, %v1384
        %v1473 = vpack.c.b16 %v1393, %v1385
        %v1474 = vpack.c.b16 %v1394, %v1386
        %v1475 = vpack.c.b16 %v1395, %v1387
        %v1476 = vpack.c.b16 %v1396, %v1388
        %v1477 = vpack.c.b16 %v1405, %v1397
        %v1478 = vpack.c.b16 %v1406, %v1398
        %v1479 = vpack.c.b16 %v1407, %v1399
        %v1480 = vpack.c.b16 %v1408, %v1400
        %v1481 = vpack.c.b16 %v1409, %v1401
        %v1482 = vpack.c.b16 %v1410, %v1402
        %v1483 = vpack.c.b16 %v1411, %v1403
        %v1484 = vpack.c.b16 %v1412, %v1404
        %v1485 = vpack.c.b16 %v1421, %v1413
        %v1486 = vpack.c.b16 %v1422, %v1414
        %v1487 = vpack.c.b16 %v1423, %v1415
        %v1488 = vpack.c.b16 %v1424, %v1416
        %v1489 = vpack.c.b16 %v1425, %v1417
        %v1490 = vpack.c.b16 %v1426, %v1418
        %v1491 = vpack.c.b16 %v1427, %v1419
        %v1492 = vpack.c.b16 %v1428, %v1420
        %1557 = vmatprep.subr.bf16.mxu0 %v1430
        %1558 = vmatpush1.bf16.msra.mxu0 %v1429
        %1559 = vmatprep.subr.bf16.mxu0 %v1438
        %1560 = vmatpush1.bf16.msra.mxu0 %v1437
        %1561 = vmatprep.subr.bf16.mxu0 %v1446
        %1562 = vmatpush1.bf16.msra.mxu0 %v1445
        %1563 = vmatprep.subr.bf16.mxu0 %v1454
        %1564 = vmatpush1.bf16.msra.mxu0 %v1453
        %1565 = vmatprep.subr.bf16.mxu0 %v1462
        %1566 = vmatpush1.bf16.msra.mxu0 %v1461
        %1567 = vmatprep.subr.bf16.mxu0 %v1470
        %1568 = vmatpush1.bf16.msra.mxu0 %v1469
        %1569 = vmatprep.subr.bf16.mxu0 %v1478
        %1570 = vmatpush1.bf16.msra.mxu0 %v1477
        %1571 = vmatprep.subr.bf16.mxu0 %v1486
        %1572 = vmatpush1.bf16.msra.mxu0 %v1485
        %1573 = vmatprep.subr.bf16.mxu0 0
        %1574 = vmatpush1.bf16.msra.mxu0 0
        %1575 = vmatprep.subr.bf16.mxu0 0
        %1576 = vmatpush1.bf16.msra.mxu0 0
        %1577 = vmatprep.subr.bf16.mxu0 0
        %1578 = vmatpush1.bf16.msra.mxu0 0
        %1579 = vmatprep.subr.bf16.mxu0 0
        %1580 = vmatpush1.bf16.msra.mxu0 0
        %1581 = vmatprep.subr.bf16.mxu0 0
        %1582 = vmatpush1.bf16.msra.mxu0 0
        %1583 = vmatprep.subr.bf16.mxu0 0
        %1584 = vmatpush1.bf16.msra.mxu0 0
        %1585 = vmatprep.subr.bf16.mxu0 0
        %1586 = vmatpush1.bf16.msra.mxu0 0
        %1587 = vmatprep.subr.bf16.mxu0 0
        %1588 = vmatpush1.bf16.msra.mxu0 0
        %1589 = vmatprep.mubr.bf16.mxu0 0
        %1590 = vmatmul.mubr.bf16.gmra.mrb[0].mxu0 %v1160
        %v1591 = vpop.f32.mrb[0].mxu0
        %v1592 = vadd.f32 0.0, %v1591
        %v1593 = vpop.f32.mrb[0].mxu0
        %v1594 = vadd.f32 0.0, %v1593
        %v1595 = vpop.f32.mrb[0].mxu0
        %v1596 = vadd.f32 0.0, %v1595
        %v1597 = vpop.f32.mrb[0].mxu0
        %v1598 = vadd.f32 0.0, %v1597
        %1599 = vmatprep.mubr.bf16.mxu0 0
        %1600 = vmatmul.mubr.bf16.gmra.mrb[0].mxu0 %v1161
        %v1601 = vpop.f32.mrb[0].mxu0
        %v1602 = vadd.f32 0.0, %v1601
        %v1603 = vpop.f32.mrb[0].mxu0
        %v1604 = vadd.f32 0.0, %v1603
        %v1605 = vpop.f32.mrb[0].mxu0
        %v1606 = vadd.f32 0.0, %v1605
        %v1607 = vpop.f32.mrb[0].mxu0
        %v1608 = vadd.f32 0.0, %v1607
        %1609 = vmatprep.mubr.bf16.mxu0 0
        %1610 = vmatmul.mubr.bf16.gmra.mrb[0].mxu0 %v1162
        %v1611 = vpop.f32.mrb[0].mxu0
        %v1612 = vadd.f32 0.0, %v1611
        %v1613 = vpop.f32.mrb[0].mxu0
        %v1614 = vadd.f32 0.0, %v1613
        %v1615 = vpop.f32.mrb[0].mxu0
        %v1616 = vadd.f32 0.0, %v1615
        %v1617 = vpop.f32.mrb[0].mxu0
        %v1618 = vadd.f32 0.0, %v1617
        %1619 = vmatprep.mubr.bf16.mxu0 0
        %1620 = vmatmul.mubr.bf16.gmra.mrb[0].mxu0 %v1163
        %v1621 = vpop.f32.mrb[0].mxu0
        %v1622 = vadd.f32 0.0, %v1621
        %v1623 = vpop.f32.mrb[0].mxu0
        %v1624 = vadd.f32 0.0, %v1623
        %v1625 = vpop.f32.mrb[0].mxu0
        %v1626 = vadd.f32 0.0, %v1625
        %v1627 = vpop.f32.mrb[0].mxu0
        %v1628 = vadd.f32 0.0, %v1627
        %1629 = vmatprep.mubr.bf16.mxu0 0
        %1630 = vmatmul.mubr.bf16.gmra.mrb[0].mxu0 %v1164
        %v1631 = vpop.f32.mrb[0].mxu0
        %v1632 = vadd.f32 0.0, %v1631
        %v1633 = vpop.f32.mrb[0].mxu0
        %v1634 = vadd.f32 0.0, %v1633
        %v1635 = vpop.f32.mrb[0].mxu0
        %v1636 = vadd.f32 0.0, %v1635
        %v1637 = vpop.f32.mrb[0].mxu0
        %v1638 = vadd.f32 0.0, %v1637
        %1639 = vmatprep.mubr.bf16.mxu0 0
        %1640 = vmatmul.mubr.bf16.gmra.mrb[0].mxu0 %v1165
        %v1641 = vpop.f32.mrb[0].mxu0
        %v1642 = vadd.f32 0.0, %v1641
        %v1643 = vpop.f32.mrb[0].mxu0
        %v1644 = vadd.f32 0.0, %v1643
        %v1645 = vpop.f32.mrb[0].mxu0
        %v1646 = vadd.f32 0.0, %v1645
        %v1647 = vpop.f32.mrb[0].mxu0
        %v1648 = vadd.f32 0.0, %v1647
        %1649 = vmatprep.mubr.bf16.mxu0 0
        %1650 = vmatmul.mubr.bf16.gmra.mrb[0].mxu0 %v1166
        %v1651 = vpop.f32.mrb[0].mxu0
        %v1652 = vadd.f32 0.0, %v1651
        %v1653 = vpop.f32.mrb[0].mxu0
        %v1654 = vadd.f32 0.0, %v1653
        %v1655 = vpop.f32.mrb[0].mxu0
        %v1656 = vadd.f32 0.0, %v1655
        %v1657 = vpop.f32.mrb[0].mxu0
        %v1658 = vadd.f32 0.0, %v1657
        %1659 = vmatprep.mubr.bf16.mxu0 0
        %1660 = vmatmul.mubr.bf16.gmra.mrb[0].mxu0 %v1167
        %v1661 = vpop.f32.mrb[0].mxu0
        %v1662 = vadd.f32 0.0, %v1661
        %v1663 = vpop.f32.mrb[0].mxu0
        %v1664 = vadd.f32 0.0, %v1663
        %v1665 = vpop.f32.mrb[0].mxu0
        %v1666 = vadd.f32 0.0, %v1665
        %v1667 = vpop.f32.mrb[0].mxu0
        %v1668 = vadd.f32 0.0, %v1667
        %1669 = vmatprep.mubr.bf16.mxu0 0
        %1670 = vmatmul.mubr.bf16.gmra.mrb[0].mxu0 %v1168
        %v1671 = vpop.f32.mrb[0].mxu0
        %v1672 = vadd.f32 0.0, %v1671
        %v1673 = vpop.f32.mrb[0].mxu0
        %v1674 = vadd.f32 0.0, %v1673
        %v1675 = vpop.f32.mrb[0].mxu0
        %v1676 = vadd.f32 0.0, %v1675
        %v1677 = vpop.f32.mrb[0].mxu0
        %v1678 = vadd.f32 0.0, %v1677
        %1679 = vmatprep.mubr.bf16.mxu0 0
        %1680 = vmatmul.mubr.bf16.gmra.mrb[0].mxu0 %v1169
        %v1681 = vpop.f32.mrb[0].mxu0
        %v1682 = vadd.f32 0.0, %v1681
        %v1683 = vpop.f32.mrb[0].mxu0
        %v1684 = vadd.f32 0.0, %v1683
        %v1685 = vpop.f32.mrb[0].mxu0
        %v1686 = vadd.f32 0.0, %v1685
        %v1687 = vpop.f32.mrb[0].mxu0
        %v1688 = vadd.f32 0.0, %v1687
        %1689 = vmatprep.mubr.bf16.mxu0 0
        %1690 = vmatmul.mubr.bf16.gmra.mrb[0].mxu0 %v1170
        %v1691 = vpop.f32.mrb[0].mxu0
        %v1692 = vadd.f32 0.0, %v1691
        %v1693 = vpop.f32.mrb[0].mxu0
        %v1694 = vadd.f32 0.0, %v1693
        %v1695 = vpop.f32.mrb[0].mxu0
        %v1696 = vadd.f32 0.0, %v1695
        %v1697 = vpop.f32.mrb[0].mxu0
        %v1698 = vadd.f32 0.0, %v1697
        %1699 = vmatprep.mubr.bf16.mxu0 0
        %1700 = vmatmul.mubr.bf16.gmra.mrb[0].mxu0 %v1171
        %v1701 = vpop.f32.mrb[0].mxu0
        %v1702 = vadd.f32 0.0, %v1701
        %v1703 = vpop.f32.mrb[0].mxu0
        %v1704 = vadd.f32 0.0, %v1703
        %v1705 = vpop.f32.mrb[0].mxu0
        %v1706 = vadd.f32 0.0, %v1705
        %v1707 = vpop.f32.mrb[0].mxu0
        %v1708 = vadd.f32 0.0, %v1707
        %1709 = vmatprep.mubr.bf16.mxu0 0
        %1710 = vmatmul.mubr.bf16.gmra.mrb[0].mxu0 %v1172
        %v1711 = vpop.f32.mrb[0].mxu0
        %v1712 = vadd.f32 0.0, %v1711
        %v1713 = vpop.f32.mrb[0].mxu0
        %v1714 = vadd.f32 0.0, %v1713
        %v1715 = vpop.f32.mrb[0].mxu0
        %v1716 = vpop.f32.mrb[0].mxu0
        %1717 = vdwg.mxu0
        %1718 = vmatprep.subr.bf16.mxu0 %v1432
        %1719 = vmatpush1.bf16.msra.mxu0 %v1431
        %1720 = vmatprep.subr.bf16.mxu0 %v1440
        %1721 = vmatpush1.bf16.msra.mxu0 %v1439
        %1722 = vmatprep.subr.bf16.mxu0 %v1448
        %1723 = vmatpush1.bf16.msra.mxu0 %v1447
        %1724 = vmatprep.subr.bf16.mxu0 %v1456
        %1725 = vmatpush1.bf16.msra.mxu0 %v1455
        %1726 = vmatprep.subr.bf16.mxu0 %v1464
        %1727 = vmatpush1.bf16.msra.mxu0 %v1463
        %1728 = vmatprep.subr.bf16.mxu0 %v1472
        %1729 = vmatpush1.bf16.msra.mxu0 %v1471
        %1730 = vmatprep.subr.bf16.mxu0 %v1480
        %1731 = vmatpush1.bf16.msra.mxu0 %v1479
        %1732 = vmatprep.subr.bf16.mxu0 %v1488
        %1733 = vmatpush1.bf16.msra.mxu0 %v1487
        %1734 = vmatprep.subr.bf16.mxu0 0
        %1735 = vmatpush1.bf16.msra.mxu0 0
        %1736 = vmatprep.subr.bf16.mxu0 0
        %1737 = vmatpush1.bf16.msra.mxu0 0
        %1738 = vmatprep.subr.bf16.mxu0 0
        %1739 = vmatpush1.bf16.msra.mxu0 0
        %1740 = vmatprep.subr.bf16.mxu0 0
        %1741 = vmatpush1.bf16.msra.mxu0 0
        %1742 = vmatprep.subr.bf16.mxu0 0
        %1743 = vmatpush1.bf16.msra.mxu0 0
        %1744 = vmatprep.subr.bf16.mxu0 0
        %1745 = vmatpush1.bf16.msra.mxu0 0
        %1746 = vmatprep.subr.bf16.mxu0 0
        %1747 = vmatpush1.bf16.msra.mxu0 0
        %1748 = vmatprep.subr.bf16.mxu0 0
        %1749 = vmatpush1.bf16.msra.mxu0 0
        %1750 = vmatprep.mubr.bf16.mxu0 0
        %1751 = vmatmul.mubr.bf16.gmra.mrb[0].mxu0 %v1160
        %v1752 = vpop.f32.mrb[0].mxu0
        %v1753 = vadd.f32 0.0, %v1752
        %v1754 = vpop.f32.mrb[0].mxu0
        %v1755 = vadd.f32 0.0, %v1754
        %v1756 = vpop.f32.mrb[0].mxu0
        %v1757 = vadd.f32 0.0, %v1756
        %v1758 = vpop.f32.mrb[0].mxu0
        %v1759 = vadd.f32 0.0, %v1758
        %1760 = vmatprep.mubr.bf16.mxu0 0
        %1761 = vmatmul.mubr.bf16.gmra.mrb[0].mxu0 %v1161
        %v1762 = vpop.f32.mrb[0].mxu0
        %v1763 = vadd.f32 0.0, %v1762
        %v1764 = vpop.f32.mrb[0].mxu0
        %v1765 = vadd.f32 0.0, %v1764
        %v1766 = vpop.f32.mrb[0].mxu0
        %v1767 = vadd.f32 0.0, %v1766
        %v1768 = vpop.f32.mrb[0].mxu0
        %v1769 = vadd.f32 0.0, %v1768
        %1770 = vmatprep.mubr.bf16.mxu0 0
        %1771 = vmatmul.mubr.bf16.gmra.mrb[0].mxu0 %v1162
        %v1772 = vpop.f32.mrb[0].mxu0
        %v1773 = vadd.f32 0.0, %v1772
        %v1774 = vpop.f32.mrb[0].mxu0
        %v1775 = vadd.f32 0.0, %v1774
        %v1776 = vpop.f32.mrb[0].mxu0
        %v1777 = vadd.f32 0.0, %v1776
        %v1778 = vpop.f32.mrb[0].mxu0
        %v1779 = vadd.f32 0.0, %v1778
        %1780 = vmatprep.mubr.bf16.mxu0 0
        %1781 = vmatmul.mubr.bf16.gmra.mrb[0].mxu0 %v1163
        %v1782 = vpop.f32.mrb[0].mxu0
        %v1783 = vadd.f32 0.0, %v1782
        %v1784 = vpop.f32.mrb[0].mxu0
        %v1785 = vadd.f32 0.0, %v1784
        %v1786 = vpop.f32.mrb[0].mxu0
        %v1787 = vadd.f32 0.0, %v1786
        %v1788 = vpop.f32.mrb[0].mxu0
        %v1789 = vadd.f32 0.0, %v1788
        %1790 = vmatprep.mubr.bf16.mxu0 0
        %1791 = vmatmul.mubr.bf16.gmra.mrb[0].mxu0 %v1164
        %v1792 = vpop.f32.mrb[0].mxu0
        %v1793 = vadd.f32 0.0, %v1792
        %v1794 = vpop.f32.mrb[0].mxu0
        %v1795 = vadd.f32 0.0, %v1794
        %v1796 = vpop.f32.mrb[0].mxu0
        %v1797 = vadd.f32 0.0, %v1796
        %v1798 = vpop.f32.mrb[0].mxu0
        %v1799 = vadd.f32 0.0, %v1798
        %1800 = vmatprep.mubr.bf16.mxu0 0
        %1801 = vmatmul.mubr.bf16.gmra.mrb[0].mxu0 %v1165
        %v1802 = vpop.f32.mrb[0].mxu0
        %v1803 = vadd.f32 0.0, %v1802
        %v1804 = vpop.f32.mrb[0].mxu0
        %v1805 = vadd.f32 0.0, %v1804
        %v1806 = vpop.f32.mrb[0].mxu0
        %v1807 = vadd.f32 0.0, %v1806
        %v1808 = vpop.f32.mrb[0].mxu0
        %v1809 = vadd.f32 0.0, %v1808
        %1810 = vmatprep.mubr.bf16.mxu0 0
        %1811 = vmatmul.mubr.bf16.gmra.mrb[0].mxu0 %v1166
        %v1812 = vpop.f32.mrb[0].mxu0
        %v1813 = vadd.f32 0.0, %v1812
        %v1814 = vpop.f32.mrb[0].mxu0
        %v1815 = vadd.f32 0.0, %v1814
        %v1816 = vpop.f32.mrb[0].mxu0
        %v1817 = vadd.f32 0.0, %v1816
        %v1818 = vpop.f32.mrb[0].mxu0
        %v1819 = vadd.f32 0.0, %v1818
        %1820 = vmatprep.mubr.bf16.mxu0 0
        %1821 = vmatmul.mubr.bf16.gmra.mrb[0].mxu0 %v1167
        %v1822 = vpop.f32.mrb[0].mxu0
        %v1823 = vadd.f32 0.0, %v1822
        %v1824 = vpop.f32.mrb[0].mxu0
        %v1825 = vadd.f32 0.0, %v1824
        %v1826 = vpop.f32.mrb[0].mxu0
        %v1827 = vadd.f32 0.0, %v1826
        %v1828 = vpop.f32.mrb[0].mxu0
        %v1829 = vadd.f32 0.0, %v1828
        %1830 = vmatprep.mubr.bf16.mxu0 0
        %1831 = vmatmul.mubr.bf16.gmra.mrb[0].mxu0 %v1168
        %v1832 = vpop.f32.mrb[0].mxu0
        %v1833 = vadd.f32 0.0, %v1832
        %v1834 = vpop.f32.mrb[0].mxu0
        %v1835 = vadd.f32 0.0, %v1834
        %v1836 = vpop.f32.mrb[0].mxu0
        %v1837 = vadd.f32 0.0, %v1836
        %v1838 = vpop.f32.mrb[0].mxu0
        %v1839 = vadd.f32 0.0, %v1838
        %1840 = vmatprep.mubr.bf16.mxu0 0
        %1841 = vmatmul.mubr.bf16.gmra.mrb[0].mxu0 %v1169
        %v1842 = vpop.f32.mrb[0].mxu0
        %v1843 = vadd.f32 0.0, %v1842
        %v1844 = vpop.f32.mrb[0].mxu0
        %v1845 = vadd.f32 0.0, %v1844
        %v1846 = vpop.f32.mrb[0].mxu0
        %v1847 = vadd.f32 0.0, %v1846
        %v1848 = vpop.f32.mrb[0].mxu0
        %v1849 = vadd.f32 0.0, %v1848
        %1850 = vmatprep.mubr.bf16.mxu0 0
        %1851 = vmatmul.mubr.bf16.gmra.mrb[0].mxu0 %v1170
        %v1852 = vpop.f32.mrb[0].mxu0
        %v1853 = vadd.f32 0.0, %v1852
        %v1854 = vpop.f32.mrb[0].mxu0
        %v1855 = vadd.f32 0.0, %v1854
        %v1856 = vpop.f32.mrb[0].mxu0
        %v1857 = vadd.f32 0.0, %v1856
        %v1858 = vpop.f32.mrb[0].mxu0
        %v1859 = vadd.f32 0.0, %v1858
        %1860 = vmatprep.mubr.bf16.mxu0 0
        %1861 = vmatmul.mubr.bf16.gmra.mrb[0].mxu0 %v1171
        %v1862 = vpop.f32.mrb[0].mxu0
        %v1863 = vadd.f32 0.0, %v1862
        %v1864 = vpop.f32.mrb[0].mxu0
        %v1865 = vadd.f32 0.0, %v1864
        %v1866 = vpop.f32.mrb[0].mxu0
        %v1867 = vadd.f32 0.0, %v1866
        %v1868 = vpop.f32.mrb[0].mxu0
        %v1869 = vadd.f32 0.0, %v1868
        %1870 = vmatprep.mubr.bf16.mxu0 0
        %1871 = vmatmul.mubr.bf16.gmra.mrb[0].mxu0 %v1172
        %v1872 = vpop.f32.mrb[0].mxu0
        %v1873 = vadd.f32 0.0, %v1872
        %v1874 = vpop.f32.mrb[0].mxu0
        %v1875 = vadd.f32 0.0, %v1874
        %v1876 = vpop.f32.mrb[0].mxu0
        %v1877 = vpop.f32.mrb[0].mxu0
        %1878 = vdwg.mxu0
        %1879 = vmatprep.subr.bf16.mxu0 %v1434
        %1880 = vmatpush1.bf16.msra.mxu0 %v1433
        %1881 = vmatprep.subr.bf16.mxu0 %v1442
        %1882 = vmatpush1.bf16.msra.mxu0 %v1441
        %1883 = vmatprep.subr.bf16.mxu0 %v1450
        %1884 = vmatpush1.bf16.msra.mxu0 %v1449
        %1885 = vmatprep.subr.bf16.mxu0 %v1458
        %1886 = vmatpush1.bf16.msra.mxu0 %v1457
        %1887 = vmatprep.subr.bf16.mxu0 %v1466
        %1888 = vmatpush1.bf16.msra.mxu0 %v1465
        %1889 = vmatprep.subr.bf16.mxu0 %v1474
        %1890 = vmatpush1.bf16.msra.mxu0 %v1473
        %1891 = vmatprep.subr.bf16.mxu0 %v1482
        %1892 = vmatpush1.bf16.msra.mxu0 %v1481
        %1893 = vmatprep.subr.bf16.mxu0 %v1490
        %1894 = vmatpush1.bf16.msra.mxu0 %v1489
        %1895 = vmatprep.subr.bf16.mxu0 0
        %1896 = vmatpush1.bf16.msra.mxu0 0
        %1897 = vmatprep.subr.bf16.mxu0 0
        %1898 = vmatpush1.bf16.msra.mxu0 0
        %1899 = vmatprep.subr.bf16.mxu0 0
        %1900 = vmatpush1.bf16.msra.mxu0 0
        %1901 = vmatprep.subr.bf16.mxu0 0
        %1902 = vmatpush1.bf16.msra.mxu0 0
        %1903 = vmatprep.subr.bf16.mxu0 0
        %1904 = vmatpush1.bf16.msra.mxu0 0
        %1905 = vmatprep.subr.bf16.mxu0 0
        %1906 = vmatpush1.bf16.msra.mxu0 0
        %1907 = vmatprep.subr.bf16.mxu0 0
        %1908 = vmatpush1.bf16.msra.mxu0 0
        %1909 = vmatprep.subr.bf16.mxu0 0
        %1910 = vmatpush1.bf16.msra.mxu0 0
        %1911 = vmatprep.mubr.bf16.mxu0 0
        %1912 = vmatmul.mubr.bf16.gmra.mrb[0].mxu0 %v1160
        %v1913 = vpop.f32.mrb[0].mxu0
        %v1914 = vadd.f32 0.0, %v1913
        %v1915 = vpop.f32.mrb[0].mxu0
        %v1916 = vadd.f32 0.0, %v1915
        %v1917 = vpop.f32.mrb[0].mxu0
        %v1918 = vadd.f32 0.0, %v1917
        %v1919 = vpop.f32.mrb[0].mxu0
        %v1920 = vadd.f32 0.0, %v1919
        %1921 = vmatprep.mubr.bf16.mxu0 0
        %1922 = vmatmul.mubr.bf16.gmra.mrb[0].mxu0 %v1161
        %v1923 = vpop.f32.mrb[0].mxu0
        %v1924 = vadd.f32 0.0, %v1923
        %v1925 = vpop.f32.mrb[0].mxu0
        %v1926 = vadd.f32 0.0, %v1925
        %v1927 = vpop.f32.mrb[0].mxu0
        %v1928 = vadd.f32 0.0, %v1927
        %v1929 = vpop.f32.mrb[0].mxu0
        %v1930 = vadd.f32 0.0, %v1929
        %1931 = vmatprep.mubr.bf16.mxu0 0
        %1932 = vmatmul.mubr.bf16.gmra.mrb[0].mxu0 %v1162
        %v1933 = vpop.f32.mrb[0].mxu0
        %v1934 = vadd.f32 0.0, %v1933
        %v1935 = vpop.f32.mrb[0].mxu0
        %v1936 = vadd.f32 0.0, %v1935
        %v1937 = vpop.f32.mrb[0].mxu0
        %v1938 = vadd.f32 0.0, %v1937
        %v1939 = vpop.f32.mrb[0].mxu0
        %v1940 = vadd.f32 0.0, %v1939
        %1941 = vmatprep.mubr.bf16.mxu0 0
        %1942 = vmatmul.mubr.bf16.gmra.mrb[0].mxu0 %v1163
        %v1943 = vpop.f32.mrb[0].mxu0
        %v1944 = vadd.f32 0.0, %v1943
        %v1945 = vpop.f32.mrb[0].mxu0
        %v1946 = vadd.f32 0.0, %v1945
        %v1947 = vpop.f32.mrb[0].mxu0
        %v1948 = vadd.f32 0.0, %v1947
        %v1949 = vpop.f32.mrb[0].mxu0
        %v1950 = vadd.f32 0.0, %v1949
        %1951 = vmatprep.mubr.bf16.mxu0 0
        %1952 = vmatmul.mubr.bf16.gmra.mrb[0].mxu0 %v1164
        %v1953 = vpop.f32.mrb[0].mxu0
        %v1954 = vadd.f32 0.0, %v1953
        %v1955 = vpop.f32.mrb[0].mxu0
        %v1956 = vadd.f32 0.0, %v1955
        %v1957 = vpop.f32.mrb[0].mxu0
        %v1958 = vadd.f32 0.0, %v1957
        %v1959 = vpop.f32.mrb[0].mxu0
        %v1960 = vadd.f32 0.0, %v1959
        %1961 = vmatprep.mubr.bf16.mxu0 0
        %1962 = vmatmul.mubr.bf16.gmra.mrb[0].mxu0 %v1165
        %v1963 = vpop.f32.mrb[0].mxu0
        %v1964 = vadd.f32 0.0, %v1963
        %v1965 = vpop.f32.mrb[0].mxu0
        %v1966 = vadd.f32 0.0, %v1965
        %v1967 = vpop.f32.mrb[0].mxu0
        %v1968 = vadd.f32 0.0, %v1967
        %v1969 = vpop.f32.mrb[0].mxu0
        %v1970 = vadd.f32 0.0, %v1969
        %1971 = vmatprep.mubr.bf16.mxu0 0
        %1972 = vmatmul.mubr.bf16.gmra.mrb[0].mxu0 %v1166
        %v1973 = vpop.f32.mrb[0].mxu0
        %v1974 = vadd.f32 0.0, %v1973
        %v1975 = vpop.f32.mrb[0].mxu0
        %v1976 = vadd.f32 0.0, %v1975
        %v1977 = vpop.f32.mrb[0].mxu0
        %v1978 = vadd.f32 0.0, %v1977
        %v1979 = vpop.f32.mrb[0].mxu0
        %v1980 = vadd.f32 0.0, %v1979
        %1981 = vmatprep.mubr.bf16.mxu0 0
        %1982 = vmatmul.mubr.bf16.gmra.mrb[0].mxu0 %v1167
        %v1983 = vpop.f32.mrb[0].mxu0
        %v1984 = vadd.f32 0.0, %v1983
        %v1985 = vpop.f32.mrb[0].mxu0
        %v1986 = vadd.f32 0.0, %v1985
        %v1987 = vpop.f32.mrb[0].mxu0
        %v1988 = vadd.f32 0.0, %v1987
        %v1989 = vpop.f32.mrb[0].mxu0
        %v1990 = vadd.f32 0.0, %v1989
        %1991 = vmatprep.mubr.bf16.mxu0 0
        %1992 = vmatmul.mubr.bf16.gmra.mrb[0].mxu0 %v1168
        %v1993 = vpop.f32.mrb[0].mxu0
        %v1994 = vadd.f32 0.0, %v1993
        %v1995 = vpop.f32.mrb[0].mxu0
        %v1996 = vadd.f32 0.0, %v1995
        %v1997 = vpop.f32.mrb[0].mxu0
        %v1998 = vadd.f32 0.0, %v1997
        %v1999 = vpop.f32.mrb[0].mxu0
        %v2000 = vadd.f32 0.0, %v1999
        %2001 = vmatprep.mubr.bf16.mxu0 0
        %2002 = vmatmul.mubr.bf16.gmra.mrb[0].mxu0 %v1169
        %v2003 = vpop.f32.mrb[0].mxu0
        %v2004 = vadd.f32 0.0, %v2003
        %v2005 = vpop.f32.mrb[0].mxu0
        %v2006 = vadd.f32 0.0, %v2005
        %v2007 = vpop.f32.mrb[0].mxu0
        %v2008 = vadd.f32 0.0, %v2007
        %v2009 = vpop.f32.mrb[0].mxu0
        %v2010 = vadd.f32 0.0, %v2009
        %2011 = vmatprep.mubr.bf16.mxu0 0
        %2012 = vmatmul.mubr.bf16.gmra.mrb[0].mxu0 %v1170
        %v2013 = vpop.f32.mrb[0].mxu0
        %v2014 = vadd.f32 0.0, %v2013
        %v2015 = vpop.f32.mrb[0].mxu0
        %v2016 = vadd.f32 0.0, %v2015
        %v2017 = vpop.f32.mrb[0].mxu0
        %v2018 = vadd.f32 0.0, %v2017
        %v2019 = vpop.f32.mrb[0].mxu0
        %v2020 = vadd.f32 0.0, %v2019
        %2021 = vmatprep.mubr.bf16.mxu0 0
        %2022 = vmatmul.mubr.bf16.gmra.mrb[0].mxu0 %v1171
        %v2023 = vpop.f32.mrb[0].mxu0
        %v2024 = vadd.f32 0.0, %v2023
        %v2025 = vpop.f32.mrb[0].mxu0
        %v2026 = vadd.f32 0.0, %v2025
        %v2027 = vpop.f32.mrb[0].mxu0
        %v2028 = vadd.f32 0.0, %v2027
        %v2029 = vpop.f32.mrb[0].mxu0
        %v2030 = vadd.f32 0.0, %v2029
        %2031 = vmatprep.mubr.bf16.mxu0 0
        %2032 = vmatmul.mubr.bf16.gmra.mrb[0].mxu0 %v1172
        %v2033 = vpop.f32.mrb[0].mxu0
        %v2034 = vadd.f32 0.0, %v2033
        %v2035 = vpop.f32.mrb[0].mxu0
        %v2036 = vadd.f32 0.0, %v2035
        %v2037 = vpop.f32.mrb[0].mxu0
        %v2038 = vpop.f32.mrb[0].mxu0
        %2039 = vdwg.mxu0
        %2040 = vmatprep.subr.bf16.mxu0 %v1436
        %2041 = vmatpush1.bf16.msra.mxu0 %v1435
        %2042 = vmatprep.subr.bf16.mxu0 %v1444
        %2043 = vmatpush1.bf16.msra.mxu0 %v1443
        %2044 = vmatprep.subr.bf16.mxu0 %v1452
        %2045 = vmatpush1.bf16.msra.mxu0 %v1451
        %2046 = vmatprep.subr.bf16.mxu0 %v1460
        %2047 = vmatpush1.bf16.msra.mxu0 %v1459
        %2048 = vmatprep.subr.bf16.mxu0 %v1468
        %2049 = vmatpush1.bf16.msra.mxu0 %v1467
        %2050 = vmatprep.subr.bf16.mxu0 %v1476
        %2051 = vmatpush1.bf16.msra.mxu0 %v1475
        %2052 = vmatprep.subr.bf16.mxu0 %v1484
        %2053 = vmatpush1.bf16.msra.mxu0 %v1483
        %2054 = vmatprep.subr.bf16.mxu0 %v1492
        %2055 = vmatpush1.bf16.msra.mxu0 %v1491
        %2056 = vmatprep.subr.bf16.mxu0 0
        %2057 = vmatpush1.bf16.msra.mxu0 0
        %2058 = vmatprep.subr.bf16.mxu0 0
        %2059 = vmatpush1.bf16.msra.mxu0 0
        %2060 = vmatprep.subr.bf16.mxu0 0
        %2061 = vmatpush1.bf16.msra.mxu0 0
        %2062 = vmatprep.subr.bf16.mxu0 0
        %2063 = vmatpush1.bf16.msra.mxu0 0
        %2064 = vmatprep.subr.bf16.mxu0 0
        %2065 = vmatpush1.bf16.msra.mxu0 0
        %2066 = vmatprep.subr.bf16.mxu0 0
        %2067 = vmatpush1.bf16.msra.mxu0 0
        %2068 = vmatprep.subr.bf16.mxu0 0
        %2069 = vmatpush1.bf16.msra.mxu0 0
        %2070 = vmatprep.subr.bf16.mxu0 0
        %2071 = vmatpush1.bf16.msra.mxu0 0
        %2072 = vmatprep.mubr.bf16.mxu0 0
        %2073 = vmatmul.mubr.bf16.gmra.mrb[0].mxu0 %v1160
        %v2074 = vpop.f32.mrb[0].mxu0
        %v2075 = vadd.f32 0.0, %v2074
        %v2076 = vpop.f32.mrb[0].mxu0
        %v2077 = vadd.f32 0.0, %v2076
        %v2078 = vpop.f32.mrb[0].mxu0
        %v2079 = vadd.f32 0.0, %v2078
        %v2080 = vpop.f32.mrb[0].mxu0
        %v2081 = vadd.f32 0.0, %v2080
        %2082 = vmatprep.mubr.bf16.mxu0 0
        %2083 = vmatmul.mubr.bf16.gmra.mrb[0].mxu0 %v1161
        %v2084 = vpop.f32.mrb[0].mxu0
        %v2085 = vadd.f32 0.0, %v2084
        %v2086 = vpop.f32.mrb[0].mxu0
        %v2087 = vadd.f32 0.0, %v2086
        %v2088 = vpop.f32.mrb[0].mxu0
        %v2089 = vadd.f32 0.0, %v2088
        %v2090 = vpop.f32.mrb[0].mxu0
        %v2091 = vadd.f32 0.0, %v2090
        %2092 = vmatprep.mubr.bf16.mxu0 0
        %2093 = vmatmul.mubr.bf16.gmra.mrb[0].mxu0 %v1162
        %v2094 = vpop.f32.mrb[0].mxu0
        %v2095 = vadd.f32 0.0, %v2094
        %v2096 = vpop.f32.mrb[0].mxu0
        %v2097 = vadd.f32 0.0, %v2096
        %v2098 = vpop.f32.mrb[0].mxu0
        %v2099 = vadd.f32 0.0, %v2098
        %v2100 = vpop.f32.mrb[0].mxu0
        %v2101 = vadd.f32 0.0, %v2100
        %2102 = vmatprep.mubr.bf16.mxu0 0
        %2103 = vmatmul.mubr.bf16.gmra.mrb[0].mxu0 %v1163
        %v2104 = vpop.f32.mrb[0].mxu0
        %v2105 = vadd.f32 0.0, %v2104
        %v2106 = vpop.f32.mrb[0].mxu0
        %v2107 = vadd.f32 0.0, %v2106
        %v2108 = vpop.f32.mrb[0].mxu0
        %v2109 = vadd.f32 0.0, %v2108
        %v2110 = vpop.f32.mrb[0].mxu0
        %v2111 = vadd.f32 0.0, %v2110
        %2112 = vmatprep.mubr.bf16.mxu0 0
        %2113 = vmatmul.mubr.bf16.gmra.mrb[0].mxu0 %v1164
        %v2114 = vpop.f32.mrb[0].mxu0
        %v2115 = vadd.f32 0.0, %v2114
        %v2116 = vpop.f32.mrb[0].mxu0
        %v2117 = vadd.f32 0.0, %v2116
        %v2118 = vpop.f32.mrb[0].mxu0
        %v2119 = vadd.f32 0.0, %v2118
        %v2120 = vpop.f32.mrb[0].mxu0
        %v2121 = vadd.f32 0.0, %v2120
        %2122 = vmatprep.mubr.bf16.mxu0 0
        %2123 = vmatmul.mubr.bf16.gmra.mrb[0].mxu0 %v1165
        %v2124 = vpop.f32.mrb[0].mxu0
        %v2125 = vadd.f32 0.0, %v2124
        %v2126 = vpop.f32.mrb[0].mxu0
        %v2127 = vadd.f32 0.0, %v2126
        %v2128 = vpop.f32.mrb[0].mxu0
        %v2129 = vadd.f32 0.0, %v2128
        %v2130 = vpop.f32.mrb[0].mxu0
        %v2131 = vadd.f32 0.0, %v2130
        %2132 = vmatprep.mubr.bf16.mxu0 0
        %2133 = vmatmul.mubr.bf16.gmra.mrb[0].mxu0 %v1166
        %v2134 = vpop.f32.mrb[0].mxu0
        %v2135 = vadd.f32 0.0, %v2134
        %v2136 = vpop.f32.mrb[0].mxu0
        %v2137 = vadd.f32 0.0, %v2136
        %v2138 = vpop.f32.mrb[0].mxu0
        %v2139 = vadd.f32 0.0, %v2138
        %v2140 = vpop.f32.mrb[0].mxu0
        %v2141 = vadd.f32 0.0, %v2140
        %2142 = vmatprep.mubr.bf16.mxu0 0
        %2143 = vmatmul.mubr.bf16.gmra.mrb[0].mxu0 %v1167
        %v2144 = vpop.f32.mrb[0].mxu0
        %v2145 = vadd.f32 0.0, %v2144
        %v2146 = vpop.f32.mrb[0].mxu0
        %v2147 = vadd.f32 0.0, %v2146
        %v2148 = vpop.f32.mrb[0].mxu0
        %v2149 = vadd.f32 0.0, %v2148
        %v2150 = vpop.f32.mrb[0].mxu0
        %v2151 = vadd.f32 0.0, %v2150
        %2152 = vmatprep.mubr.bf16.mxu0 0
        %2153 = vmatmul.mubr.bf16.gmra.mrb[0].mxu0 %v1168
        %v2154 = vpop.f32.mrb[0].mxu0
        %v2155 = vadd.f32 0.0, %v2154
        %v2156 = vpop.f32.mrb[0].mxu0
        %v2157 = vadd.f32 0.0, %v2156
        %v2158 = vpop.f32.mrb[0].mxu0
        %v2159 = vadd.f32 0.0, %v2158
        %v2160 = vpop.f32.mrb[0].mxu0
        %v2161 = vadd.f32 0.0, %v2160
        %2162 = vmatprep.mubr.bf16.mxu0 0
        %2163 = vmatmul.mubr.bf16.gmra.mrb[0].mxu0 %v1169
        %v2164 = vpop.f32.mrb[0].mxu0
        %v2165 = vadd.f32 0.0, %v2164
        %v2166 = vpop.f32.mrb[0].mxu0
        %v2167 = vadd.f32 0.0, %v2166
        %v2168 = vpop.f32.mrb[0].mxu0
        %v2169 = vadd.f32 0.0, %v2168
        %v2170 = vpop.f32.mrb[0].mxu0
        %v2171 = vadd.f32 0.0, %v2170
        %2172 = vmatprep.mubr.bf16.mxu0 0
        %2173 = vmatmul.mubr.bf16.gmra.mrb[0].mxu0 %v1170
        %v2174 = vpop.f32.mrb[0].mxu0
        %v2175 = vadd.f32 0.0, %v2174
        %v2176 = vpop.f32.mrb[0].mxu0
        %v2177 = vadd.f32 0.0, %v2176
        %v2178 = vpop.f32.mrb[0].mxu0
        %v2179 = vadd.f32 0.0, %v2178
        %v2180 = vpop.f32.mrb[0].mxu0
        %v2181 = vadd.f32 0.0, %v2180
        %2182 = vmatprep.mubr.bf16.mxu0 0
        %2183 = vmatmul.mubr.bf16.gmra.mrb[0].mxu0 %v1171
        %v2184 = vpop.f32.mrb[0].mxu0
        %v2185 = vadd.f32 0.0, %v2184
        %v2186 = vpop.f32.mrb[0].mxu0
        %v2187 = vadd.f32 0.0, %v2186
        %v2188 = vpop.f32.mrb[0].mxu0
        %v2189 = vadd.f32 0.0, %v2188
        %v2190 = vpop.f32.mrb[0].mxu0
        %v2191 = vadd.f32 0.0, %v2190
        %2192 = vmatprep.mubr.bf16.mxu0 0
        %2193 = vmatmul.mubr.bf16.gmra.mrb[0].mxu0 %v1172
        %v2194 = vpop.f32.mrb[0].mxu0
        %v2195 = vadd.f32 0.0, %v2194
        %v2196 = vpop.f32.mrb[0].mxu0
        %v2197 = vadd.f32 0.0, %v2196
        %v2198 = vpop.f32.mrb[0].mxu0
        %v2199 = vpop.f32.mrb[0].mxu0
        %2200 = vdwg.mxu0
        %v2201 = vld [vmem:[#allocation2] sm:$0xff]
        %v2202 = vmax.f32 %v1592, %v1596
        %v2203 = vmax.f32 %v2202, %v1602
        %v2204 = vmax.f32 %v2203, %v1606
        %v2205 = vmax.f32 %v2204, %v1612
        %v2206 = vmax.f32 %v2205, %v1616
        %v2207 = vmax.f32 %v2206, %v1622
        %v2208 = vmax.f32 %v2207, %v1626
        %v2209 = vmax.f32 %v2208, %v1632
        %v2210 = vmax.f32 %v2209, %v1636
        %v2211 = vmax.f32 %v2210, %v1642
        %v2212 = vmax.f32 %v2211, %v1646
        %v2213 = vmax.f32 %v2212, %v1652
        %v2214 = vmax.f32 %v2213, %v1656
        %v2215 = vmax.f32 %v2214, %v1662
        %v2216 = vmax.f32 %v2215, %v1666
        %v2217 = vmax.f32 %v2216, %v1672
        %v2218 = vmax.f32 %v2217, %v1676
        %v2219 = vmax.f32 %v2218, %v1682
        %v2220 = vmax.f32 %v2219, %v1686
        %v2221 = vmax.f32 %v2220, %v1692
        %v2222 = vmax.f32 %v2221, %v1696
        %v2223 = vmax.f32 %v2222, %v1702
        %v2224 = vmax.f32 %v2223, %v1706
        %v2225 = vmax.f32 %v2224, %v1712
        %v2226 = vrot.slane %v2225, 4
        %v2227 = vmax.f32 %v2225, %v2226
        %v2228 = vrot.slane %v2227, 2
        %v2229 = vmax.f32 %v2227, %v2228
        %v2230 = vrot.slane %v2229, 1
        %v2231 = vmax.f32 %v2229, %v2230
        %v2232 = vmax.f32 %v1594, %v1598
        %v2233 = vmax.f32 %v2232, %v1604
        %v2234 = vmax.f32 %v2233, %v1608
        %v2235 = vmax.f32 %v2234, %v1614
        %v2236 = vmax.f32 %v2235, %v1618
        %v2237 = vmax.f32 %v2236, %v1624
        %v2238 = vmax.f32 %v2237, %v1628
        %v2239 = vmax.f32 %v2238, %v1634
        %v2240 = vmax.f32 %v2239, %v1638
        %v2241 = vmax.f32 %v2240, %v1644
        %v2242 = vmax.f32 %v2241, %v1648
        %v2243 = vmax.f32 %v2242, %v1654
        %v2244 = vmax.f32 %v2243, %v1658
        %v2245 = vmax.f32 %v2244, %v1664
        %v2246 = vmax.f32 %v2245, %v1668
        %v2247 = vmax.f32 %v2246, %v1674
        %v2248 = vmax.f32 %v2247, %v1678
        %v2249 = vmax.f32 %v2248, %v1684
        %v2250 = vmax.f32 %v2249, %v1688
        %v2251 = vmax.f32 %v2250, %v1694
        %v2252 = vmax.f32 %v2251, %v1698
        %v2253 = vmax.f32 %v2252, %v1704
        %v2254 = vmax.f32 %v2253, %v1708
        %v2255 = vmax.f32 %v2254, %v1714
        %v2256 = vrot.slane %v2255, 4
        %v2257 = vmax.f32 %v2255, %v2256
        %v2258 = vrot.slane %v2257, 2
        %v2259 = vmax.f32 %v2257, %v2258
        %v2260 = vrot.slane %v2259, 1
        %v2261 = vmax.f32 %v2259, %v2260
        %v2262 = vmax.f32 %v1753, %v1757
        %v2263 = vmax.f32 %v2262, %v1763
        %v2264 = vmax.f32 %v2263, %v1767
        %v2265 = vmax.f32 %v2264, %v1773
        %v2266 = vmax.f32 %v2265, %v1777
        %v2267 = vmax.f32 %v2266, %v1783
        %v2268 = vmax.f32 %v2267, %v1787
        %v2269 = vmax.f32 %v2268, %v1793
        %v2270 = vmax.f32 %v2269, %v1797
        %v2271 = vmax.f32 %v2270, %v1803
        %v2272 = vmax.f32 %v2271, %v1807
        %v2273 = vmax.f32 %v2272, %v1813
        %v2274 = vmax.f32 %v2273, %v1817
        %v2275 = vmax.f32 %v2274, %v1823
        %v2276 = vmax.f32 %v2275, %v1827
        %v2277 = vmax.f32 %v2276, %v1833
        %v2278 = vmax.f32 %v2277, %v1837
        %v2279 = vmax.f32 %v2278, %v1843
        %v2280 = vmax.f32 %v2279, %v1847
        %v2281 = vmax.f32 %v2280, %v1853
        %v2282 = vmax.f32 %v2281, %v1857
        %v2283 = vmax.f32 %v2282, %v1863
        %v2284 = vmax.f32 %v2283, %v1867
        %v2285 = vmax.f32 %v2284, %v1873
        %v2286 = vrot.slane %v2285, 4
        %v2287 = vmax.f32 %v2285, %v2286
        %v2288 = vrot.slane %v2287, 2
        %v2289 = vmax.f32 %v2287, %v2288
        %v2290 = vrot.slane %v2289, 1
        %v2291 = vmax.f32 %v2289, %v2290
        %v2292 = vmax.f32 %v1755, %v1759
        %v2293 = vmax.f32 %v2292, %v1765
        %v2294 = vmax.f32 %v2293, %v1769
        %v2295 = vmax.f32 %v2294, %v1775
        %v2296 = vmax.f32 %v2295, %v1779
        %v2297 = vmax.f32 %v2296, %v1785
        %v2298 = vmax.f32 %v2297, %v1789
        %v2299 = vmax.f32 %v2298, %v1795
        %v2300 = vmax.f32 %v2299, %v1799
        %v2301 = vmax.f32 %v2300, %v1805
        %v2302 = vmax.f32 %v2301, %v1809
        %v2303 = vmax.f32 %v2302, %v1815
        %v2304 = vmax.f32 %v2303, %v1819
        %v2305 = vmax.f32 %v2304, %v1825
        %v2306 = vmax.f32 %v2305, %v1829
        %v2307 = vmax.f32 %v2306, %v1835
        %v2308 = vmax.f32 %v2307, %v1839
        %v2309 = vmax.f32 %v2308, %v1845
        %v2310 = vmax.f32 %v2309, %v1849
        %v2311 = vmax.f32 %v2310, %v1855
        %v2312 = vmax.f32 %v2311, %v1859
        %v2313 = vmax.f32 %v2312, %v1865
        %v2314 = vmax.f32 %v2313, %v1869
        %v2315 = vmax.f32 %v2314, %v1875
        %v2316 = vrot.slane %v2315, 4
        %v2317 = vmax.f32 %v2315, %v2316
        %v2318 = vrot.slane %v2317, 2
        %v2319 = vmax.f32 %v2317, %v2318
        %v2320 = vrot.slane %v2319, 1
        %v2321 = vmax.f32 %v2319, %v2320
        %v2322 = vmax.f32 %v1914, %v1918
        %v2323 = vmax.f32 %v2322, %v1924
        %v2324 = vmax.f32 %v2323, %v1928
        %v2325 = vmax.f32 %v2324, %v1934
        %v2326 = vmax.f32 %v2325, %v1938
        %v2327 = vmax.f32 %v2326, %v1944
        %v2328 = vmax.f32 %v2327, %v1948
        %v2329 = vmax.f32 %v2328, %v1954
        %v2330 = vmax.f32 %v2329, %v1958
        %v2331 = vmax.f32 %v2330, %v1964
        %v2332 = vmax.f32 %v2331, %v1968
        %v2333 = vmax.f32 %v2332, %v1974
        %v2334 = vmax.f32 %v2333, %v1978
        %v2335 = vmax.f32 %v2334, %v1984
        %v2336 = vmax.f32 %v2335, %v1988
        %v2337 = vmax.f32 %v2336, %v1994
        %v2338 = vmax.f32 %v2337, %v1998
        %v2339 = vmax.f32 %v2338, %v2004
        %v2340 = vmax.f32 %v2339, %v2008
        %v2341 = vmax.f32 %v2340, %v2014
        %v2342 = vmax.f32 %v2341, %v2018
        %v2343 = vmax.f32 %v2342, %v2024
        %v2344 = vmax.f32 %v2343, %v2028
        %v2345 = vmax.f32 %v2344, %v2034
        %v2346 = vrot.slane %v2345, 4
        %v2347 = vmax.f32 %v2345, %v2346
        %v2348 = vrot.slane %v2347, 2
        %v2349 = vmax.f32 %v2347, %v2348
        %v2350 = vrot.slane %v2349, 1
        %v2351 = vmax.f32 %v2349, %v2350
        %v2352 = vmax.f32 %v1916, %v1920
        %v2353 = vmax.f32 %v2352, %v1926
        %v2354 = vmax.f32 %v2353, %v1930
        %v2355 = vmax.f32 %v2354, %v1936
        %v2356 = vmax.f32 %v2355, %v1940
        %v2357 = vmax.f32 %v2356, %v1946
        %v2358 = vmax.f32 %v2357, %v1950
        %v2359 = vmax.f32 %v2358, %v1956
        %v2360 = vmax.f32 %v2359, %v1960
        %v2361 = vmax.f32 %v2360, %v1966
        %v2362 = vmax.f32 %v2361, %v1970
        %v2363 = vmax.f32 %v2362, %v1976
        %v2364 = vmax.f32 %v2363, %v1980
        %v2365 = vmax.f32 %v2364, %v1986
        %v2366 = vmax.f32 %v2365, %v1990
        %v2367 = vmax.f32 %v2366, %v1996
        %v2368 = vmax.f32 %v2367, %v2000
        %v2369 = vmax.f32 %v2368, %v2006
        %v2370 = vmax.f32 %v2369, %v2010
        %v2371 = vmax.f32 %v2370, %v2016
        %v2372 = vmax.f32 %v2371, %v2020
        %v2373 = vmax.f32 %v2372, %v2026
        %v2374 = vmax.f32 %v2373, %v2030
        %v2375 = vmax.f32 %v2374, %v2036
        %v2376 = vrot.slane %v2375, 4
        %v2377 = vmax.f32 %v2375, %v2376
        %v2378 = vrot.slane %v2377, 2
        %v2379 = vmax.f32 %v2377, %v2378
        %v2380 = vrot.slane %v2379, 1
        %v2381 = vmax.f32 %v2379, %v2380
        %v2382 = vmax.f32 %v2075, %v2079
        %v2383 = vmax.f32 %v2382, %v2085
        %v2384 = vmax.f32 %v2383, %v2089
        %v2385 = vmax.f32 %v2384, %v2095
        %v2386 = vmax.f32 %v2385, %v2099
        %v2387 = vmax.f32 %v2386, %v2105
        %v2388 = vmax.f32 %v2387, %v2109
        %v2389 = vmax.f32 %v2388, %v2115
        %v2390 = vmax.f32 %v2389, %v2119
        %v2391 = vmax.f32 %v2390, %v2125
        %v2392 = vmax.f32 %v2391, %v2129
        %v2393 = vmax.f32 %v2392, %v2135
        %v2394 = vmax.f32 %v2393, %v2139
        %v2395 = vmax.f32 %v2394, %v2145
        %v2396 = vmax.f32 %v2395, %v2149
        %v2397 = vmax.f32 %v2396, %v2155
        %v2398 = vmax.f32 %v2397, %v2159
        %v2399 = vmax.f32 %v2398, %v2165
        %v2400 = vmax.f32 %v2399, %v2169
        %v2401 = vmax.f32 %v2400, %v2175
        %v2402 = vmax.f32 %v2401, %v2179
        %v2403 = vmax.f32 %v2402, %v2185
        %v2404 = vmax.f32 %v2403, %v2189
        %v2405 = vmax.f32 %v2404, %v2195
        %v2406 = vrot.slane %v2405, 4
        %v2407 = vmax.f32 %v2405, %v2406
        %v2408 = vrot.slane %v2407, 2
        %v2409 = vmax.f32 %v2407, %v2408
        %v2410 = vrot.slane %v2409, 1
        %v2411 = vmax.f32 %v2409, %v2410
        %v2412 = vmax.f32 %v2077, %v2081
        %v2413 = vmax.f32 %v2412, %v2087
        %v2414 = vmax.f32 %v2413, %v2091
        %v2415 = vmax.f32 %v2414, %v2097
        %v2416 = vmax.f32 %v2415, %v2101
        %v2417 = vmax.f32 %v2416, %v2107
        %v2418 = vmax.f32 %v2417, %v2111
        %v2419 = vmax.f32 %v2418, %v2117
        %v2420 = vmax.f32 %v2419, %v2121
        %v2421 = vmax.f32 %v2420, %v2127
        %v2422 = vmax.f32 %v2421, %v2131
        %v2423 = vmax.f32 %v2422, %v2137
        %v2424 = vmax.f32 %v2423, %v2141
        %v2425 = vmax.f32 %v2424, %v2147
        %v2426 = vmax.f32 %v2425, %v2151
        %v2427 = vmax.f32 %v2426, %v2157
        %v2428 = vmax.f32 %v2427, %v2161
        %v2429 = vmax.f32 %v2428, %v2167
        %v2430 = vmax.f32 %v2429, %v2171
        %v2431 = vmax.f32 %v2430, %v2177
        %v2432 = vmax.f32 %v2431, %v2181
        %v2433 = vmax.f32 %v2432, %v2187
        %v2434 = vmax.f32 %v2433, %v2191
        %v2435 = vmax.f32 %v2434, %v2197
        %v2436 = vrot.slane %v2435, 4
        %v2437 = vmax.f32 %v2435, %v2436
        %v2438 = vrot.slane %v2437, 2
        %v2439 = vmax.f32 %v2437, %v2438
        %v2440 = vrot.slane %v2439, 1
        %v2441 = vmax.f32 %v2439, %v2440
        %v2450 = vcombine.low %v2231, %v2261
        %v2451 = vcombine.low %v2291, %v2321
        %v2452 = vcombine.low %v2351, %v2381
        %v2453 = vcombine.low %v2411, %v2441
        %v2455 = vunpack.c.l.s4 1966171168
        %v2456 = vunpack.c.0.s8 %v2455
        %v2457 = vlaneseq
        %v2458 = vshrl.u32 %v2457, 7
        %v2459 = vsub.s32 %v2456, %v2458
        %v2460 = vrot.slane %v2450, %v2459
        %v2462 = vunpack.c.l.s4 1966171168
        %v2463 = vunpack.c.0.s8 %v2462
        %v2464 = vlaneseq
        %v2465 = vshrl.u32 %v2464, 7
        %v2466 = vsub.s32 %v2463, %v2465
        %v2467 = vrot.slane %v2451, %v2466
        %v2469 = vunpack.c.l.s4 1966171168
        %v2470 = vunpack.c.0.s8 %v2469
        %v2471 = vlaneseq
        %v2472 = vshrl.u32 %v2471, 7
        %v2473 = vsub.s32 %v2470, %v2472
        %v2474 = vrot.slane %v2452, %v2473
        %v2476 = vunpack.c.l.s4 1966171168
        %v2477 = vunpack.c.0.s8 %v2476
        %v2478 = vlaneseq
        %v2479 = vshrl.u32 %v2478, 7
        %v2480 = vsub.s32 %v2477, %v2479
        %v2481 = vrot.slane %v2453, %v2480
        %v2482 = vcombine.low %v2460, %v2467
        %v2483 = vcombine.low %v2474, %v2481
        %v2485 = vunpack.c.l.s4 1966171168
        %v2486 = vunpack.c.0.s8 %v2485
        %v2487 = vlaneseq
        %v2488 = vshrl.u32 %v2487, 7
        %v2489 = vsub.s32 %v2486, %v2488
        %v2490 = vrot.slane %v2482, %v2489
        %v2492 = vunpack.c.l.s4 1966171168
        %v2493 = vunpack.c.0.s8 %v2492
        %v2494 = vlaneseq
        %v2495 = vshrl.u32 %v2494, 7
        %v2496 = vsub.s32 %v2493, %v2495
        %v2497 = vrot.slane %v2483, %v2496
        %v2498 = vcombine.low %v2490, %v2497
        %v2500 = vmax.f32 %v2201, %v2498
        %2501 = vst [vmem:[#allocation2] sm:$0xff] %v2500
        // Predicated region
        $region69: #{pointnet_forward.2} parent=47 // pred_check
          %p2502 = pneg %p357
        $region70: #{pointnet_forward.2} parent=47 // pred_check_branch
          %2504 = sbr.rel (%p2502) target = $region72
        $region71: #{pointnet_forward.2} parent=47 // pred_region
          %v2505 = vld [vmem:[#allocation2] sm:$0xff]
          %v2506 = vld [vmem:[#allocation8] sm:$0xff]
          %v2507 = vadd.f32 %v2505, %v2506
          %2508 = vst [vmem:[%s355] sm:$0xff] %v2507
        $region72: #{pointnet_forward.2} parent=47 // pred_fallthru
          _
        %p2509 = scmp.lt.s32.totalorder %s25, 1
        %s2510 = scalar_select %p2509, %s25, 1
        %s2511 = smul.addr %s2510, 8
        %s2512 = scalar_lea.vmem %s7, %s2511
        // Predicated region
        $region73: #{pointnet_forward.2} parent=47 // pred_check
          %p2513 = pneg %p205
        $region74: #{pointnet_forward.2} parent=47 // pred_check_branch
          %2515 = sbr.rel (%p2513) target = $region76
        $region75: #{pointnet_forward.2} parent=47 // pred_region
          _
        $region76: #{pointnet_forward.2} parent=47 // pred_fallthru
          _
      $region48: #{pointnet_forward.2} parent=5 // pred_fallthru
        _
      %p2516 = scmp.le.s32.totalorder 2, %s16
      // Predicated region
      $region77: #{pointnet_forward.2} parent=5 // pred_check
        %p2517 = pneg %p2516
      $region78: #{pointnet_forward.2} parent=5 // pred_check_branch
        %2519 = sbr.rel (%p2517) target = $region80
      $region79: #{pointnet_forward.2} parent=5 // pred_region
        %s2520 = ssub.s32 %s16, 2
        // Predicated region
        $region81: #{pointnet_forward.2} parent=79 // pred_check
          %p2521 = pneg %p211
        $region82: #{pointnet_forward.2} parent=79 // pred_check_branch
          %2523 = sbr.rel (%p2521) target = $region84
        $region83: #{pointnet_forward.2} parent=79 // pred_region
          %p2524 = scmp.lt.s32.totalorder %s27, 1
          %s2525 = scalar_select %p2524, %s27, 1
          %s2526 = smul.addr %s2525, 8
          %s2527 = scalar_lea.vmem %s7, %s2526
        $region84: #{pointnet_forward.2} parent=79 // pred_fallthru
          _
      $region80: #{pointnet_forward.2} parent=5 // pred_fallthru
        _
    $region6: #{pointnet_forward.2} parent=1 // loop_footer
      %s20 = sadd.s32 1, %s16
    $region7: #{pointnet_forward.2} parent=1 // loop_footer_branch
      %15 = sbr.rel target = $region3
    $region8: #{pointnet_forward.2} parent=1 // loop_exit
      _
    %2528 = vsyncpa [#allocation4], 1
    %s2529 = scalar_lea.sflag [#allocation4], 1
    %2530 = vsyncpa %s2529, 1
    %2531 = vsyncpa [#allocation6], 1
    %2532 = vsyncpa [#allocation9], 1

// kernel: pointnet_forward.3
$region0: #{pointnet_forward.3}
  #allocation0 [shape = 'u32[]', space=smem, size = 0x4, offset = 0x4, fixed_abs, tag = 'smem constant byte address 0x4 - core index']
  #allocation1 [shape = 'u32[144,128]{1,0:T(1,128)}', space=vmem, size = 0x12000, scoped, tag = 'internal scratch']
  %s0 = inlined_call_operand.vmem [shape: f32[2,1024], index: 0, kind: input, shape index: {}]
  %s1 = inlined_call_operand.vmem [shape: bf16[1024,512], index: 1, kind: input, shape index: {}]
  %s2 = inlined_call_operand.vmem [shape: f32[1,512], index: 2, kind: input, shape index: {}]
  %s3 = inlined_call_operand.vmem [shape: bf16[512,256], index: 3, kind: input, shape index: {}]
  %s4 = inlined_call_operand.vmem [shape: f32[1,256], index: 4, kind: input, shape index: {}]
  %s5 = inlined_call_operand.vmem [shape: bf16[256,16], index: 5, kind: input, shape index: {}]
  %s6 = inlined_call_operand.vmem [shape: f32[1,16], index: 6, kind: input, shape index: {}]
  %s7 = inlined_call_operand.hbm [shape: f32[2,16], index: 7, kind: output, shape index: {}]
  %s8 = sld [smem:[#allocation0]]
  $region38: #{pointnet_forward.3} parent=0
    _
  %s10 = ssub.s32 1, %s8
  %s11 = scalar_select 0, %s10, %s8
  $region1: #{pointnet_forward.3} parent=0
    #allocation2 [shape = 'u8[1024]{0}', space=vmem, size = 0x400, scoped, tag = 'output window, operand 0, single buffered']
    #allocation3 [shape = 's32[1]{0}', space=sflag, size = 0x4, scoped, tag = 'scoped memory for pointnet_forward.3']
    %12 = vsyncpa [#allocation3], 0
    // Predicated region
    $region2: #{pointnet_forward.3} parent=1 // pred_check
      _
    $region3: #{pointnet_forward.3} parent=1 // pred_check_branch
      %14 = sbr.rel (0) target = $region5
    $region4: #{pointnet_forward.3} parent=1 // pred_region
      _
    $region5: #{pointnet_forward.3} parent=1 // pred_fallthru
      _
    // Predicated region
    $region6: #{pointnet_forward.3} parent=1 // pred_check
      _
    $region7: #{pointnet_forward.3} parent=1 // pred_check_branch
      %16 = sbr.rel (0) target = $region9
    $region8: #{pointnet_forward.3} parent=1 // pred_region
      _
    $region9: #{pointnet_forward.3} parent=1 // pred_fallthru
      _
    // Predicated region
    $region10: #{pointnet_forward.3} parent=1 // pred_check
      _
    $region11: #{pointnet_forward.3} parent=1 // pred_check_branch
      %18 = sbr.rel (0) target = $region13
    $region12: #{pointnet_forward.3} parent=1 // pred_region
      _
    $region13: #{pointnet_forward.3} parent=1 // pred_fallthru
      _
    // Predicated region
    $region14: #{pointnet_forward.3} parent=1 // pred_check
      _
    $region15: #{pointnet_forward.3} parent=1 // pred_check_branch
      %20 = sbr.rel (0) target = $region17
    $region16: #{pointnet_forward.3} parent=1 // pred_region
      _
    $region17: #{pointnet_forward.3} parent=1 // pred_fallthru
      _
    // Predicated region
    $region18: #{pointnet_forward.3} parent=1 // pred_check
      _
    $region19: #{pointnet_forward.3} parent=1 // pred_check_branch
      %22 = sbr.rel (0) target = $region21
    $region20: #{pointnet_forward.3} parent=1 // pred_region
      _
    $region21: #{pointnet_forward.3} parent=1 // pred_fallthru
      _
    // Predicated region
    $region22: #{pointnet_forward.3} parent=1 // pred_check
      _
    $region23: #{pointnet_forward.3} parent=1 // pred_check_branch
      %24 = sbr.rel (0) target = $region25
    $region24: #{pointnet_forward.3} parent=1 // pred_region
      _
    $region25: #{pointnet_forward.3} parent=1 // pred_fallthru
      _
    // Predicated region
    $region26: #{pointnet_forward.3} parent=1 // pred_check
      _
    $region27: #{pointnet_forward.3} parent=1 // pred_check_branch
      %26 = sbr.rel (0) target = $region29
    $region28: #{pointnet_forward.3} parent=1 // pred_region
      _
    $region29: #{pointnet_forward.3} parent=1 // pred_fallthru
      _
    %v28 = vld [vmem:[%s0] sm:$0xff]
    %v29 = vld [vmem:[%s0 + $0x8] sm:$0xff]
    %v32 = vcombine.high %v28, %v28
    %v34 = vunpack.c.l.s4 1983009808
    %v35 = vunpack.c.0.s8 %v34
    %v36 = vlaneseq
    %v37 = vshrl.u32 %v36, 7
    %v38 = vsub.s32 %v35, %v37
    %v39 = vrot.slane %v28, %v38
    %v41 = vunpack.c.l.s4 1983009808
    %v42 = vunpack.c.0.s8 %v41
    %v43 = vlaneseq
    %v44 = vshrl.u32 %v43, 7
    %v45 = vsub.s32 %v42, %v44
    %v46 = vrot.slane %v32, %v45
    %v47 = vcombine.high %v39, %v39
    %v48 = vcombine.high %v46, %v46
    %v49 = vcombine.high %v29, %v29
    %v51 = vunpack.c.l.s4 1983009808
    %v52 = vunpack.c.0.s8 %v51
    %v53 = vlaneseq
    %v54 = vshrl.u32 %v53, 7
    %v55 = vsub.s32 %v52, %v54
    %v56 = vrot.slane %v29, %v55
    %v58 = vunpack.c.l.s4 1983009808
    %v59 = vunpack.c.0.s8 %v58
    %v60 = vlaneseq
    %v61 = vshrl.u32 %v60, 7
    %v62 = vsub.s32 %v59, %v61
    %v63 = vrot.slane %v49, %v62
    %v64 = vcombine.high %v56, %v56
    %v65 = vcombine.high %v63, %v63
    %v74 = vpack.c.bf16 %v39, %v39
    %v75 = vpack.c.bf16 %v47, %v47
    %v76 = vpack.c.bf16 %v46, %v46
    %v77 = vpack.c.bf16 %v48, %v48
    %v78 = vpack.c.bf16 %v56, %v56
    %v79 = vpack.c.bf16 %v64, %v64
    %v80 = vpack.c.bf16 %v63, %v63
    %v81 = vpack.c.bf16 %v65, %v65
    %v82 = vld [vmem:[%s1] sm:$0xff]
    %v83 = vld [vmem:[%s1 + $0x8] sm:$0xff]
    %v84 = vld [vmem:[%s1 + $0x10] sm:$0xff]
    %v85 = vld [vmem:[%s1 + $0x18] sm:$0xff]
    %v86 = vld [vmem:[%s1 + $0x20] sm:$0xff]
    %v87 = vld [vmem:[%s1 + $0x28] sm:$0xff]
    %v88 = vld [vmem:[%s1 + $0x30] sm:$0xff]
    %v89 = vld [vmem:[%s1 + $0x38] sm:$0xff]
    %v90 = vld [vmem:[%s1 + $0x40] sm:$0xff]
    %v91 = vld [vmem:[%s1 + $0x48] sm:$0xff]
    %v92 = vld [vmem:[%s1 + $0x50] sm:$0xff]
    %v93 = vld [vmem:[%s1 + $0x58] sm:$0xff]
    %v94 = vld [vmem:[%s1 + $0x60] sm:$0xff]
    %v95 = vld [vmem:[%s1 + $0x68] sm:$0xff]
    %v96 = vld [vmem:[%s1 + $0x70] sm:$0xff]
    %v97 = vld [vmem:[%s1 + $0x78] sm:$0xff]
    %v98 = vld [vmem:[%s1 + $0x80] sm:$0xff]
    %v99 = vld [vmem:[%s1 + $0x88] sm:$0xff]
    %v100 = vld [vmem:[%s1 + $0x90] sm:$0xff]
    %v101 = vld [vmem:[%s1 + $0x98] sm:$0xff]
    %v102 = vld [vmem:[%s1 + $0xa0] sm:$0xff]
    %v103 = vld [vmem:[%s1 + $0xa8] sm:$0xff]
    %v104 = vld [vmem:[%s1 + $0xb0] sm:$0xff]
    %v105 = vld [vmem:[%s1 + $0xb8] sm:$0xff]
    %v106 = vld [vmem:[%s1 + $0xc0] sm:$0xff]
    %v107 = vld [vmem:[%s1 + $0xc8] sm:$0xff]
    %v108 = vld [vmem:[%s1 + $0xd0] sm:$0xff]
    %v109 = vld [vmem:[%s1 + $0xd8] sm:$0xff]
    %v110 = vld [vmem:[%s1 + $0xe0] sm:$0xff]
    %v111 = vld [vmem:[%s1 + $0xe8] sm:$0xff]
    %v112 = vld [vmem:[%s1 + $0xf0] sm:$0xff]
    %v113 = vld [vmem:[%s1 + $0xf8] sm:$0xff]
    %v114 = vld [vmem:[%s1 + $0x100] sm:$0xff]
    %v115 = vld [vmem:[%s1 + $0x108] sm:$0xff]
    %v116 = vld [vmem:[%s1 + $0x110] sm:$0xff]
    %v117 = vld [vmem:[%s1 + $0x118] sm:$0xff]
    %v118 = vld [vmem:[%s1 + $0x120] sm:$0xff]
    %v119 = vld [vmem:[%s1 + $0x128] sm:$0xff]
    %v120 = vld [vmem:[%s1 + $0x130] sm:$0xff]
    %v121 = vld [vmem:[%s1 + $0x138] sm:$0xff]
    %v122 = vld [vmem:[%s1 + $0x140] sm:$0xff]
    %v123 = vld [vmem:[%s1 + $0x148] sm:$0xff]
    %v124 = vld [vmem:[%s1 + $0x150] sm:$0xff]
    %v125 = vld [vmem:[%s1 + $0x158] sm:$0xff]
    %v126 = vld [vmem:[%s1 + $0x160] sm:$0xff]
    %v127 = vld [vmem:[%s1 + $0x168] sm:$0xff]
    %v128 = vld [vmem:[%s1 + $0x170] sm:$0xff]
    %v129 = vld [vmem:[%s1 + $0x178] sm:$0xff]
    %v130 = vld [vmem:[%s1 + $0x180] sm:$0xff]
    %v131 = vld [vmem:[%s1 + $0x188] sm:$0xff]
    %v132 = vld [vmem:[%s1 + $0x190] sm:$0xff]
    %v133 = vld [vmem:[%s1 + $0x198] sm:$0xff]
    %v134 = vld [vmem:[%s1 + $0x1a0] sm:$0xff]
    %v135 = vld [vmem:[%s1 + $0x1a8] sm:$0xff]
    %v136 = vld [vmem:[%s1 + $0x1b0] sm:$0xff]
    %v137 = vld [vmem:[%s1 + $0x1b8] sm:$0xff]
    %v138 = vld [vmem:[%s1 + $0x1c0] sm:$0xff]
    %v139 = vld [vmem:[%s1 + $0x1c8] sm:$0xff]
    %v140 = vld [vmem:[%s1 + $0x1d0] sm:$0xff]
    %v141 = vld [vmem:[%s1 + $0x1d8] sm:$0xff]
    %v142 = vld [vmem:[%s1 + $0x1e0] sm:$0xff]
    %v143 = vld [vmem:[%s1 + $0x1e8] sm:$0xff]
    %v144 = vld [vmem:[%s1 + $0x1f0] sm:$0xff]
    %v145 = vld [vmem:[%s1 + $0x1f8] sm:$0xff]
    %v146 = vld [vmem:[%s1 + $0x200] sm:$0xff]
    %v147 = vld [vmem:[%s1 + $0x208] sm:$0xff]
    %v148 = vld [vmem:[%s1 + $0x210] sm:$0xff]
    %v149 = vld [vmem:[%s1 + $0x218] sm:$0xff]
    %v150 = vld [vmem:[%s1 + $0x220] sm:$0xff]
    %v151 = vld [vmem:[%s1 + $0x228] sm:$0xff]
    %v152 = vld [vmem:[%s1 + $0x230] sm:$0xff]
    %v153 = vld [vmem:[%s1 + $0x238] sm:$0xff]
    %v154 = vld [vmem:[%s1 + $0x240] sm:$0xff]
    %v155 = vld [vmem:[%s1 + $0x248] sm:$0xff]
    %v156 = vld [vmem:[%s1 + $0x250] sm:$0xff]
    %v157 = vld [vmem:[%s1 + $0x258] sm:$0xff]
    %v158 = vld [vmem:[%s1 + $0x260] sm:$0xff]
    %v159 = vld [vmem:[%s1 + $0x268] sm:$0xff]
    %v160 = vld [vmem:[%s1 + $0x270] sm:$0xff]
    %v161 = vld [vmem:[%s1 + $0x278] sm:$0xff]
    %v162 = vld [vmem:[%s1 + $0x280] sm:$0xff]
    %v163 = vld [vmem:[%s1 + $0x288] sm:$0xff]
    %v164 = vld [vmem:[%s1 + $0x290] sm:$0xff]
    %v165 = vld [vmem:[%s1 + $0x298] sm:$0xff]
    %v166 = vld [vmem:[%s1 + $0x2a0] sm:$0xff]
    %v167 = vld [vmem:[%s1 + $0x2a8] sm:$0xff]
    %v168 = vld [vmem:[%s1 + $0x2b0] sm:$0xff]
    %v169 = vld [vmem:[%s1 + $0x2b8] sm:$0xff]
    %v170 = vld [vmem:[%s1 + $0x2c0] sm:$0xff]
    %v171 = vld [vmem:[%s1 + $0x2c8] sm:$0xff]
    %v172 = vld [vmem:[%s1 + $0x2d0] sm:$0xff]
    %v173 = vld [vmem:[%s1 + $0x2d8] sm:$0xff]
    %v174 = vld [vmem:[%s1 + $0x2e0] sm:$0xff]
    %v175 = vld [vmem:[%s1 + $0x2e8] sm:$0xff]
    %v176 = vld [vmem:[%s1 + $0x2f0] sm:$0xff]
    %v177 = vld [vmem:[%s1 + $0x2f8] sm:$0xff]
    %v178 = vld [vmem:[%s1 + $0x300] sm:$0xff]
    %v179 = vld [vmem:[%s1 + $0x308] sm:$0xff]
    %v180 = vld [vmem:[%s1 + $0x310] sm:$0xff]
    %v181 = vld [vmem:[%s1 + $0x318] sm:$0xff]
    %v182 = vld [vmem:[%s1 + $0x320] sm:$0xff]
    %v183 = vld [vmem:[%s1 + $0x328] sm:$0xff]
    %v184 = vld [vmem:[%s1 + $0x330] sm:$0xff]
    %v185 = vld [vmem:[%s1 + $0x338] sm:$0xff]
    %v186 = vld [vmem:[%s1 + $0x340] sm:$0xff]
    %v187 = vld [vmem:[%s1 + $0x348] sm:$0xff]
    %v188 = vld [vmem:[%s1 + $0x350] sm:$0xff]
    %v189 = vld [vmem:[%s1 + $0x358] sm:$0xff]
    %v190 = vld [vmem:[%s1 + $0x360] sm:$0xff]
    %v191 = vld [vmem:[%s1 + $0x368] sm:$0xff]
    %v192 = vld [vmem:[%s1 + $0x370] sm:$0xff]
    %v193 = vld [vmem:[%s1 + $0x378] sm:$0xff]
    %v194 = vld [vmem:[%s1 + $0x380] sm:$0xff]
    %v195 = vld [vmem:[%s1 + $0x388] sm:$0xff]
    %v196 = vld [vmem:[%s1 + $0x390] sm:$0xff]
    %v197 = vld [vmem:[%s1 + $0x398] sm:$0xff]
    %v198 = vld [vmem:[%s1 + $0x3a0] sm:$0xff]
    %v199 = vld [vmem:[%s1 + $0x3a8] sm:$0xff]
    %v200 = vld [vmem:[%s1 + $0x3b0] sm:$0xff]
    %v201 = vld [vmem:[%s1 + $0x3b8] sm:$0xff]
    %v202 = vld [vmem:[%s1 + $0x3c0] sm:$0xff]
    %v203 = vld [vmem:[%s1 + $0x3c8] sm:$0xff]
    %v204 = vld [vmem:[%s1 + $0x3d0] sm:$0xff]
    %v205 = vld [vmem:[%s1 + $0x3d8] sm:$0xff]
    %v206 = vld [vmem:[%s1 + $0x3e0] sm:$0xff]
    %v207 = vld [vmem:[%s1 + $0x3e8] sm:$0xff]
    %v208 = vld [vmem:[%s1 + $0x3f0] sm:$0xff]
    %v209 = vld [vmem:[%s1 + $0x3f8] sm:$0xff]
    %v210 = vld [vmem:[%s1 + $0x400] sm:$0xff]
    %v211 = vld [vmem:[%s1 + $0x408] sm:$0xff]
    %v212 = vld [vmem:[%s1 + $0x410] sm:$0xff]
    %v213 = vld [vmem:[%s1 + $0x418] sm:$0xff]
    %v214 = vld [vmem:[%s1 + $0x420] sm:$0xff]
    %v215 = vld [vmem:[%s1 + $0x428] sm:$0xff]
    %v216 = vld [vmem:[%s1 + $0x430] sm:$0xff]
    %v217 = vld [vmem:[%s1 + $0x438] sm:$0xff]
    %v218 = vld [vmem:[%s1 + $0x440] sm:$0xff]
    %v219 = vld [vmem:[%s1 + $0x448] sm:$0xff]
    %v220 = vld [vmem:[%s1 + $0x450] sm:$0xff]
    %v221 = vld [vmem:[%s1 + $0x458] sm:$0xff]
    %v222 = vld [vmem:[%s1 + $0x460] sm:$0xff]
    %v223 = vld [vmem:[%s1 + $0x468] sm:$0xff]
    %v224 = vld [vmem:[%s1 + $0x470] sm:$0xff]
    %v225 = vld [vmem:[%s1 + $0x478] sm:$0xff]
    %v226 = vld [vmem:[%s1 + $0x480] sm:$0xff]
    %v227 = vld [vmem:[%s1 + $0x488] sm:$0xff]
    %v228 = vld [vmem:[%s1 + $0x490] sm:$0xff]
    %v229 = vld [vmem:[%s1 + $0x498] sm:$0xff]
    %v230 = vld [vmem:[%s1 + $0x4a0] sm:$0xff]
    %v231 = vld [vmem:[%s1 + $0x4a8] sm:$0xff]
    %v232 = vld [vmem:[%s1 + $0x4b0] sm:$0xff]
    %v233 = vld [vmem:[%s1 + $0x4b8] sm:$0xff]
    %v234 = vld [vmem:[%s1 + $0x4c0] sm:$0xff]
    %v235 = vld [vmem:[%s1 + $0x4c8] sm:$0xff]
    %v236 = vld [vmem:[%s1 + $0x4d0] sm:$0xff]
    %v237 = vld [vmem:[%s1 + $0x4d8] sm:$0xff]
    %v238 = vld [vmem:[%s1 + $0x4e0] sm:$0xff]
    %v239 = vld [vmem:[%s1 + $0x4e8] sm:$0xff]
    %v240 = vld [vmem:[%s1 + $0x4f0] sm:$0xff]
    %v241 = vld [vmem:[%s1 + $0x4f8] sm:$0xff]
    %v242 = vld [vmem:[%s1 + $0x500] sm:$0xff]
    %v243 = vld [vmem:[%s1 + $0x508] sm:$0xff]
    %v244 = vld [vmem:[%s1 + $0x510] sm:$0xff]
    %v245 = vld [vmem:[%s1 + $0x518] sm:$0xff]
    %v246 = vld [vmem:[%s1 + $0x520] sm:$0xff]
    %v247 = vld [vmem:[%s1 + $0x528] sm:$0xff]
    %v248 = vld [vmem:[%s1 + $0x530] sm:$0xff]
    %v249 = vld [vmem:[%s1 + $0x538] sm:$0xff]
    %v250 = vld [vmem:[%s1 + $0x540] sm:$0xff]
    %v251 = vld [vmem:[%s1 + $0x548] sm:$0xff]
    %v252 = vld [vmem:[%s1 + $0x550] sm:$0xff]
    %v253 = vld [vmem:[%s1 + $0x558] sm:$0xff]
    %v254 = vld [vmem:[%s1 + $0x560] sm:$0xff]
    %v255 = vld [vmem:[%s1 + $0x568] sm:$0xff]
    %v256 = vld [vmem:[%s1 + $0x570] sm:$0xff]
    %v257 = vld [vmem:[%s1 + $0x578] sm:$0xff]
    %v258 = vld [vmem:[%s1 + $0x580] sm:$0xff]
    %v259 = vld [vmem:[%s1 + $0x588] sm:$0xff]
    %v260 = vld [vmem:[%s1 + $0x590] sm:$0xff]
    %v261 = vld [vmem:[%s1 + $0x598] sm:$0xff]
    %v262 = vld [vmem:[%s1 + $0x5a0] sm:$0xff]
    %v263 = vld [vmem:[%s1 + $0x5a8] sm:$0xff]
    %v264 = vld [vmem:[%s1 + $0x5b0] sm:$0xff]
    %v265 = vld [vmem:[%s1 + $0x5b8] sm:$0xff]
    %v266 = vld [vmem:[%s1 + $0x5c0] sm:$0xff]
    %v267 = vld [vmem:[%s1 + $0x5c8] sm:$0xff]
    %v268 = vld [vmem:[%s1 + $0x5d0] sm:$0xff]
    %v269 = vld [vmem:[%s1 + $0x5d8] sm:$0xff]
    %v270 = vld [vmem:[%s1 + $0x5e0] sm:$0xff]
    %v271 = vld [vmem:[%s1 + $0x5e8] sm:$0xff]
    %v272 = vld [vmem:[%s1 + $0x5f0] sm:$0xff]
    %v273 = vld [vmem:[%s1 + $0x5f8] sm:$0xff]
    %v274 = vld [vmem:[%s1 + $0x600] sm:$0xff]
    %v275 = vld [vmem:[%s1 + $0x608] sm:$0xff]
    %v276 = vld [vmem:[%s1 + $0x610] sm:$0xff]
    %v277 = vld [vmem:[%s1 + $0x618] sm:$0xff]
    %v278 = vld [vmem:[%s1 + $0x620] sm:$0xff]
    %v279 = vld [vmem:[%s1 + $0x628] sm:$0xff]
    %v280 = vld [vmem:[%s1 + $0x630] sm:$0xff]
    %v281 = vld [vmem:[%s1 + $0x638] sm:$0xff]
    %v282 = vld [vmem:[%s1 + $0x640] sm:$0xff]
    %v283 = vld [vmem:[%s1 + $0x648] sm:$0xff]
    %v284 = vld [vmem:[%s1 + $0x650] sm:$0xff]
    %v285 = vld [vmem:[%s1 + $0x658] sm:$0xff]
    %v286 = vld [vmem:[%s1 + $0x660] sm:$0xff]
    %v287 = vld [vmem:[%s1 + $0x668] sm:$0xff]
    %v288 = vld [vmem:[%s1 + $0x670] sm:$0xff]
    %v289 = vld [vmem:[%s1 + $0x678] sm:$0xff]
    %v290 = vld [vmem:[%s1 + $0x680] sm:$0xff]
    %v291 = vld [vmem:[%s1 + $0x688] sm:$0xff]
    %v292 = vld [vmem:[%s1 + $0x690] sm:$0xff]
    %v293 = vld [vmem:[%s1 + $0x698] sm:$0xff]
    %v294 = vld [vmem:[%s1 + $0x6a0] sm:$0xff]
    %v295 = vld [vmem:[%s1 + $0x6a8] sm:$0xff]
    %v296 = vld [vmem:[%s1 + $0x6b0] sm:$0xff]
    %v297 = vld [vmem:[%s1 + $0x6b8] sm:$0xff]
    %v298 = vld [vmem:[%s1 + $0x6c0] sm:$0xff]
    %v299 = vld [vmem:[%s1 + $0x6c8] sm:$0xff]
    %v300 = vld [vmem:[%s1 + $0x6d0] sm:$0xff]
    %v301 = vld [vmem:[%s1 + $0x6d8] sm:$0xff]
    %v302 = vld [vmem:[%s1 + $0x6e0] sm:$0xff]
    %v303 = vld [vmem:[%s1 + $0x6e8] sm:$0xff]
    %v304 = vld [vmem:[%s1 + $0x6f0] sm:$0xff]
    %v305 = vld [vmem:[%s1 + $0x6f8] sm:$0xff]
    %v306 = vld [vmem:[%s1 + $0x700] sm:$0xff]
    %v307 = vld [vmem:[%s1 + $0x708] sm:$0xff]
    %v308 = vld [vmem:[%s1 + $0x710] sm:$0xff]
    %v309 = vld [vmem:[%s1 + $0x718] sm:$0xff]
    %v310 = vld [vmem:[%s1 + $0x720] sm:$0xff]
    %v311 = vld [vmem:[%s1 + $0x728] sm:$0xff]
    %v312 = vld [vmem:[%s1 + $0x730] sm:$0xff]
    %v313 = vld [vmem:[%s1 + $0x738] sm:$0xff]
    %v314 = vld [vmem:[%s1 + $0x740] sm:$0xff]
    %v315 = vld [vmem:[%s1 + $0x748] sm:$0xff]
    %v316 = vld [vmem:[%s1 + $0x750] sm:$0xff]
    %v317 = vld [vmem:[%s1 + $0x758] sm:$0xff]
    %v318 = vld [vmem:[%s1 + $0x760] sm:$0xff]
    %v319 = vld [vmem:[%s1 + $0x768] sm:$0xff]
    %v320 = vld [vmem:[%s1 + $0x770] sm:$0xff]
    %v321 = vld [vmem:[%s1 + $0x778] sm:$0xff]
    %v322 = vld [vmem:[%s1 + $0x780] sm:$0xff]
    %v323 = vld [vmem:[%s1 + $0x788] sm:$0xff]
    %v324 = vld [vmem:[%s1 + $0x790] sm:$0xff]
    %v325 = vld [vmem:[%s1 + $0x798] sm:$0xff]
    %v326 = vld [vmem:[%s1 + $0x7a0] sm:$0xff]
    %v327 = vld [vmem:[%s1 + $0x7a8] sm:$0xff]
    %v328 = vld [vmem:[%s1 + $0x7b0] sm:$0xff]
    %v329 = vld [vmem:[%s1 + $0x7b8] sm:$0xff]
    %v330 = vld [vmem:[%s1 + $0x7c0] sm:$0xff]
    %v331 = vld [vmem:[%s1 + $0x7c8] sm:$0xff]
    %v332 = vld [vmem:[%s1 + $0x7d0] sm:$0xff]
    %v333 = vld [vmem:[%s1 + $0x7d8] sm:$0xff]
    %v334 = vld [vmem:[%s1 + $0x7e0] sm:$0xff]
    %v335 = vld [vmem:[%s1 + $0x7e8] sm:$0xff]
    %v336 = vld [vmem:[%s1 + $0x7f0] sm:$0xff]
    %v337 = vld [vmem:[%s1 + $0x7f8] sm:$0xff]
    %v338 = vld [vmem:[%s2] sm:$0xf]
    %v340 = vlaneseq
    %v341 = vshrl.u32 %v340, 7
    %v342 = vsub.s32 0, %v341
    %v343 = vrot.slane %v338, %v342
    %v344 = vlaneseq
    %v345 = vshrl.u32 %v344, 7
    %v346 = vsub.s32 1, %v345
    %v347 = vrot.slane %v338, %v346
    %v348 = vlaneseq
    %v349 = vshrl.u32 %v348, 7
    %v350 = vsub.s32 2, %v349
    %v351 = vrot.slane %v338, %v350
    %v352 = vlaneseq
    %v353 = vshrl.u32 %v352, 7
    %v354 = vsub.s32 3, %v353
    %v355 = vrot.slane %v338, %v354
    %v616 = vunpack.c.l.b16 %v82
    %v617 = vunpack.c.h.b16 %v82
    %v618 = vunpack.c.l.b16 %v83
    %v619 = vunpack.c.h.b16 %v83
    %v620 = vunpack.c.l.b16 %v84
    %v621 = vunpack.c.h.b16 %v84
    %v622 = vunpack.c.l.b16 %v85
    %v623 = vunpack.c.h.b16 %v85
    %v624 = vunpack.c.l.b16 %v86
    %v625 = vunpack.c.h.b16 %v86
    %v626 = vunpack.c.l.b16 %v87
    %v627 = vunpack.c.h.b16 %v87
    %v628 = vunpack.c.l.b16 %v88
    %v629 = vunpack.c.h.b16 %v88
    %v630 = vunpack.c.l.b16 %v89
    %v631 = vunpack.c.h.b16 %v89
    %v632 = vunpack.c.l.b16 %v90
    %v633 = vunpack.c.h.b16 %v90
    %v634 = vunpack.c.l.b16 %v91
    %v635 = vunpack.c.h.b16 %v91
    %v636 = vunpack.c.l.b16 %v92
    %v637 = vunpack.c.h.b16 %v92
    %v638 = vunpack.c.l.b16 %v93
    %v639 = vunpack.c.h.b16 %v93
    %v640 = vunpack.c.l.b16 %v94
    %v641 = vunpack.c.h.b16 %v94
    %v642 = vunpack.c.l.b16 %v95
    %v643 = vunpack.c.h.b16 %v95
    %v644 = vunpack.c.l.b16 %v96
    %v645 = vunpack.c.h.b16 %v96
    %v646 = vunpack.c.l.b16 %v97
    %v647 = vunpack.c.h.b16 %v97
    %v648 = vunpack.c.l.b16 %v98
    %v649 = vunpack.c.h.b16 %v98
    %v650 = vunpack.c.l.b16 %v99
    %v651 = vunpack.c.h.b16 %v99
    %v652 = vunpack.c.l.b16 %v100
    %v653 = vunpack.c.h.b16 %v100
    %v654 = vunpack.c.l.b16 %v101
    %v655 = vunpack.c.h.b16 %v101
    %v656 = vunpack.c.l.b16 %v102
    %v657 = vunpack.c.h.b16 %v102
    %v658 = vunpack.c.l.b16 %v103
    %v659 = vunpack.c.h.b16 %v103
    %v660 = vunpack.c.l.b16 %v104
    %v661 = vunpack.c.h.b16 %v104
    %v662 = vunpack.c.l.b16 %v105
    %v663 = vunpack.c.h.b16 %v105
    %v664 = vunpack.c.l.b16 %v106
    %v665 = vunpack.c.h.b16 %v106
    %v666 = vunpack.c.l.b16 %v107
    %v667 = vunpack.c.h.b16 %v107
    %v668 = vunpack.c.l.b16 %v108
    %v669 = vunpack.c.h.b16 %v108
    %v670 = vunpack.c.l.b16 %v109
    %v671 = vunpack.c.h.b16 %v109
    %v672 = vunpack.c.l.b16 %v110
    %v673 = vunpack.c.h.b16 %v110
    %v674 = vunpack.c.l.b16 %v111
    %v675 = vunpack.c.h.b16 %v111
    %v676 = vunpack.c.l.b16 %v112
    %v677 = vunpack.c.h.b16 %v112
    %v678 = vunpack.c.l.b16 %v113
    %v679 = vunpack.c.h.b16 %v113
    %v680 = vunpack.c.l.b16 %v114
    %v681 = vunpack.c.h.b16 %v114
    %v682 = vunpack.c.l.b16 %v115
    %v683 = vunpack.c.h.b16 %v115
    %v684 = vunpack.c.l.b16 %v116
    %v685 = vunpack.c.h.b16 %v116
    %v686 = vunpack.c.l.b16 %v117
    %v687 = vunpack.c.h.b16 %v117
    %v688 = vunpack.c.l.b16 %v118
    %v689 = vunpack.c.h.b16 %v118
    %v690 = vunpack.c.l.b16 %v119
    %v691 = vunpack.c.h.b16 %v119
    %v692 = vunpack.c.l.b16 %v120
    %v693 = vunpack.c.h.b16 %v120
    %v694 = vunpack.c.l.b16 %v121
    %v695 = vunpack.c.h.b16 %v121
    %v696 = vunpack.c.l.b16 %v122
    %v697 = vunpack.c.h.b16 %v122
    %v698 = vunpack.c.l.b16 %v123
    %v699 = vunpack.c.h.b16 %v123
    %v700 = vunpack.c.l.b16 %v124
    %v701 = vunpack.c.h.b16 %v124
    %v702 = vunpack.c.l.b16 %v125
    %v703 = vunpack.c.h.b16 %v125
    %v704 = vunpack.c.l.b16 %v126
    %v705 = vunpack.c.h.b16 %v126
    %v706 = vunpack.c.l.b16 %v127
    %v707 = vunpack.c.h.b16 %v127
    %v708 = vunpack.c.l.b16 %v128
    %v709 = vunpack.c.h.b16 %v128
    %v710 = vunpack.c.l.b16 %v129
    %v711 = vunpack.c.h.b16 %v129
    %v712 = vunpack.c.l.b16 %v130
    %v713 = vunpack.c.h.b16 %v130
    %v714 = vunpack.c.l.b16 %v131
    %v715 = vunpack.c.h.b16 %v131
    %v716 = vunpack.c.l.b16 %v132
    %v717 = vunpack.c.h.b16 %v132
    %v718 = vunpack.c.l.b16 %v133
    %v719 = vunpack.c.h.b16 %v133
    %v720 = vunpack.c.l.b16 %v134
    %v721 = vunpack.c.h.b16 %v134
    %v722 = vunpack.c.l.b16 %v135
    %v723 = vunpack.c.h.b16 %v135
    %v724 = vunpack.c.l.b16 %v136
    %v725 = vunpack.c.h.b16 %v136
    %v726 = vunpack.c.l.b16 %v137
    %v727 = vunpack.c.h.b16 %v137
    %v728 = vunpack.c.l.b16 %v138
    %v729 = vunpack.c.h.b16 %v138
    %v730 = vunpack.c.l.b16 %v139
    %v731 = vunpack.c.h.b16 %v139
    %v732 = vunpack.c.l.b16 %v140
    %v733 = vunpack.c.h.b16 %v140
    %v734 = vunpack.c.l.b16 %v141
    %v735 = vunpack.c.h.b16 %v141
    %v736 = vunpack.c.l.b16 %v142
    %v737 = vunpack.c.h.b16 %v142
    %v738 = vunpack.c.l.b16 %v143
    %v739 = vunpack.c.h.b16 %v143
    %v740 = vunpack.c.l.b16 %v144
    %v741 = vunpack.c.h.b16 %v144
    %v742 = vunpack.c.l.b16 %v145
    %v743 = vunpack.c.h.b16 %v145
    %v744 = vunpack.c.l.b16 %v146
    %v745 = vunpack.c.h.b16 %v146
    %v746 = vunpack.c.l.b16 %v147
    %v747 = vunpack.c.h.b16 %v147
    %v748 = vunpack.c.l.b16 %v148
    %v749 = vunpack.c.h.b16 %v148
    %v750 = vunpack.c.l.b16 %v149
    %v751 = vunpack.c.h.b16 %v149
    %v752 = vunpack.c.l.b16 %v150
    %v753 = vunpack.c.h.b16 %v150
    %v754 = vunpack.c.l.b16 %v151
    %v755 = vunpack.c.h.b16 %v151
    %v756 = vunpack.c.l.b16 %v152
    %v757 = vunpack.c.h.b16 %v152
    %v758 = vunpack.c.l.b16 %v153
    %v759 = vunpack.c.h.b16 %v153
    %v760 = vunpack.c.l.b16 %v154
    %v761 = vunpack.c.h.b16 %v154
    %v762 = vunpack.c.l.b16 %v155
    %v763 = vunpack.c.h.b16 %v155
    %v764 = vunpack.c.l.b16 %v156
    %v765 = vunpack.c.h.b16 %v156
    %v766 = vunpack.c.l.b16 %v157
    %v767 = vunpack.c.h.b16 %v157
    %v768 = vunpack.c.l.b16 %v158
    %v769 = vunpack.c.h.b16 %v158
    %v770 = vunpack.c.l.b16 %v159
    %v771 = vunpack.c.h.b16 %v159
    %v772 = vunpack.c.l.b16 %v160
    %v773 = vunpack.c.h.b16 %v160
    %v774 = vunpack.c.l.b16 %v161
    %v775 = vunpack.c.h.b16 %v161
    %v776 = vunpack.c.l.b16 %v162
    %v777 = vunpack.c.h.b16 %v162
    %v778 = vunpack.c.l.b16 %v163
    %v779 = vunpack.c.h.b16 %v163
    %v780 = vunpack.c.l.b16 %v164
    %v781 = vunpack.c.h.b16 %v164
    %v782 = vunpack.c.l.b16 %v165
    %v783 = vunpack.c.h.b16 %v165
    %v784 = vunpack.c.l.b16 %v166
    %v785 = vunpack.c.h.b16 %v166
    %v786 = vunpack.c.l.b16 %v167
    %v787 = vunpack.c.h.b16 %v167
    %v788 = vunpack.c.l.b16 %v168
    %v789 = vunpack.c.h.b16 %v168
    %v790 = vunpack.c.l.b16 %v169
    %v791 = vunpack.c.h.b16 %v169
    %v792 = vunpack.c.l.b16 %v170
    %v793 = vunpack.c.h.b16 %v170
    %v794 = vunpack.c.l.b16 %v171
    %v795 = vunpack.c.h.b16 %v171
    %v796 = vunpack.c.l.b16 %v172
    %v797 = vunpack.c.h.b16 %v172
    %v798 = vunpack.c.l.b16 %v173
    %v799 = vunpack.c.h.b16 %v173
    %v800 = vunpack.c.l.b16 %v174
    %v801 = vunpack.c.h.b16 %v174
    %v802 = vunpack.c.l.b16 %v175
    %v803 = vunpack.c.h.b16 %v175
    %v804 = vunpack.c.l.b16 %v176
    %v805 = vunpack.c.h.b16 %v176
    %v806 = vunpack.c.l.b16 %v177
    %v807 = vunpack.c.h.b16 %v177
    %v808 = vunpack.c.l.b16 %v178
    %v809 = vunpack.c.h.b16 %v178
    %v810 = vunpack.c.l.b16 %v179
    %v811 = vunpack.c.h.b16 %v179
    %v812 = vunpack.c.l.b16 %v180
    %v813 = vunpack.c.h.b16 %v180
    %v814 = vunpack.c.l.b16 %v181
    %v815 = vunpack.c.h.b16 %v181
    %v816 = vunpack.c.l.b16 %v182
    %v817 = vunpack.c.h.b16 %v182
    %v818 = vunpack.c.l.b16 %v183
    %v819 = vunpack.c.h.b16 %v183
    %v820 = vunpack.c.l.b16 %v184
    %v821 = vunpack.c.h.b16 %v184
    %v822 = vunpack.c.l.b16 %v185
    %v823 = vunpack.c.h.b16 %v185
    %v824 = vunpack.c.l.b16 %v186
    %v825 = vunpack.c.h.b16 %v186
    %v826 = vunpack.c.l.b16 %v187
    %v827 = vunpack.c.h.b16 %v187
    %v828 = vunpack.c.l.b16 %v188
    %v829 = vunpack.c.h.b16 %v188
    %v830 = vunpack.c.l.b16 %v189
    %v831 = vunpack.c.h.b16 %v189
    %v832 = vunpack.c.l.b16 %v190
    %v833 = vunpack.c.h.b16 %v190
    %v834 = vunpack.c.l.b16 %v191
    %v835 = vunpack.c.h.b16 %v191
    %v836 = vunpack.c.l.b16 %v192
    %v837 = vunpack.c.h.b16 %v192
    %v838 = vunpack.c.l.b16 %v193
    %v839 = vunpack.c.h.b16 %v193
    %v840 = vunpack.c.l.b16 %v194
    %v841 = vunpack.c.h.b16 %v194
    %v842 = vunpack.c.l.b16 %v195
    %v843 = vunpack.c.h.b16 %v195
    %v844 = vunpack.c.l.b16 %v196
    %v845 = vunpack.c.h.b16 %v196
    %v846 = vunpack.c.l.b16 %v197
    %v847 = vunpack.c.h.b16 %v197
    %v848 = vunpack.c.l.b16 %v198
    %v849 = vunpack.c.h.b16 %v198
    %v850 = vunpack.c.l.b16 %v199
    %v851 = vunpack.c.h.b16 %v199
    %v852 = vunpack.c.l.b16 %v200
    %v853 = vunpack.c.h.b16 %v200
    %v854 = vunpack.c.l.b16 %v201
    %v855 = vunpack.c.h.b16 %v201
    %v856 = vunpack.c.l.b16 %v202
    %v857 = vunpack.c.h.b16 %v202
    %v858 = vunpack.c.l.b16 %v203
    %v859 = vunpack.c.h.b16 %v203
    %v860 = vunpack.c.l.b16 %v204
    %v861 = vunpack.c.h.b16 %v204
    %v862 = vunpack.c.l.b16 %v205
    %v863 = vunpack.c.h.b16 %v205
    %v864 = vunpack.c.l.b16 %v206
    %v865 = vunpack.c.h.b16 %v206
    %v866 = vunpack.c.l.b16 %v207
    %v867 = vunpack.c.h.b16 %v207
    %v868 = vunpack.c.l.b16 %v208
    %v869 = vunpack.c.h.b16 %v208
    %v870 = vunpack.c.l.b16 %v209
    %v871 = vunpack.c.h.b16 %v209
    %v872 = vunpack.c.l.b16 %v210
    %v873 = vunpack.c.h.b16 %v210
    %v874 = vunpack.c.l.b16 %v211
    %v875 = vunpack.c.h.b16 %v211
    %v876 = vunpack.c.l.b16 %v212
    %v877 = vunpack.c.h.b16 %v212
    %v878 = vunpack.c.l.b16 %v213
    %v879 = vunpack.c.h.b16 %v213
    %v880 = vunpack.c.l.b16 %v214
    %v881 = vunpack.c.h.b16 %v214
    %v882 = vunpack.c.l.b16 %v215
    %v883 = vunpack.c.h.b16 %v215
    %v884 = vunpack.c.l.b16 %v216
    %v885 = vunpack.c.h.b16 %v216
    %v886 = vunpack.c.l.b16 %v217
    %v887 = vunpack.c.h.b16 %v217
    %v888 = vunpack.c.l.b16 %v218
    %v889 = vunpack.c.h.b16 %v218
    %v890 = vunpack.c.l.b16 %v219
    %v891 = vunpack.c.h.b16 %v219
    %v892 = vunpack.c.l.b16 %v220
    %v893 = vunpack.c.h.b16 %v220
    %v894 = vunpack.c.l.b16 %v221
    %v895 = vunpack.c.h.b16 %v221
    %v896 = vunpack.c.l.b16 %v222
    %v897 = vunpack.c.h.b16 %v222
    %v898 = vunpack.c.l.b16 %v223
    %v899 = vunpack.c.h.b16 %v223
    %v900 = vunpack.c.l.b16 %v224
    %v901 = vunpack.c.h.b16 %v224
    %v902 = vunpack.c.l.b16 %v225
    %v903 = vunpack.c.h.b16 %v225
    %v904 = vunpack.c.l.b16 %v226
    %v905 = vunpack.c.h.b16 %v226
    %v906 = vunpack.c.l.b16 %v227
    %v907 = vunpack.c.h.b16 %v227
    %v908 = vunpack.c.l.b16 %v228
    %v909 = vunpack.c.h.b16 %v228
    %v910 = vunpack.c.l.b16 %v229
    %v911 = vunpack.c.h.b16 %v229
    %v912 = vunpack.c.l.b16 %v230
    %v913 = vunpack.c.h.b16 %v230
    %v914 = vunpack.c.l.b16 %v231
    %v915 = vunpack.c.h.b16 %v231
    %v916 = vunpack.c.l.b16 %v232
    %v917 = vunpack.c.h.b16 %v232
    %v918 = vunpack.c.l.b16 %v233
    %v919 = vunpack.c.h.b16 %v233
    %v920 = vunpack.c.l.b16 %v234
    %v921 = vunpack.c.h.b16 %v234
    %v922 = vunpack.c.l.b16 %v235
    %v923 = vunpack.c.h.b16 %v235
    %v924 = vunpack.c.l.b16 %v236
    %v925 = vunpack.c.h.b16 %v236
    %v926 = vunpack.c.l.b16 %v237
    %v927 = vunpack.c.h.b16 %v237
    %v928 = vunpack.c.l.b16 %v238
    %v929 = vunpack.c.h.b16 %v238
    %v930 = vunpack.c.l.b16 %v239
    %v931 = vunpack.c.h.b16 %v239
    %v932 = vunpack.c.l.b16 %v240
    %v933 = vunpack.c.h.b16 %v240
    %v934 = vunpack.c.l.b16 %v241
    %v935 = vunpack.c.h.b16 %v241
    %v936 = vunpack.c.l.b16 %v242
    %v937 = vunpack.c.h.b16 %v242
    %v938 = vunpack.c.l.b16 %v243
    %v939 = vunpack.c.h.b16 %v243
    %v940 = vunpack.c.l.b16 %v244
    %v941 = vunpack.c.h.b16 %v244
    %v942 = vunpack.c.l.b16 %v245
    %v943 = vunpack.c.h.b16 %v245
    %v944 = vunpack.c.l.b16 %v246
    %v945 = vunpack.c.h.b16 %v246
    %v946 = vunpack.c.l.b16 %v247
    %v947 = vunpack.c.h.b16 %v247
    %v948 = vunpack.c.l.b16 %v248
    %v949 = vunpack.c.h.b16 %v248
    %v950 = vunpack.c.l.b16 %v249
    %v951 = vunpack.c.h.b16 %v249
    %v952 = vunpack.c.l.b16 %v250
    %v953 = vunpack.c.h.b16 %v250
    %v954 = vunpack.c.l.b16 %v251
    %v955 = vunpack.c.h.b16 %v251
    %v956 = vunpack.c.l.b16 %v252
    %v957 = vunpack.c.h.b16 %v252
    %v958 = vunpack.c.l.b16 %v253
    %v959 = vunpack.c.h.b16 %v253
    %v960 = vunpack.c.l.b16 %v254
    %v961 = vunpack.c.h.b16 %v254
    %v962 = vunpack.c.l.b16 %v255
    %v963 = vunpack.c.h.b16 %v255
    %v964 = vunpack.c.l.b16 %v256
    %v965 = vunpack.c.h.b16 %v256
    %v966 = vunpack.c.l.b16 %v257
    %v967 = vunpack.c.h.b16 %v257
    %v968 = vunpack.c.l.b16 %v258
    %v969 = vunpack.c.h.b16 %v258
    %v970 = vunpack.c.l.b16 %v259
    %v971 = vunpack.c.h.b16 %v259
    %v972 = vunpack.c.l.b16 %v260
    %v973 = vunpack.c.h.b16 %v260
    %v974 = vunpack.c.l.b16 %v261
    %v975 = vunpack.c.h.b16 %v261
    %v976 = vunpack.c.l.b16 %v262
    %v977 = vunpack.c.h.b16 %v262
    %v978 = vunpack.c.l.b16 %v263
    %v979 = vunpack.c.h.b16 %v263
    %v980 = vunpack.c.l.b16 %v264
    %v981 = vunpack.c.h.b16 %v264
    %v982 = vunpack.c.l.b16 %v265
    %v983 = vunpack.c.h.b16 %v265
    %v984 = vunpack.c.l.b16 %v266
    %v985 = vunpack.c.h.b16 %v266
    %v986 = vunpack.c.l.b16 %v267
    %v987 = vunpack.c.h.b16 %v267
    %v988 = vunpack.c.l.b16 %v268
    %v989 = vunpack.c.h.b16 %v268
    %v990 = vunpack.c.l.b16 %v269
    %v991 = vunpack.c.h.b16 %v269
    %v992 = vunpack.c.l.b16 %v270
    %v993 = vunpack.c.h.b16 %v270
    %v994 = vunpack.c.l.b16 %v271
    %v995 = vunpack.c.h.b16 %v271
    %v996 = vunpack.c.l.b16 %v272
    %v997 = vunpack.c.h.b16 %v272
    %v998 = vunpack.c.l.b16 %v273
    %v999 = vunpack.c.h.b16 %v273
    %v1000 = vunpack.c.l.b16 %v274
    %v1001 = vunpack.c.h.b16 %v274
    %v1002 = vunpack.c.l.b16 %v275
    %v1003 = vunpack.c.h.b16 %v275
    %v1004 = vunpack.c.l.b16 %v276
    %v1005 = vunpack.c.h.b16 %v276
    %v1006 = vunpack.c.l.b16 %v277
    %v1007 = vunpack.c.h.b16 %v277
    %v1008 = vunpack.c.l.b16 %v278
    %v1009 = vunpack.c.h.b16 %v278
    %v1010 = vunpack.c.l.b16 %v279
    %v1011 = vunpack.c.h.b16 %v279
    %v1012 = vunpack.c.l.b16 %v280
    %v1013 = vunpack.c.h.b16 %v280
    %v1014 = vunpack.c.l.b16 %v281
    %v1015 = vunpack.c.h.b16 %v281
    %v1016 = vunpack.c.l.b16 %v282
    %v1017 = vunpack.c.h.b16 %v282
    %v1018 = vunpack.c.l.b16 %v283
    %v1019 = vunpack.c.h.b16 %v283
    %v1020 = vunpack.c.l.b16 %v284
    %v1021 = vunpack.c.h.b16 %v284
    %v1022 = vunpack.c.l.b16 %v285
    %v1023 = vunpack.c.h.b16 %v285
    %v1024 = vunpack.c.l.b16 %v286
    %v1025 = vunpack.c.h.b16 %v286
    %v1026 = vunpack.c.l.b16 %v287
    %v1027 = vunpack.c.h.b16 %v287
    %v1028 = vunpack.c.l.b16 %v288
    %v1029 = vunpack.c.h.b16 %v288
    %v1030 = vunpack.c.l.b16 %v289
    %v1031 = vunpack.c.h.b16 %v289
    %v1032 = vunpack.c.l.b16 %v290
    %v1033 = vunpack.c.h.b16 %v290
    %v1034 = vunpack.c.l.b16 %v291
    %v1035 = vunpack.c.h.b16 %v291
    %v1036 = vunpack.c.l.b16 %v292
    %v1037 = vunpack.c.h.b16 %v292
    %v1038 = vunpack.c.l.b16 %v293
    %v1039 = vunpack.c.h.b16 %v293
    %v1040 = vunpack.c.l.b16 %v294
    %v1041 = vunpack.c.h.b16 %v294
    %v1042 = vunpack.c.l.b16 %v295
    %v1043 = vunpack.c.h.b16 %v295
    %v1044 = vunpack.c.l.b16 %v296
    %v1045 = vunpack.c.h.b16 %v296
    %v1046 = vunpack.c.l.b16 %v297
    %v1047 = vunpack.c.h.b16 %v297
    %v1048 = vunpack.c.l.b16 %v298
    %v1049 = vunpack.c.h.b16 %v298
    %v1050 = vunpack.c.l.b16 %v299
    %v1051 = vunpack.c.h.b16 %v299
    %v1052 = vunpack.c.l.b16 %v300
    %v1053 = vunpack.c.h.b16 %v300
    %v1054 = vunpack.c.l.b16 %v301
    %v1055 = vunpack.c.h.b16 %v301
    %v1056 = vunpack.c.l.b16 %v302
    %v1057 = vunpack.c.h.b16 %v302
    %v1058 = vunpack.c.l.b16 %v303
    %v1059 = vunpack.c.h.b16 %v303
    %v1060 = vunpack.c.l.b16 %v304
    %v1061 = vunpack.c.h.b16 %v304
    %v1062 = vunpack.c.l.b16 %v305
    %v1063 = vunpack.c.h.b16 %v305
    %v1064 = vunpack.c.l.b16 %v306
    %v1065 = vunpack.c.h.b16 %v306
    %v1066 = vunpack.c.l.b16 %v307
    %v1067 = vunpack.c.h.b16 %v307
    %v1068 = vunpack.c.l.b16 %v308
    %v1069 = vunpack.c.h.b16 %v308
    %v1070 = vunpack.c.l.b16 %v309
    %v1071 = vunpack.c.h.b16 %v309
    %v1072 = vunpack.c.l.b16 %v310
    %v1073 = vunpack.c.h.b16 %v310
    %v1074 = vunpack.c.l.b16 %v311
    %v1075 = vunpack.c.h.b16 %v311
    %v1076 = vunpack.c.l.b16 %v312
    %v1077 = vunpack.c.h.b16 %v312
    %v1078 = vunpack.c.l.b16 %v313
    %v1079 = vunpack.c.h.b16 %v313
    %v1080 = vunpack.c.l.b16 %v314
    %v1081 = vunpack.c.h.b16 %v314
    %v1082 = vunpack.c.l.b16 %v315
    %v1083 = vunpack.c.h.b16 %v315
    %v1084 = vunpack.c.l.b16 %v316
    %v1085 = vunpack.c.h.b16 %v316
    %v1086 = vunpack.c.l.b16 %v317
    %v1087 = vunpack.c.h.b16 %v317
    %v1088 = vunpack.c.l.b16 %v318
    %v1089 = vunpack.c.h.b16 %v318
    %v1090 = vunpack.c.l.b16 %v319
    %v1091 = vunpack.c.h.b16 %v319
    %v1092 = vunpack.c.l.b16 %v320
    %v1093 = vunpack.c.h.b16 %v320
    %v1094 = vunpack.c.l.b16 %v321
    %v1095 = vunpack.c.h.b16 %v321
    %v1096 = vunpack.c.l.b16 %v322
    %v1097 = vunpack.c.h.b16 %v322
    %v1098 = vunpack.c.l.b16 %v323
    %v1099 = vunpack.c.h.b16 %v323
    %v1100 = vunpack.c.l.b16 %v324
    %v1101 = vunpack.c.h.b16 %v324
    %v1102 = vunpack.c.l.b16 %v325
    %v1103 = vunpack.c.h.b16 %v325
    %v1104 = vunpack.c.l.b16 %v326
    %v1105 = vunpack.c.h.b16 %v326
    %v1106 = vunpack.c.l.b16 %v327
    %v1107 = vunpack.c.h.b16 %v327
    %v1108 = vunpack.c.l.b16 %v328
    %v1109 = vunpack.c.h.b16 %v328
    %v1110 = vunpack.c.l.b16 %v329
    %v1111 = vunpack.c.h.b16 %v329
    %v1112 = vunpack.c.l.b16 %v330
    %v1113 = vunpack.c.h.b16 %v330
    %v1114 = vunpack.c.l.b16 %v331
    %v1115 = vunpack.c.h.b16 %v331
    %v1116 = vunpack.c.l.b16 %v332
    %v1117 = vunpack.c.h.b16 %v332
    %v1118 = vunpack.c.l.b16 %v333
    %v1119 = vunpack.c.h.b16 %v333
    %v1120 = vunpack.c.l.b16 %v334
    %v1121 = vunpack.c.h.b16 %v334
    %v1122 = vunpack.c.l.b16 %v335
    %v1123 = vunpack.c.h.b16 %v335
    %v1124 = vunpack.c.l.b16 %v336
    %v1125 = vunpack.c.h.b16 %v336
    %v1126 = vunpack.c.l.b16 %v337
    %v1127 = vunpack.c.h.b16 %v337
    %v1128 = vpack.c.b16 %v620, %v616
    %v1129 = vpack.c.b16 %v621, %v617
    %v1130 = vpack.c.b16 %v622, %v618
    %v1131 = vpack.c.b16 %v623, %v619
    %v1132 = vpack.c.b16 %v628, %v624
    %v1133 = vpack.c.b16 %v629, %v625
    %v1134 = vpack.c.b16 %v630, %v626
    %v1135 = vpack.c.b16 %v631, %v627
    %v1136 = vpack.c.b16 %v636, %v632
    %v1137 = vpack.c.b16 %v637, %v633
    %v1138 = vpack.c.b16 %v638, %v634
    %v1139 = vpack.c.b16 %v639, %v635
    %v1140 = vpack.c.b16 %v644, %v640
    %v1141 = vpack.c.b16 %v645, %v641
    %v1142 = vpack.c.b16 %v646, %v642
    %v1143 = vpack.c.b16 %v647, %v643
    %v1144 = vpack.c.b16 %v652, %v648
    %v1145 = vpack.c.b16 %v653, %v649
    %v1146 = vpack.c.b16 %v654, %v650
    %v1147 = vpack.c.b16 %v655, %v651
    %v1148 = vpack.c.b16 %v660, %v656
    %v1149 = vpack.c.b16 %v661, %v657
    %v1150 = vpack.c.b16 %v662, %v658
    %v1151 = vpack.c.b16 %v663, %v659
    %v1152 = vpack.c.b16 %v668, %v664
    %v1153 = vpack.c.b16 %v669, %v665
    %v1154 = vpack.c.b16 %v670, %v666
    %v1155 = vpack.c.b16 %v671, %v667
    %v1156 = vpack.c.b16 %v676, %v672
    %v1157 = vpack.c.b16 %v677, %v673
    %v1158 = vpack.c.b16 %v678, %v674
    %v1159 = vpack.c.b16 %v679, %v675
    %v1160 = vpack.c.b16 %v684, %v680
    %v1161 = vpack.c.b16 %v685, %v681
    %v1162 = vpack.c.b16 %v686, %v682
    %v1163 = vpack.c.b16 %v687, %v683
    %v1164 = vpack.c.b16 %v692, %v688
    %v1165 = vpack.c.b16 %v693, %v689
    %v1166 = vpack.c.b16 %v694, %v690
    %v1167 = vpack.c.b16 %v695, %v691
    %v1168 = vpack.c.b16 %v700, %v696
    %v1169 = vpack.c.b16 %v701, %v697
    %v1170 = vpack.c.b16 %v702, %v698
    %v1171 = vpack.c.b16 %v703, %v699
    %v1172 = vpack.c.b16 %v708, %v704
    %v1173 = vpack.c.b16 %v709, %v705
    %v1174 = vpack.c.b16 %v710, %v706
    %v1175 = vpack.c.b16 %v711, %v707
    %v1176 = vpack.c.b16 %v716, %v712
    %v1177 = vpack.c.b16 %v717, %v713
    %v1178 = vpack.c.b16 %v718, %v714
    %v1179 = vpack.c.b16 %v719, %v715
    %v1180 = vpack.c.b16 %v724, %v720
    %v1181 = vpack.c.b16 %v725, %v721
    %v1182 = vpack.c.b16 %v726, %v722
    %v1183 = vpack.c.b16 %v727, %v723
    %v1184 = vpack.c.b16 %v732, %v728
    %v1185 = vpack.c.b16 %v733, %v729
    %v1186 = vpack.c.b16 %v734, %v730
    %v1187 = vpack.c.b16 %v735, %v731
    %v1188 = vpack.c.b16 %v740, %v736
    %v1189 = vpack.c.b16 %v741, %v737
    %v1190 = vpack.c.b16 %v742, %v738
    %v1191 = vpack.c.b16 %v743, %v739
    %v1192 = vpack.c.b16 %v748, %v744
    %v1193 = vpack.c.b16 %v749, %v745
    %v1194 = vpack.c.b16 %v750, %v746
    %v1195 = vpack.c.b16 %v751, %v747
    %v1196 = vpack.c.b16 %v756, %v752
    %v1197 = vpack.c.b16 %v757, %v753
    %v1198 = vpack.c.b16 %v758, %v754
    %v1199 = vpack.c.b16 %v759, %v755
    %v1200 = vpack.c.b16 %v764, %v760
    %v1201 = vpack.c.b16 %v765, %v761
    %v1202 = vpack.c.b16 %v766, %v762
    %v1203 = vpack.c.b16 %v767, %v763
    %v1204 = vpack.c.b16 %v772, %v768
    %v1205 = vpack.c.b16 %v773, %v769
    %v1206 = vpack.c.b16 %v774, %v770
    %v1207 = vpack.c.b16 %v775, %v771
    %v1208 = vpack.c.b16 %v780, %v776
    %v1209 = vpack.c.b16 %v781, %v777
    %v1210 = vpack.c.b16 %v782, %v778
    %v1211 = vpack.c.b16 %v783, %v779
    %v1212 = vpack.c.b16 %v788, %v784
    %v1213 = vpack.c.b16 %v789, %v785
    %v1214 = vpack.c.b16 %v790, %v786
    %v1215 = vpack.c.b16 %v791, %v787
    %v1216 = vpack.c.b16 %v796, %v792
    %v1217 = vpack.c.b16 %v797, %v793
    %v1218 = vpack.c.b16 %v798, %v794
    %v1219 = vpack.c.b16 %v799, %v795
    %v1220 = vpack.c.b16 %v804, %v800
    %v1221 = vpack.c.b16 %v805, %v801
    %v1222 = vpack.c.b16 %v806, %v802
    %v1223 = vpack.c.b16 %v807, %v803
    %v1224 = vpack.c.b16 %v812, %v808
    %v1225 = vpack.c.b16 %v813, %v809
    %v1226 = vpack.c.b16 %v814, %v810
    %v1227 = vpack.c.b16 %v815, %v811
    %v1228 = vpack.c.b16 %v820, %v816
    %v1229 = vpack.c.b16 %v821, %v817
    %v1230 = vpack.c.b16 %v822, %v818
    %v1231 = vpack.c.b16 %v823, %v819
    %v1232 = vpack.c.b16 %v828, %v824
    %v1233 = vpack.c.b16 %v829, %v825
    %v1234 = vpack.c.b16 %v830, %v826
    %v1235 = vpack.c.b16 %v831, %v827
    %v1236 = vpack.c.b16 %v836, %v832
    %v1237 = vpack.c.b16 %v837, %v833
    %v1238 = vpack.c.b16 %v838, %v834
    %v1239 = vpack.c.b16 %v839, %v835
    %v1240 = vpack.c.b16 %v844, %v840
    %v1241 = vpack.c.b16 %v845, %v841
    %v1242 = vpack.c.b16 %v846, %v842
    %v1243 = vpack.c.b16 %v847, %v843
    %v1244 = vpack.c.b16 %v852, %v848
    %v1245 = vpack.c.b16 %v853, %v849
    %v1246 = vpack.c.b16 %v854, %v850
    %v1247 = vpack.c.b16 %v855, %v851
    %v1248 = vpack.c.b16 %v860, %v856
    %v1249 = vpack.c.b16 %v861, %v857
    %v1250 = vpack.c.b16 %v862, %v858
    %v1251 = vpack.c.b16 %v863, %v859
    %v1252 = vpack.c.b16 %v868, %v864
    %v1253 = vpack.c.b16 %v869, %v865
    %v1254 = vpack.c.b16 %v870, %v866
    %v1255 = vpack.c.b16 %v871, %v867
    %v1256 = vpack.c.b16 %v876, %v872
    %v1257 = vpack.c.b16 %v877, %v873
    %v1258 = vpack.c.b16 %v878, %v874
    %v1259 = vpack.c.b16 %v879, %v875
    %v1260 = vpack.c.b16 %v884, %v880
    %v1261 = vpack.c.b16 %v885, %v881
    %v1262 = vpack.c.b16 %v886, %v882
    %v1263 = vpack.c.b16 %v887, %v883
    %v1264 = vpack.c.b16 %v892, %v888
    %v1265 = vpack.c.b16 %v893, %v889
    %v1266 = vpack.c.b16 %v894, %v890
    %v1267 = vpack.c.b16 %v895, %v891
    %v1268 = vpack.c.b16 %v900, %v896
    %v1269 = vpack.c.b16 %v901, %v897
    %v1270 = vpack.c.b16 %v902, %v898
    %v1271 = vpack.c.b16 %v903, %v899
    %v1272 = vpack.c.b16 %v908, %v904
    %v1273 = vpack.c.b16 %v909, %v905
    %v1274 = vpack.c.b16 %v910, %v906
    %v1275 = vpack.c.b16 %v911, %v907
    %v1276 = vpack.c.b16 %v916, %v912
    %v1277 = vpack.c.b16 %v917, %v913
    %v1278 = vpack.c.b16 %v918, %v914
    %v1279 = vpack.c.b16 %v919, %v915
    %v1280 = vpack.c.b16 %v924, %v920
    %v1281 = vpack.c.b16 %v925, %v921
    %v1282 = vpack.c.b16 %v926, %v922
    %v1283 = vpack.c.b16 %v927, %v923
    %v1284 = vpack.c.b16 %v932, %v928
    %v1285 = vpack.c.b16 %v933, %v929
    %v1286 = vpack.c.b16 %v934, %v930
    %v1287 = vpack.c.b16 %v935, %v931
    %v1288 = vpack.c.b16 %v940, %v936
    %v1289 = vpack.c.b16 %v941, %v937
    %v1290 = vpack.c.b16 %v942, %v938
    %v1291 = vpack.c.b16 %v943, %v939
    %v1292 = vpack.c.b16 %v948, %v944
    %v1293 = vpack.c.b16 %v949, %v945
    %v1294 = vpack.c.b16 %v950, %v946
    %v1295 = vpack.c.b16 %v951, %v947
    %v1296 = vpack.c.b16 %v956, %v952
    %v1297 = vpack.c.b16 %v957, %v953
    %v1298 = vpack.c.b16 %v958, %v954
    %v1299 = vpack.c.b16 %v959, %v955
    %v1300 = vpack.c.b16 %v964, %v960
    %v1301 = vpack.c.b16 %v965, %v961
    %v1302 = vpack.c.b16 %v966, %v962
    %v1303 = vpack.c.b16 %v967, %v963
    %v1304 = vpack.c.b16 %v972, %v968
    %v1305 = vpack.c.b16 %v973, %v969
    %v1306 = vpack.c.b16 %v974, %v970
    %v1307 = vpack.c.b16 %v975, %v971
    %v1308 = vpack.c.b16 %v980, %v976
    %v1309 = vpack.c.b16 %v981, %v977
    %v1310 = vpack.c.b16 %v982, %v978
    %v1311 = vpack.c.b16 %v983, %v979
    %v1312 = vpack.c.b16 %v988, %v984
    %v1313 = vpack.c.b16 %v989, %v985
    %v1314 = vpack.c.b16 %v990, %v986
    %v1315 = vpack.c.b16 %v991, %v987
    %v1316 = vpack.c.b16 %v996, %v992
    %v1317 = vpack.c.b16 %v997, %v993
    %v1318 = vpack.c.b16 %v998, %v994
    %v1319 = vpack.c.b16 %v999, %v995
    %v1320 = vpack.c.b16 %v1004, %v1000
    %v1321 = vpack.c.b16 %v1005, %v1001
    %v1322 = vpack.c.b16 %v1006, %v1002
    %v1323 = vpack.c.b16 %v1007, %v1003
    %v1324 = vpack.c.b16 %v1012, %v1008
    %v1325 = vpack.c.b16 %v1013, %v1009
    %v1326 = vpack.c.b16 %v1014, %v1010
    %v1327 = vpack.c.b16 %v1015, %v1011
    %v1328 = vpack.c.b16 %v1020, %v1016
    %v1329 = vpack.c.b16 %v1021, %v1017
    %v1330 = vpack.c.b16 %v1022, %v1018
    %v1331 = vpack.c.b16 %v1023, %v1019
    %v1332 = vpack.c.b16 %v1028, %v1024
    %v1333 = vpack.c.b16 %v1029, %v1025
    %v1334 = vpack.c.b16 %v1030, %v1026
    %v1335 = vpack.c.b16 %v1031, %v1027
    %v1336 = vpack.c.b16 %v1036, %v1032
    %v1337 = vpack.c.b16 %v1037, %v1033
    %v1338 = vpack.c.b16 %v1038, %v1034
    %v1339 = vpack.c.b16 %v1039, %v1035
    %v1340 = vpack.c.b16 %v1044, %v1040
    %v1341 = vpack.c.b16 %v1045, %v1041
    %v1342 = vpack.c.b16 %v1046, %v1042
    %v1343 = vpack.c.b16 %v1047, %v1043
    %v1344 = vpack.c.b16 %v1052, %v1048
    %v1345 = vpack.c.b16 %v1053, %v1049
    %v1346 = vpack.c.b16 %v1054, %v1050
    %v1347 = vpack.c.b16 %v1055, %v1051
    %v1348 = vpack.c.b16 %v1060, %v1056
    %v1349 = vpack.c.b16 %v1061, %v1057
    %v1350 = vpack.c.b16 %v1062, %v1058
    %v1351 = vpack.c.b16 %v1063, %v1059
    %v1352 = vpack.c.b16 %v1068, %v1064
    %v1353 = vpack.c.b16 %v1069, %v1065
    %v1354 = vpack.c.b16 %v1070, %v1066
    %v1355 = vpack.c.b16 %v1071, %v1067
    %v1356 = vpack.c.b16 %v1076, %v1072
    %v1357 = vpack.c.b16 %v1077, %v1073
    %v1358 = vpack.c.b16 %v1078, %v1074
    %v1359 = vpack.c.b16 %v1079, %v1075
    %v1360 = vpack.c.b16 %v1084, %v1080
    %v1361 = vpack.c.b16 %v1085, %v1081
    %v1362 = vpack.c.b16 %v1086, %v1082
    %v1363 = vpack.c.b16 %v1087, %v1083
    %v1364 = vpack.c.b16 %v1092, %v1088
    %v1365 = vpack.c.b16 %v1093, %v1089
    %v1366 = vpack.c.b16 %v1094, %v1090
    %v1367 = vpack.c.b16 %v1095, %v1091
    %v1368 = vpack.c.b16 %v1100, %v1096
    %v1369 = vpack.c.b16 %v1101, %v1097
    %v1370 = vpack.c.b16 %v1102, %v1098
    %v1371 = vpack.c.b16 %v1103, %v1099
    %v1372 = vpack.c.b16 %v1108, %v1104
    %v1373 = vpack.c.b16 %v1109, %v1105
    %v1374 = vpack.c.b16 %v1110, %v1106
    %v1375 = vpack.c.b16 %v1111, %v1107
    %v1376 = vpack.c.b16 %v1116, %v1112
    %v1377 = vpack.c.b16 %v1117, %v1113
    %v1378 = vpack.c.b16 %v1118, %v1114
    %v1379 = vpack.c.b16 %v1119, %v1115
    %v1380 = vpack.c.b16 %v1124, %v1120
    %v1381 = vpack.c.b16 %v1125, %v1121
    %v1382 = vpack.c.b16 %v1126, %v1122
    %v1383 = vpack.c.b16 %v1127, %v1123
    %1640 = vmatprep.subr.bf16.mxu0 %v1129
    %1641 = vmatpush1.bf16.msra.mxu0 %v1128
    %1642 = vmatprep.subr.bf16.mxu0 %v1133
    %1643 = vmatpush1.bf16.msra.mxu0 %v1132
    %1644 = vmatprep.subr.bf16.mxu0 %v1137
    %1645 = vmatpush1.bf16.msra.mxu0 %v1136
    %1646 = vmatprep.subr.bf16.mxu0 %v1141
    %1647 = vmatpush1.bf16.msra.mxu0 %v1140
    %1648 = vmatprep.subr.bf16.mxu0 %v1145
    %1649 = vmatpush1.bf16.msra.mxu0 %v1144
    %1650 = vmatprep.subr.bf16.mxu0 %v1149
    %1651 = vmatpush1.bf16.msra.mxu0 %v1148
    %1652 = vmatprep.subr.bf16.mxu0 %v1153
    %1653 = vmatpush1.bf16.msra.mxu0 %v1152
    %1654 = vmatprep.subr.bf16.mxu0 %v1157
    %1655 = vmatpush1.bf16.msra.mxu0 %v1156
    %1656 = vmatprep.subr.bf16.mxu0 %v1161
    %1657 = vmatpush1.bf16.msra.mxu0 %v1160
    %1658 = vmatprep.subr.bf16.mxu0 %v1165
    %1659 = vmatpush1.bf16.msra.mxu0 %v1164
    %1660 = vmatprep.subr.bf16.mxu0 %v1169
    %1661 = vmatpush1.bf16.msra.mxu0 %v1168
    %1662 = vmatprep.subr.bf16.mxu0 %v1173
    %1663 = vmatpush1.bf16.msra.mxu0 %v1172
    %1664 = vmatprep.subr.bf16.mxu0 %v1177
    %1665 = vmatpush1.bf16.msra.mxu0 %v1176
    %1666 = vmatprep.subr.bf16.mxu0 %v1181
    %1667 = vmatpush1.bf16.msra.mxu0 %v1180
    %1668 = vmatprep.subr.bf16.mxu0 %v1185
    %1669 = vmatpush1.bf16.msra.mxu0 %v1184
    %1670 = vmatprep.subr.bf16.mxu0 %v1189
    %1671 = vmatpush1.bf16.msra.mxu0 %v1188
    %1672 = vmatprep.mubr.bf16.mxu0 %v75
    %1673 = vmatmul.mubr.bf16.gmra.mrb[0].mxu0 %v74
    %v1674 = vpop.f32.mrb[0].mxu0
    %v1675 = vadd.f32 %v343, %v1674
    %v1676 = vpop.f32.mrb[0].mxu0
    %v1677 = vadd.f32 %v347, %v1676
    %v1678 = vpop.f32.mrb[0].mxu0
    %v1679 = vpop.f32.mrb[0].mxu0
    %1680 = vdwg.mxu0
    %1681 = vmatprep.subr.bf16.mxu0 %v1193
    %1682 = vmatpush1.bf16.msra.mxu0 %v1192
    %1683 = vmatprep.subr.bf16.mxu0 %v1197
    %1684 = vmatpush1.bf16.msra.mxu0 %v1196
    %1685 = vmatprep.subr.bf16.mxu0 %v1201
    %1686 = vmatpush1.bf16.msra.mxu0 %v1200
    %1687 = vmatprep.subr.bf16.mxu0 %v1205
    %1688 = vmatpush1.bf16.msra.mxu0 %v1204
    %1689 = vmatprep.subr.bf16.mxu0 %v1209
    %1690 = vmatpush1.bf16.msra.mxu0 %v1208
    %1691 = vmatprep.subr.bf16.mxu0 %v1213
    %1692 = vmatpush1.bf16.msra.mxu0 %v1212
    %1693 = vmatprep.subr.bf16.mxu0 %v1217
    %1694 = vmatpush1.bf16.msra.mxu0 %v1216
    %1695 = vmatprep.subr.bf16.mxu0 %v1221
    %1696 = vmatpush1.bf16.msra.mxu0 %v1220
    %1697 = vmatprep.subr.bf16.mxu0 %v1225
    %1698 = vmatpush1.bf16.msra.mxu0 %v1224
    %1699 = vmatprep.subr.bf16.mxu0 %v1229
    %1700 = vmatpush1.bf16.msra.mxu0 %v1228
    %1701 = vmatprep.subr.bf16.mxu0 %v1233
    %1702 = vmatpush1.bf16.msra.mxu0 %v1232
    %1703 = vmatprep.subr.bf16.mxu0 %v1237
    %1704 = vmatpush1.bf16.msra.mxu0 %v1236
    %1705 = vmatprep.subr.bf16.mxu0 %v1241
    %1706 = vmatpush1.bf16.msra.mxu0 %v1240
    %1707 = vmatprep.subr.bf16.mxu0 %v1245
    %1708 = vmatpush1.bf16.msra.mxu0 %v1244
    %1709 = vmatprep.subr.bf16.mxu0 %v1249
    %1710 = vmatpush1.bf16.msra.mxu0 %v1248
    %1711 = vmatprep.subr.bf16.mxu0 %v1253
    %1712 = vmatpush1.bf16.msra.mxu0 %v1252
    %1713 = vmatprep.mubr.bf16.mxu0 %v77
    %1714 = vmatmul.mubr.bf16.gmra.mrb[0].mxu0 %v76
    %v1715 = vpop.f32.mrb[0].mxu0
    %v1716 = vadd.f32 %v1675, %v1715
    %v1717 = vpop.f32.mrb[0].mxu0
    %v1718 = vadd.f32 %v1677, %v1717
    %v1719 = vpop.f32.mrb[0].mxu0
    %v1720 = vpop.f32.mrb[0].mxu0
    %1721 = vdwg.mxu0
    %1722 = vmatprep.subr.bf16.mxu0 %v1257
    %1723 = vmatpush1.bf16.msra.mxu0 %v1256
    %1724 = vmatprep.subr.bf16.mxu0 %v1261
    %1725 = vmatpush1.bf16.msra.mxu0 %v1260
    %1726 = vmatprep.subr.bf16.mxu0 %v1265
    %1727 = vmatpush1.bf16.msra.mxu0 %v1264
    %1728 = vmatprep.subr.bf16.mxu0 %v1269
    %1729 = vmatpush1.bf16.msra.mxu0 %v1268
    %1730 = vmatprep.subr.bf16.mxu0 %v1273
    %1731 = vmatpush1.bf16.msra.mxu0 %v1272
    %1732 = vmatprep.subr.bf16.mxu0 %v1277
    %1733 = vmatpush1.bf16.msra.mxu0 %v1276
    %1734 = vmatprep.subr.bf16.mxu0 %v1281
    %1735 = vmatpush1.bf16.msra.mxu0 %v1280
    %1736 = vmatprep.subr.bf16.mxu0 %v1285
    %1737 = vmatpush1.bf16.msra.mxu0 %v1284
    %1738 = vmatprep.subr.bf16.mxu0 %v1289
    %1739 = vmatpush1.bf16.msra.mxu0 %v1288
    %1740 = vmatprep.subr.bf16.mxu0 %v1293
    %1741 = vmatpush1.bf16.msra.mxu0 %v1292
    %1742 = vmatprep.subr.bf16.mxu0 %v1297
    %1743 = vmatpush1.bf16.msra.mxu0 %v1296
    %1744 = vmatprep.subr.bf16.mxu0 %v1301
    %1745 = vmatpush1.bf16.msra.mxu0 %v1300
    %1746 = vmatprep.subr.bf16.mxu0 %v1305
    %1747 = vmatpush1.bf16.msra.mxu0 %v1304
    %1748 = vmatprep.subr.bf16.mxu0 %v1309
    %1749 = vmatpush1.bf16.msra.mxu0 %v1308
    %1750 = vmatprep.subr.bf16.mxu0 %v1313
    %1751 = vmatpush1.bf16.msra.mxu0 %v1312
    %1752 = vmatprep.subr.bf16.mxu0 %v1317
    %1753 = vmatpush1.bf16.msra.mxu0 %v1316
    %1754 = vmatprep.mubr.bf16.mxu0 %v79
    %1755 = vmatmul.mubr.bf16.gmra.mrb[0].mxu0 %v78
    %v1756 = vpop.f32.mrb[0].mxu0
    %v1757 = vadd.f32 %v1716, %v1756
    %v1758 = vpop.f32.mrb[0].mxu0
    %v1759 = vadd.f32 %v1718, %v1758
    %v1760 = vpop.f32.mrb[0].mxu0
    %v1761 = vpop.f32.mrb[0].mxu0
    %1762 = vdwg.mxu0
    %1763 = vmatprep.subr.bf16.mxu0 %v1321
    %1764 = vmatpush1.bf16.msra.mxu0 %v1320
    %1765 = vmatprep.subr.bf16.mxu0 %v1325
    %1766 = vmatpush1.bf16.msra.mxu0 %v1324
    %1767 = vmatprep.subr.bf16.mxu0 %v1329
    %1768 = vmatpush1.bf16.msra.mxu0 %v1328
    %1769 = vmatprep.subr.bf16.mxu0 %v1333
    %1770 = vmatpush1.bf16.msra.mxu0 %v1332
    %1771 = vmatprep.subr.bf16.mxu0 %v1337
    %1772 = vmatpush1.bf16.msra.mxu0 %v1336
    %1773 = vmatprep.subr.bf16.mxu0 %v1341
    %1774 = vmatpush1.bf16.msra.mxu0 %v1340
    %1775 = vmatprep.subr.bf16.mxu0 %v1345
    %1776 = vmatpush1.bf16.msra.mxu0 %v1344
    %1777 = vmatprep.subr.bf16.mxu0 %v1349
    %1778 = vmatpush1.bf16.msra.mxu0 %v1348
    %1779 = vmatprep.subr.bf16.mxu0 %v1353
    %1780 = vmatpush1.bf16.msra.mxu0 %v1352
    %1781 = vmatprep.subr.bf16.mxu0 %v1357
    %1782 = vmatpush1.bf16.msra.mxu0 %v1356
    %1783 = vmatprep.subr.bf16.mxu0 %v1361
    %1784 = vmatpush1.bf16.msra.mxu0 %v1360
    %1785 = vmatprep.subr.bf16.mxu0 %v1365
    %1786 = vmatpush1.bf16.msra.mxu0 %v1364
    %1787 = vmatprep.subr.bf16.mxu0 %v1369
    %1788 = vmatpush1.bf16.msra.mxu0 %v1368
    %1789 = vmatprep.subr.bf16.mxu0 %v1373
    %1790 = vmatpush1.bf16.msra.mxu0 %v1372
    %1791 = vmatprep.subr.bf16.mxu0 %v1377
    %1792 = vmatpush1.bf16.msra.mxu0 %v1376
    %1793 = vmatprep.subr.bf16.mxu0 %v1381
    %1794 = vmatpush1.bf16.msra.mxu0 %v1380
    %1795 = vmatprep.mubr.bf16.mxu0 %v81
    %1796 = vmatmul.mubr.bf16.gmra.mrb[0].mxu0 %v80
    %v1797 = vpop.f32.mrb[0].mxu0
    %v1798 = vadd.f32 %v1757, %v1797
    %v1799 = vpop.f32.mrb[0].mxu0
    %v1800 = vadd.f32 %v1759, %v1799
    %v1801 = vpop.f32.mrb[0].mxu0
    %v1802 = vpop.f32.mrb[0].mxu0
    %1803 = vdwg.mxu0
    %1804 = vmatprep.subr.bf16.mxu0 %v1131
    %1805 = vmatpush1.bf16.msra.mxu0 %v1130
    %1806 = vmatprep.subr.bf16.mxu0 %v1135
    %1807 = vmatpush1.bf16.msra.mxu0 %v1134
    %1808 = vmatprep.subr.bf16.mxu0 %v1139
    %1809 = vmatpush1.bf16.msra.mxu0 %v1138
    %1810 = vmatprep.subr.bf16.mxu0 %v1143
    %1811 = vmatpush1.bf16.msra.mxu0 %v1142
    %1812 = vmatprep.subr.bf16.mxu0 %v1147
    %1813 = vmatpush1.bf16.msra.mxu0 %v1146
    %1814 = vmatprep.subr.bf16.mxu0 %v1151
    %1815 = vmatpush1.bf16.msra.mxu0 %v1150
    %1816 = vmatprep.subr.bf16.mxu0 %v1155
    %1817 = vmatpush1.bf16.msra.mxu0 %v1154
    %1818 = vmatprep.subr.bf16.mxu0 %v1159
    %1819 = vmatpush1.bf16.msra.mxu0 %v1158
    %1820 = vmatprep.subr.bf16.mxu0 %v1163
    %1821 = vmatpush1.bf16.msra.mxu0 %v1162
    %1822 = vmatprep.subr.bf16.mxu0 %v1167
    %1823 = vmatpush1.bf16.msra.mxu0 %v1166
    %1824 = vmatprep.subr.bf16.mxu0 %v1171
    %1825 = vmatpush1.bf16.msra.mxu0 %v1170
    %1826 = vmatprep.subr.bf16.mxu0 %v1175
    %1827 = vmatpush1.bf16.msra.mxu0 %v1174
    %1828 = vmatprep.subr.bf16.mxu0 %v1179
    %1829 = vmatpush1.bf16.msra.mxu0 %v1178
    %1830 = vmatprep.subr.bf16.mxu0 %v1183
    %1831 = vmatpush1.bf16.msra.mxu0 %v1182
    %1832 = vmatprep.subr.bf16.mxu0 %v1187
    %1833 = vmatpush1.bf16.msra.mxu0 %v1186
    %1834 = vmatprep.subr.bf16.mxu0 %v1191
    %1835 = vmatpush1.bf16.msra.mxu0 %v1190
    %1836 = vmatprep.mubr.bf16.mxu0 %v75
    %1837 = vmatmul.mubr.bf16.gmra.mrb[0].mxu0 %v74
    %v1838 = vpop.f32.mrb[0].mxu0
    %v1839 = vadd.f32 %v351, %v1838
    %v1840 = vpop.f32.mrb[0].mxu0
    %v1841 = vadd.f32 %v355, %v1840
    %v1842 = vpop.f32.mrb[0].mxu0
    %v1843 = vpop.f32.mrb[0].mxu0
    %1844 = vdwg.mxu0
    %1845 = vmatprep.subr.bf16.mxu0 %v1195
    %1846 = vmatpush1.bf16.msra.mxu0 %v1194
    %1847 = vmatprep.subr.bf16.mxu0 %v1199
    %1848 = vmatpush1.bf16.msra.mxu0 %v1198
    %1849 = vmatprep.subr.bf16.mxu0 %v1203
    %1850 = vmatpush1.bf16.msra.mxu0 %v1202
    %1851 = vmatprep.subr.bf16.mxu0 %v1207
    %1852 = vmatpush1.bf16.msra.mxu0 %v1206
    %1853 = vmatprep.subr.bf16.mxu0 %v1211
    %1854 = vmatpush1.bf16.msra.mxu0 %v1210
    %1855 = vmatprep.subr.bf16.mxu0 %v1215
    %1856 = vmatpush1.bf16.msra.mxu0 %v1214
    %1857 = vmatprep.subr.bf16.mxu0 %v1219
    %1858 = vmatpush1.bf16.msra.mxu0 %v1218
    %1859 = vmatprep.subr.bf16.mxu0 %v1223
    %1860 = vmatpush1.bf16.msra.mxu0 %v1222
    %1861 = vmatprep.subr.bf16.mxu0 %v1227
    %1862 = vmatpush1.bf16.msra.mxu0 %v1226
    %1863 = vmatprep.subr.bf16.mxu0 %v1231
    %1864 = vmatpush1.bf16.msra.mxu0 %v1230
    %1865 = vmatprep.subr.bf16.mxu0 %v1235
    %1866 = vmatpush1.bf16.msra.mxu0 %v1234
    %1867 = vmatprep.subr.bf16.mxu0 %v1239
    %1868 = vmatpush1.bf16.msra.mxu0 %v1238
    %1869 = vmatprep.subr.bf16.mxu0 %v1243
    %1870 = vmatpush1.bf16.msra.mxu0 %v1242
    %1871 = vmatprep.subr.bf16.mxu0 %v1247
    %1872 = vmatpush1.bf16.msra.mxu0 %v1246
    %1873 = vmatprep.subr.bf16.mxu0 %v1251
    %1874 = vmatpush1.bf16.msra.mxu0 %v1250
    %1875 = vmatprep.subr.bf16.mxu0 %v1255
    %1876 = vmatpush1.bf16.msra.mxu0 %v1254
    %1877 = vmatprep.mubr.bf16.mxu0 %v77
    %1878 = vmatmul.mubr.bf16.gmra.mrb[0].mxu0 %v76
    %v1879 = vpop.f32.mrb[0].mxu0
    %v1880 = vadd.f32 %v1839, %v1879
    %v1881 = vpop.f32.mrb[0].mxu0
    %v1882 = vadd.f32 %v1841, %v1881
    %v1883 = vpop.f32.mrb[0].mxu0
    %v1884 = vpop.f32.mrb[0].mxu0
    %1885 = vdwg.mxu0
    %1886 = vmatprep.subr.bf16.mxu0 %v1259
    %1887 = vmatpush1.bf16.msra.mxu0 %v1258
    %1888 = vmatprep.subr.bf16.mxu0 %v1263
    %1889 = vmatpush1.bf16.msra.mxu0 %v1262
    %1890 = vmatprep.subr.bf16.mxu0 %v1267
    %1891 = vmatpush1.bf16.msra.mxu0 %v1266
    %1892 = vmatprep.subr.bf16.mxu0 %v1271
    %1893 = vmatpush1.bf16.msra.mxu0 %v1270
    %1894 = vmatprep.subr.bf16.mxu0 %v1275
    %1895 = vmatpush1.bf16.msra.mxu0 %v1274
    %1896 = vmatprep.subr.bf16.mxu0 %v1279
    %1897 = vmatpush1.bf16.msra.mxu0 %v1278
    %1898 = vmatprep.subr.bf16.mxu0 %v1283
    %1899 = vmatpush1.bf16.msra.mxu0 %v1282
    %1900 = vmatprep.subr.bf16.mxu0 %v1287
    %1901 = vmatpush1.bf16.msra.mxu0 %v1286
    %1902 = vmatprep.subr.bf16.mxu0 %v1291
    %1903 = vmatpush1.bf16.msra.mxu0 %v1290
    %1904 = vmatprep.subr.bf16.mxu0 %v1295
    %1905 = vmatpush1.bf16.msra.mxu0 %v1294
    %1906 = vmatprep.subr.bf16.mxu0 %v1299
    %1907 = vmatpush1.bf16.msra.mxu0 %v1298
    %1908 = vmatprep.subr.bf16.mxu0 %v1303
    %1909 = vmatpush1.bf16.msra.mxu0 %v1302
    %1910 = vmatprep.subr.bf16.mxu0 %v1307
    %1911 = vmatpush1.bf16.msra.mxu0 %v1306
    %1912 = vmatprep.subr.bf16.mxu0 %v1311
    %1913 = vmatpush1.bf16.msra.mxu0 %v1310
    %1914 = vmatprep.subr.bf16.mxu0 %v1315
    %1915 = vmatpush1.bf16.msra.mxu0 %v1314
    %1916 = vmatprep.subr.bf16.mxu0 %v1319
    %1917 = vmatpush1.bf16.msra.mxu0 %v1318
    %1918 = vmatprep.mubr.bf16.mxu0 %v79
    %1919 = vmatmul.mubr.bf16.gmra.mrb[0].mxu0 %v78
    %v1920 = vpop.f32.mrb[0].mxu0
    %v1921 = vadd.f32 %v1880, %v1920
    %v1922 = vpop.f32.mrb[0].mxu0
    %v1923 = vadd.f32 %v1882, %v1922
    %v1924 = vpop.f32.mrb[0].mxu0
    %v1925 = vpop.f32.mrb[0].mxu0
    %1926 = vdwg.mxu0
    %1927 = vmatprep.subr.bf16.mxu0 %v1323
    %1928 = vmatpush1.bf16.msra.mxu0 %v1322
    %1929 = vmatprep.subr.bf16.mxu0 %v1327
    %1930 = vmatpush1.bf16.msra.mxu0 %v1326
    %1931 = vmatprep.subr.bf16.mxu0 %v1331
    %1932 = vmatpush1.bf16.msra.mxu0 %v1330
    %1933 = vmatprep.subr.bf16.mxu0 %v1335
    %1934 = vmatpush1.bf16.msra.mxu0 %v1334
    %1935 = vmatprep.subr.bf16.mxu0 %v1339
    %1936 = vmatpush1.bf16.msra.mxu0 %v1338
    %1937 = vmatprep.subr.bf16.mxu0 %v1343
    %1938 = vmatpush1.bf16.msra.mxu0 %v1342
    %1939 = vmatprep.subr.bf16.mxu0 %v1347
    %1940 = vmatpush1.bf16.msra.mxu0 %v1346
    %1941 = vmatprep.subr.bf16.mxu0 %v1351
    %1942 = vmatpush1.bf16.msra.mxu0 %v1350
    %1943 = vmatprep.subr.bf16.mxu0 %v1355
    %1944 = vmatpush1.bf16.msra.mxu0 %v1354
    %1945 = vmatprep.subr.bf16.mxu0 %v1359
    %1946 = vmatpush1.bf16.msra.mxu0 %v1358
    %1947 = vmatprep.subr.bf16.mxu0 %v1363
    %1948 = vmatpush1.bf16.msra.mxu0 %v1362
    %1949 = vmatprep.subr.bf16.mxu0 %v1367
    %1950 = vmatpush1.bf16.msra.mxu0 %v1366
    %1951 = vmatprep.subr.bf16.mxu0 %v1371
    %1952 = vmatpush1.bf16.msra.mxu0 %v1370
    %1953 = vmatprep.subr.bf16.mxu0 %v1375
    %1954 = vmatpush1.bf16.msra.mxu0 %v1374
    %1955 = vmatprep.subr.bf16.mxu0 %v1379
    %1956 = vmatpush1.bf16.msra.mxu0 %v1378
    %1957 = vmatprep.subr.bf16.mxu0 %v1383
    %1958 = vmatpush1.bf16.msra.mxu0 %v1382
    %1959 = vmatprep.mubr.bf16.mxu0 %v81
    %1960 = vmatmul.mubr.bf16.gmra.mrb[0].mxu0 %v80
    %v1961 = vpop.f32.mrb[0].mxu0
    %v1962 = vadd.f32 %v1921, %v1961
    %v1963 = vpop.f32.mrb[0].mxu0
    %v1964 = vadd.f32 %v1923, %v1963
    %v1965 = vpop.f32.mrb[0].mxu0
    %v1966 = vpop.f32.mrb[0].mxu0
    %1967 = vdwg.mxu0
    %v1968 = vmax.f32 %v1798, 0.0
    %v1969 = vmax.f32 %v1800, 0.0
    %v1970 = vmax.f32 %v1962, 0.0
    %v1971 = vmax.f32 %v1964, 0.0
    %v1972 = vpack.c.bf16 %v1968, %v1968
    %v1973 = vpack.c.bf16 %v1969, %v1969
    %v1974 = vpack.c.bf16 %v1970, %v1970
    %v1975 = vpack.c.bf16 %v1971, %v1971
    %v1976 = vld [vmem:[%s3] sm:$0xff]
    %v1977 = vld [vmem:[%s3 + $0x8] sm:$0xff]
    %v1978 = vld [vmem:[%s3 + $0x10] sm:$0xff]
    %v1979 = vld [vmem:[%s3 + $0x18] sm:$0xff]
    %v1980 = vld [vmem:[%s3 + $0x20] sm:$0xff]
    %v1981 = vld [vmem:[%s3 + $0x28] sm:$0xff]
    %v1982 = vld [vmem:[%s3 + $0x30] sm:$0xff]
    %v1983 = vld [vmem:[%s3 + $0x38] sm:$0xff]
    %v1984 = vld [vmem:[%s3 + $0x40] sm:$0xff]
    %v1985 = vld [vmem:[%s3 + $0x48] sm:$0xff]
    %v1986 = vld [vmem:[%s3 + $0x50] sm:$0xff]
    %v1987 = vld [vmem:[%s3 + $0x58] sm:$0xff]
    %v1988 = vld [vmem:[%s3 + $0x60] sm:$0xff]
    %v1989 = vld [vmem:[%s3 + $0x68] sm:$0xff]
    %v1990 = vld [vmem:[%s3 + $0x70] sm:$0xff]
    %v1991 = vld [vmem:[%s3 + $0x78] sm:$0xff]
    %v1992 = vld [vmem:[%s3 + $0x80] sm:$0xff]
    %v1993 = vld [vmem:[%s3 + $0x88] sm:$0xff]
    %v1994 = vld [vmem:[%s3 + $0x90] sm:$0xff]
    %v1995 = vld [vmem:[%s3 + $0x98] sm:$0xff]
    %v1996 = vld [vmem:[%s3 + $0xa0] sm:$0xff]
    %v1997 = vld [vmem:[%s3 + $0xa8] sm:$0xff]
    %v1998 = vld [vmem:[%s3 + $0xb0] sm:$0xff]
    %v1999 = vld [vmem:[%s3 + $0xb8] sm:$0xff]
    %v2000 = vld [vmem:[%s3 + $0xc0] sm:$0xff]
    %v2001 = vld [vmem:[%s3 + $0xc8] sm:$0xff]
    %v2002 = vld [vmem:[%s3 + $0xd0] sm:$0xff]
    %v2003 = vld [vmem:[%s3 + $0xd8] sm:$0xff]
    %v2004 = vld [vmem:[%s3 + $0xe0] sm:$0xff]
    %v2005 = vld [vmem:[%s3 + $0xe8] sm:$0xff]
    %v2006 = vld [vmem:[%s3 + $0xf0] sm:$0xff]
    %v2007 = vld [vmem:[%s3 + $0xf8] sm:$0xff]
    %v2008 = vld [vmem:[%s3 + $0x100] sm:$0xff]
    %v2009 = vld [vmem:[%s3 + $0x108] sm:$0xff]
    %v2010 = vld [vmem:[%s3 + $0x110] sm:$0xff]
    %v2011 = vld [vmem:[%s3 + $0x118] sm:$0xff]
    %v2012 = vld [vmem:[%s3 + $0x120] sm:$0xff]
    %v2013 = vld [vmem:[%s3 + $0x128] sm:$0xff]
    %v2014 = vld [vmem:[%s3 + $0x130] sm:$0xff]
    %v2015 = vld [vmem:[%s3 + $0x138] sm:$0xff]
    %v2016 = vld [vmem:[%s3 + $0x140] sm:$0xff]
    %v2017 = vld [vmem:[%s3 + $0x148] sm:$0xff]
    %v2018 = vld [vmem:[%s3 + $0x150] sm:$0xff]
    %v2019 = vld [vmem:[%s3 + $0x158] sm:$0xff]
    %v2020 = vld [vmem:[%s3 + $0x160] sm:$0xff]
    %v2021 = vld [vmem:[%s3 + $0x168] sm:$0xff]
    %v2022 = vld [vmem:[%s3 + $0x170] sm:$0xff]
    %v2023 = vld [vmem:[%s3 + $0x178] sm:$0xff]
    %v2024 = vld [vmem:[%s3 + $0x180] sm:$0xff]
    %v2025 = vld [vmem:[%s3 + $0x188] sm:$0xff]
    %v2026 = vld [vmem:[%s3 + $0x190] sm:$0xff]
    %v2027 = vld [vmem:[%s3 + $0x198] sm:$0xff]
    %v2028 = vld [vmem:[%s3 + $0x1a0] sm:$0xff]
    %v2029 = vld [vmem:[%s3 + $0x1a8] sm:$0xff]
    %v2030 = vld [vmem:[%s3 + $0x1b0] sm:$0xff]
    %v2031 = vld [vmem:[%s3 + $0x1b8] sm:$0xff]
    %v2032 = vld [vmem:[%s3 + $0x1c0] sm:$0xff]
    %v2033 = vld [vmem:[%s3 + $0x1c8] sm:$0xff]
    %v2034 = vld [vmem:[%s3 + $0x1d0] sm:$0xff]
    %v2035 = vld [vmem:[%s3 + $0x1d8] sm:$0xff]
    %v2036 = vld [vmem:[%s3 + $0x1e0] sm:$0xff]
    %v2037 = vld [vmem:[%s3 + $0x1e8] sm:$0xff]
    %v2038 = vld [vmem:[%s3 + $0x1f0] sm:$0xff]
    %v2039 = vld [vmem:[%s3 + $0x1f8] sm:$0xff]
    %v2040 = vld [vmem:[%s4] sm:$0x3]
    %v2042 = vlaneseq
    %v2043 = vshrl.u32 %v2042, 7
    %v2044 = vsub.s32 0, %v2043
    %v2045 = vrot.slane %v2040, %v2044
    %v2046 = vlaneseq
    %v2047 = vshrl.u32 %v2046, 7
    %v2048 = vsub.s32 1, %v2047
    %v2049 = vrot.slane %v2040, %v2048
    %v2116 = vunpack.c.l.b16 %v1976
    %v2117 = vunpack.c.h.b16 %v1976
    %v2118 = vunpack.c.l.b16 %v1977
    %v2119 = vunpack.c.h.b16 %v1977
    %v2120 = vunpack.c.l.b16 %v1978
    %v2121 = vunpack.c.h.b16 %v1978
    %v2122 = vunpack.c.l.b16 %v1979
    %v2123 = vunpack.c.h.b16 %v1979
    %v2124 = vunpack.c.l.b16 %v1980
    %v2125 = vunpack.c.h.b16 %v1980
    %v2126 = vunpack.c.l.b16 %v1981
    %v2127 = vunpack.c.h.b16 %v1981
    %v2128 = vunpack.c.l.b16 %v1982
    %v2129 = vunpack.c.h.b16 %v1982
    %v2130 = vunpack.c.l.b16 %v1983
    %v2131 = vunpack.c.h.b16 %v1983
    %v2132 = vunpack.c.l.b16 %v1984
    %v2133 = vunpack.c.h.b16 %v1984
    %v2134 = vunpack.c.l.b16 %v1985
    %v2135 = vunpack.c.h.b16 %v1985
    %v2136 = vunpack.c.l.b16 %v1986
    %v2137 = vunpack.c.h.b16 %v1986
    %v2138 = vunpack.c.l.b16 %v1987
    %v2139 = vunpack.c.h.b16 %v1987
    %v2140 = vunpack.c.l.b16 %v1988
    %v2141 = vunpack.c.h.b16 %v1988
    %v2142 = vunpack.c.l.b16 %v1989
    %v2143 = vunpack.c.h.b16 %v1989
    %v2144 = vunpack.c.l.b16 %v1990
    %v2145 = vunpack.c.h.b16 %v1990
    %v2146 = vunpack.c.l.b16 %v1991
    %v2147 = vunpack.c.h.b16 %v1991
    %v2148 = vunpack.c.l.b16 %v1992
    %v2149 = vunpack.c.h.b16 %v1992
    %v2150 = vunpack.c.l.b16 %v1993
    %v2151 = vunpack.c.h.b16 %v1993
    %v2152 = vunpack.c.l.b16 %v1994
    %v2153 = vunpack.c.h.b16 %v1994
    %v2154 = vunpack.c.l.b16 %v1995
    %v2155 = vunpack.c.h.b16 %v1995
    %v2156 = vunpack.c.l.b16 %v1996
    %v2157 = vunpack.c.h.b16 %v1996
    %v2158 = vunpack.c.l.b16 %v1997
    %v2159 = vunpack.c.h.b16 %v1997
    %v2160 = vunpack.c.l.b16 %v1998
    %v2161 = vunpack.c.h.b16 %v1998
    %v2162 = vunpack.c.l.b16 %v1999
    %v2163 = vunpack.c.h.b16 %v1999
    %v2164 = vunpack.c.l.b16 %v2000
    %v2165 = vunpack.c.h.b16 %v2000
    %v2166 = vunpack.c.l.b16 %v2001
    %v2167 = vunpack.c.h.b16 %v2001
    %v2168 = vunpack.c.l.b16 %v2002
    %v2169 = vunpack.c.h.b16 %v2002
    %v2170 = vunpack.c.l.b16 %v2003
    %v2171 = vunpack.c.h.b16 %v2003
    %v2172 = vunpack.c.l.b16 %v2004
    %v2173 = vunpack.c.h.b16 %v2004
    %v2174 = vunpack.c.l.b16 %v2005
    %v2175 = vunpack.c.h.b16 %v2005
    %v2176 = vunpack.c.l.b16 %v2006
    %v2177 = vunpack.c.h.b16 %v2006
    %v2178 = vunpack.c.l.b16 %v2007
    %v2179 = vunpack.c.h.b16 %v2007
    %v2180 = vunpack.c.l.b16 %v2008
    %v2181 = vunpack.c.h.b16 %v2008
    %v2182 = vunpack.c.l.b16 %v2009
    %v2183 = vunpack.c.h.b16 %v2009
    %v2184 = vunpack.c.l.b16 %v2010
    %v2185 = vunpack.c.h.b16 %v2010
    %v2186 = vunpack.c.l.b16 %v2011
    %v2187 = vunpack.c.h.b16 %v2011
    %v2188 = vunpack.c.l.b16 %v2012
    %v2189 = vunpack.c.h.b16 %v2012
    %v2190 = vunpack.c.l.b16 %v2013
    %v2191 = vunpack.c.h.b16 %v2013
    %v2192 = vunpack.c.l.b16 %v2014
    %v2193 = vunpack.c.h.b16 %v2014
    %v2194 = vunpack.c.l.b16 %v2015
    %v2195 = vunpack.c.h.b16 %v2015
    %v2196 = vunpack.c.l.b16 %v2016
    %v2197 = vunpack.c.h.b16 %v2016
    %v2198 = vunpack.c.l.b16 %v2017
    %v2199 = vunpack.c.h.b16 %v2017
    %v2200 = vunpack.c.l.b16 %v2018
    %v2201 = vunpack.c.h.b16 %v2018
    %v2202 = vunpack.c.l.b16 %v2019
    %v2203 = vunpack.c.h.b16 %v2019
    %v2204 = vunpack.c.l.b16 %v2020
    %v2205 = vunpack.c.h.b16 %v2020
    %v2206 = vunpack.c.l.b16 %v2021
    %v2207 = vunpack.c.h.b16 %v2021
    %v2208 = vunpack.c.l.b16 %v2022
    %v2209 = vunpack.c.h.b16 %v2022
    %v2210 = vunpack.c.l.b16 %v2023
    %v2211 = vunpack.c.h.b16 %v2023
    %v2212 = vunpack.c.l.b16 %v2024
    %v2213 = vunpack.c.h.b16 %v2024
    %v2214 = vunpack.c.l.b16 %v2025
    %v2215 = vunpack.c.h.b16 %v2025
    %v2216 = vunpack.c.l.b16 %v2026
    %v2217 = vunpack.c.h.b16 %v2026
    %v2218 = vunpack.c.l.b16 %v2027
    %v2219 = vunpack.c.h.b16 %v2027
    %v2220 = vunpack.c.l.b16 %v2028
    %v2221 = vunpack.c.h.b16 %v2028
    %v2222 = vunpack.c.l.b16 %v2029
    %v2223 = vunpack.c.h.b16 %v2029
    %v2224 = vunpack.c.l.b16 %v2030
    %v2225 = vunpack.c.h.b16 %v2030
    %v2226 = vunpack.c.l.b16 %v2031
    %v2227 = vunpack.c.h.b16 %v2031
    %v2228 = vunpack.c.l.b16 %v2032
    %v2229 = vunpack.c.h.b16 %v2032
    %v2230 = vunpack.c.l.b16 %v2033
    %v2231 = vunpack.c.h.b16 %v2033
    %v2232 = vunpack.c.l.b16 %v2034
    %v2233 = vunpack.c.h.b16 %v2034
    %v2234 = vunpack.c.l.b16 %v2035
    %v2235 = vunpack.c.h.b16 %v2035
    %v2236 = vunpack.c.l.b16 %v2036
    %v2237 = vunpack.c.h.b16 %v2036
    %v2238 = vunpack.c.l.b16 %v2037
    %v2239 = vunpack.c.h.b16 %v2037
    %v2240 = vunpack.c.l.b16 %v2038
    %v2241 = vunpack.c.h.b16 %v2038
    %v2242 = vunpack.c.l.b16 %v2039
    %v2243 = vunpack.c.h.b16 %v2039
    %v2244 = vpack.c.b16 %v2118, %v2116
    %v2245 = vpack.c.b16 %v2119, %v2117
    %v2246 = vpack.c.b16 %v2122, %v2120
    %v2247 = vpack.c.b16 %v2123, %v2121
    %v2248 = vpack.c.b16 %v2126, %v2124
    %v2249 = vpack.c.b16 %v2127, %v2125
    %v2250 = vpack.c.b16 %v2130, %v2128
    %v2251 = vpack.c.b16 %v2131, %v2129
    %v2252 = vpack.c.b16 %v2134, %v2132
    %v2253 = vpack.c.b16 %v2135, %v2133
    %v2254 = vpack.c.b16 %v2138, %v2136
    %v2255 = vpack.c.b16 %v2139, %v2137
    %v2256 = vpack.c.b16 %v2142, %v2140
    %v2257 = vpack.c.b16 %v2143, %v2141
    %v2258 = vpack.c.b16 %v2146, %v2144
    %v2259 = vpack.c.b16 %v2147, %v2145
    %v2260 = vpack.c.b16 %v2150, %v2148
    %v2261 = vpack.c.b16 %v2151, %v2149
    %v2262 = vpack.c.b16 %v2154, %v2152
    %v2263 = vpack.c.b16 %v2155, %v2153
    %v2264 = vpack.c.b16 %v2158, %v2156
    %v2265 = vpack.c.b16 %v2159, %v2157
    %v2266 = vpack.c.b16 %v2162, %v2160
    %v2267 = vpack.c.b16 %v2163, %v2161
    %v2268 = vpack.c.b16 %v2166, %v2164
    %v2269 = vpack.c.b16 %v2167, %v2165
    %v2270 = vpack.c.b16 %v2170, %v2168
    %v2271 = vpack.c.b16 %v2171, %v2169
    %v2272 = vpack.c.b16 %v2174, %v2172
    %v2273 = vpack.c.b16 %v2175, %v2173
    %v2274 = vpack.c.b16 %v2178, %v2176
    %v2275 = vpack.c.b16 %v2179, %v2177
    %v2276 = vpack.c.b16 %v2182, %v2180
    %v2277 = vpack.c.b16 %v2183, %v2181
    %v2278 = vpack.c.b16 %v2186, %v2184
    %v2279 = vpack.c.b16 %v2187, %v2185
    %v2280 = vpack.c.b16 %v2190, %v2188
    %v2281 = vpack.c.b16 %v2191, %v2189
    %v2282 = vpack.c.b16 %v2194, %v2192
    %v2283 = vpack.c.b16 %v2195, %v2193
    %v2284 = vpack.c.b16 %v2198, %v2196
    %v2285 = vpack.c.b16 %v2199, %v2197
    %v2286 = vpack.c.b16 %v2202, %v2200
    %v2287 = vpack.c.b16 %v2203, %v2201
    %v2288 = vpack.c.b16 %v2206, %v2204
    %v2289 = vpack.c.b16 %v2207, %v2205
    %v2290 = vpack.c.b16 %v2210, %v2208
    %v2291 = vpack.c.b16 %v2211, %v2209
    %v2292 = vpack.c.b16 %v2214, %v2212
    %v2293 = vpack.c.b16 %v2215, %v2213
    %v2294 = vpack.c.b16 %v2218, %v2216
    %v2295 = vpack.c.b16 %v2219, %v2217
    %v2296 = vpack.c.b16 %v2222, %v2220
    %v2297 = vpack.c.b16 %v2223, %v2221
    %v2298 = vpack.c.b16 %v2226, %v2224
    %v2299 = vpack.c.b16 %v2227, %v2225
    %v2300 = vpack.c.b16 %v2230, %v2228
    %v2301 = vpack.c.b16 %v2231, %v2229
    %v2302 = vpack.c.b16 %v2234, %v2232
    %v2303 = vpack.c.b16 %v2235, %v2233
    %v2304 = vpack.c.b16 %v2238, %v2236
    %v2305 = vpack.c.b16 %v2239, %v2237
    %v2306 = vpack.c.b16 %v2242, %v2240
    %v2307 = vpack.c.b16 %v2243, %v2241
    %2372 = vmatprep.subr.bf16.mxu0 %v2245
    %2373 = vmatpush1.bf16.msra.mxu0 %v2244
    %2374 = vmatprep.subr.bf16.mxu0 %v2247
    %2375 = vmatpush1.bf16.msra.mxu0 %v2246
    %2376 = vmatprep.subr.bf16.mxu0 %v2249
    %2377 = vmatpush1.bf16.msra.mxu0 %v2248
    %2378 = vmatprep.subr.bf16.mxu0 %v2251
    %2379 = vmatpush1.bf16.msra.mxu0 %v2250
    %2380 = vmatprep.subr.bf16.mxu0 %v2253
    %2381 = vmatpush1.bf16.msra.mxu0 %v2252
    %2382 = vmatprep.subr.bf16.mxu0 %v2255
    %2383 = vmatpush1.bf16.msra.mxu0 %v2254
    %2384 = vmatprep.subr.bf16.mxu0 %v2257
    %2385 = vmatpush1.bf16.msra.mxu0 %v2256
    %2386 = vmatprep.subr.bf16.mxu0 %v2259
    %2387 = vmatpush1.bf16.msra.mxu0 %v2258
    %2388 = vmatprep.subr.bf16.mxu0 %v2261
    %2389 = vmatpush1.bf16.msra.mxu0 %v2260
    %2390 = vmatprep.subr.bf16.mxu0 %v2263
    %2391 = vmatpush1.bf16.msra.mxu0 %v2262
    %2392 = vmatprep.subr.bf16.mxu0 %v2265
    %2393 = vmatpush1.bf16.msra.mxu0 %v2264
    %2394 = vmatprep.subr.bf16.mxu0 %v2267
    %2395 = vmatpush1.bf16.msra.mxu0 %v2266
    %2396 = vmatprep.subr.bf16.mxu0 %v2269
    %2397 = vmatpush1.bf16.msra.mxu0 %v2268
    %2398 = vmatprep.subr.bf16.mxu0 %v2271
    %2399 = vmatpush1.bf16.msra.mxu0 %v2270
    %2400 = vmatprep.subr.bf16.mxu0 %v2273
    %2401 = vmatpush1.bf16.msra.mxu0 %v2272
    %2402 = vmatprep.subr.bf16.mxu0 %v2275
    %2403 = vmatpush1.bf16.msra.mxu0 %v2274
    %2404 = vmatprep.mubr.bf16.mxu0 %v1973
    %2405 = vmatmul.mubr.bf16.gmra.mrb[0].mxu0 %v1972
    %v2406 = vpop.f32.mrb[0].mxu0
    %v2407 = vadd.f32 %v2045, %v2406
    %v2408 = vpop.f32.mrb[0].mxu0
    %v2409 = vadd.f32 %v2049, %v2408
    %v2410 = vpop.f32.mrb[0].mxu0
    %v2411 = vpop.f32.mrb[0].mxu0
    %2412 = vdwg.mxu0
    %2413 = vmatprep.subr.bf16.mxu0 %v2277
    %2414 = vmatpush1.bf16.msra.mxu0 %v2276
    %2415 = vmatprep.subr.bf16.mxu0 %v2279
    %2416 = vmatpush1.bf16.msra.mxu0 %v2278
    %2417 = vmatprep.subr.bf16.mxu0 %v2281
    %2418 = vmatpush1.bf16.msra.mxu0 %v2280
    %2419 = vmatprep.subr.bf16.mxu0 %v2283
    %2420 = vmatpush1.bf16.msra.mxu0 %v2282
    %2421 = vmatprep.subr.bf16.mxu0 %v2285
    %2422 = vmatpush1.bf16.msra.mxu0 %v2284
    %2423 = vmatprep.subr.bf16.mxu0 %v2287
    %2424 = vmatpush1.bf16.msra.mxu0 %v2286
    %2425 = vmatprep.subr.bf16.mxu0 %v2289
    %2426 = vmatpush1.bf16.msra.mxu0 %v2288
    %2427 = vmatprep.subr.bf16.mxu0 %v2291
    %2428 = vmatpush1.bf16.msra.mxu0 %v2290
    %2429 = vmatprep.subr.bf16.mxu0 %v2293
    %2430 = vmatpush1.bf16.msra.mxu0 %v2292
    %2431 = vmatprep.subr.bf16.mxu0 %v2295
    %2432 = vmatpush1.bf16.msra.mxu0 %v2294
    %2433 = vmatprep.subr.bf16.mxu0 %v2297
    %2434 = vmatpush1.bf16.msra.mxu0 %v2296
    %2435 = vmatprep.subr.bf16.mxu0 %v2299
    %2436 = vmatpush1.bf16.msra.mxu0 %v2298
    %2437 = vmatprep.subr.bf16.mxu0 %v2301
    %2438 = vmatpush1.bf16.msra.mxu0 %v2300
    %2439 = vmatprep.subr.bf16.mxu0 %v2303
    %2440 = vmatpush1.bf16.msra.mxu0 %v2302
    %2441 = vmatprep.subr.bf16.mxu0 %v2305
    %2442 = vmatpush1.bf16.msra.mxu0 %v2304
    %2443 = vmatprep.subr.bf16.mxu0 %v2307
    %2444 = vmatpush1.bf16.msra.mxu0 %v2306
    %2445 = vmatprep.mubr.bf16.mxu0 %v1975
    %2446 = vmatmul.mubr.bf16.gmra.mrb[0].mxu0 %v1974
    %v2447 = vpop.f32.mrb[0].mxu0
    %v2448 = vadd.f32 %v2407, %v2447
    %v2449 = vpop.f32.mrb[0].mxu0
    %v2450 = vadd.f32 %v2409, %v2449
    %v2451 = vpop.f32.mrb[0].mxu0
    %v2452 = vpop.f32.mrb[0].mxu0
    %2453 = vdwg.mxu0
    %v2454 = vmax.f32 %v2448, 0.0
    %v2455 = vmax.f32 %v2450, 0.0
    %v2456 = vpack.c.bf16 %v2454, %v2454
    %v2457 = vpack.c.bf16 %v2455, %v2455
    %v2458 = vld [vmem:[%s5] sm:$0xf]
    %v2459 = vld [vmem:[%s5 + $0x4] sm:$0xf]
    %v2460 = vld [vmem:[%s5 + $0x8] sm:$0xf]
    %v2461 = vld [vmem:[%s5 + $0xc] sm:$0xf]
    %v2462 = vld [vmem:[%s5 + $0x10] sm:$0xf]
    %v2463 = vld [vmem:[%s5 + $0x14] sm:$0xf]
    %v2464 = vld [vmem:[%s5 + $0x18] sm:$0xf]
    %v2465 = vld [vmem:[%s5 + $0x1c] sm:$0xf]
    %v2466 = vld [vmem:[%s5 + $0x20] sm:$0xf]
    %v2467 = vld [vmem:[%s5 + $0x24] sm:$0xf]
    %v2468 = vld [vmem:[%s5 + $0x28] sm:$0xf]
    %v2469 = vld [vmem:[%s5 + $0x2c] sm:$0xf]
    %v2470 = vld [vmem:[%s5 + $0x30] sm:$0xf]
    %v2471 = vld [vmem:[%s5 + $0x34] sm:$0xf]
    %v2472 = vld [vmem:[%s5 + $0x38] sm:$0xf]
    %v2473 = vld [vmem:[%s5 + $0x3c] sm:$0xf]
    %v2474 = vld [vmem:[%s5 + $0x40] sm:$0xf]
    %v2475 = vld [vmem:[%s5 + $0x44] sm:$0xf]
    %v2476 = vld [vmem:[%s5 + $0x48] sm:$0xf]
    %v2477 = vld [vmem:[%s5 + $0x4c] sm:$0xf]
    %v2478 = vld [vmem:[%s5 + $0x50] sm:$0xf]
    %v2479 = vld [vmem:[%s5 + $0x54] sm:$0xf]
    %v2480 = vld [vmem:[%s5 + $0x58] sm:$0xf]
    %v2481 = vld [vmem:[%s5 + $0x5c] sm:$0xf]
    %v2482 = vld [vmem:[%s5 + $0x60] sm:$0xf]
    %v2483 = vld [vmem:[%s5 + $0x64] sm:$0xf]
    %v2484 = vld [vmem:[%s5 + $0x68] sm:$0xf]
    %v2485 = vld [vmem:[%s5 + $0x6c] sm:$0xf]
    %v2486 = vld [vmem:[%s5 + $0x70] sm:$0xf]
    %v2487 = vld [vmem:[%s5 + $0x74] sm:$0xf]
    %v2488 = vld [vmem:[%s5 + $0x78] sm:$0xf]
    %v2489 = vld [vmem:[%s5 + $0x7c] sm:$0xf]
    %v2490 = vld [vmem:[%s6] sm:$0x1]
    %v2492 = vlaneseq
    %v2493 = vshrl.u32 %v2492, 7
    %v2494 = vsub.s32 0, %v2493
    %v2495 = vrot.slane %v2490, %v2494
    %v2529 = vunpack.c.l.b16 %v2458
    %v2530 = vunpack.c.l.b16 %v2459
    %v2531 = vunpack.c.l.b16 %v2460
    %v2532 = vunpack.c.l.b16 %v2461
    %v2533 = vunpack.c.l.b16 %v2462
    %v2534 = vunpack.c.l.b16 %v2463
    %v2535 = vunpack.c.l.b16 %v2464
    %v2536 = vunpack.c.l.b16 %v2465
    %v2537 = vunpack.c.l.b16 %v2466
    %v2538 = vunpack.c.l.b16 %v2467
    %v2539 = vunpack.c.l.b16 %v2468
    %v2540 = vunpack.c.l.b16 %v2469
    %v2541 = vunpack.c.l.b16 %v2470
    %v2542 = vunpack.c.l.b16 %v2471
    %v2543 = vunpack.c.l.b16 %v2472
    %v2544 = vunpack.c.l.b16 %v2473
    %v2545 = vunpack.c.l.b16 %v2474
    %v2546 = vunpack.c.l.b16 %v2475
    %v2547 = vunpack.c.l.b16 %v2476
    %v2548 = vunpack.c.l.b16 %v2477
    %v2549 = vunpack.c.l.b16 %v2478
    %v2550 = vunpack.c.l.b16 %v2479
    %v2551 = vunpack.c.l.b16 %v2480
    %v2552 = vunpack.c.l.b16 %v2481
    %v2553 = vunpack.c.l.b16 %v2482
    %v2554 = vunpack.c.l.b16 %v2483
    %v2555 = vunpack.c.l.b16 %v2484
    %v2556 = vunpack.c.l.b16 %v2485
    %v2557 = vunpack.c.l.b16 %v2486
    %v2558 = vunpack.c.l.b16 %v2487
    %v2559 = vunpack.c.l.b16 %v2488
    %v2560 = vunpack.c.l.b16 %v2489
    %v2561 = vpack.c.b16 %v2530, %v2529
    %v2562 = vpack.c.b16 %v2532, %v2531
    %v2563 = vpack.c.b16 %v2534, %v2533
    %v2564 = vpack.c.b16 %v2536, %v2535
    %v2565 = vpack.c.b16 %v2538, %v2537
    %v2566 = vpack.c.b16 %v2540, %v2539
    %v2567 = vpack.c.b16 %v2542, %v2541
    %v2568 = vpack.c.b16 %v2544, %v2543
    %v2569 = vpack.c.b16 %v2546, %v2545
    %v2570 = vpack.c.b16 %v2548, %v2547
    %v2571 = vpack.c.b16 %v2550, %v2549
    %v2572 = vpack.c.b16 %v2552, %v2551
    %v2573 = vpack.c.b16 %v2554, %v2553
    %v2574 = vpack.c.b16 %v2556, %v2555
    %v2575 = vpack.c.b16 %v2558, %v2557
    %v2576 = vpack.c.b16 %v2560, %v2559
    %2593 = vmatprep.subr.bf16.mxu0 0
    %2594 = vmatpush1.bf16.msra.mxu0 %v2561
    %2595 = vmatprep.subr.bf16.mxu0 0
    %2596 = vmatpush1.bf16.msra.mxu0 %v2562
    %2597 = vmatprep.subr.bf16.mxu0 0
    %2598 = vmatpush1.bf16.msra.mxu0 %v2563
    %2599 = vmatprep.subr.bf16.mxu0 0
    %2600 = vmatpush1.bf16.msra.mxu0 %v2564
    %2601 = vmatprep.subr.bf16.mxu0 0
    %2602 = vmatpush1.bf16.msra.mxu0 %v2565
    %2603 = vmatprep.subr.bf16.mxu0 0
    %2604 = vmatpush1.bf16.msra.mxu0 %v2566
    %2605 = vmatprep.subr.bf16.mxu0 0
    %2606 = vmatpush1.bf16.msra.mxu0 %v2567
    %2607 = vmatprep.subr.bf16.mxu0 0
    %2608 = vmatpush1.bf16.msra.mxu0 %v2568
    %2609 = vmatprep.subr.bf16.mxu0 0
    %2610 = vmatpush1.bf16.msra.mxu0 %v2569
    %2611 = vmatprep.subr.bf16.mxu0 0
    %2612 = vmatpush1.bf16.msra.mxu0 %v2570
    %2613 = vmatprep.subr.bf16.mxu0 0
    %2614 = vmatpush1.bf16.msra.mxu0 %v2571
    %2615 = vmatprep.subr.bf16.mxu0 0
    %2616 = vmatpush1.bf16.msra.mxu0 %v2572
    %2617 = vmatprep.subr.bf16.mxu0 0
    %2618 = vmatpush1.bf16.msra.mxu0 %v2573
    %2619 = vmatprep.subr.bf16.mxu0 0
    %2620 = vmatpush1.bf16.msra.mxu0 %v2574
    %2621 = vmatprep.subr.bf16.mxu0 0
    %2622 = vmatpush1.bf16.msra.mxu0 %v2575
    %2623 = vmatprep.subr.bf16.mxu0 0
    %2624 = vmatpush1.bf16.msra.mxu0 %v2576
    %2625 = vmatprep.mubr.bf16.mxu0 %v2457
    %2626 = vmatmul.mubr.bf16.gmra.mrb[0].mxu0 %v2456
    %v2627 = vpop.f32.mrb[0].mxu0
    %v2628 = vadd.f32 %v2495, %v2627
    %v2629 = vpop.f32.mrb[0].mxu0
    %v2630 = vpop.f32.mrb[0].mxu0
    %v2631 = vpop.f32.mrb[0].mxu0
    %2632 = vdwg.mxu0
    %vm2633 = vcmask 123904
    %2634 = vst.msk [vmem:[#allocation2] sm:$0x3] %vm2633, %v2628
    // Predicated region
    $region30: #{pointnet_forward.3} parent=1 // pred_check
      _
    $region31: #{pointnet_forward.3} parent=1 // pred_check_branch
      %2636 = sbr.rel (0) target = $region33
    $region32: #{pointnet_forward.3} parent=1 // pred_region
      %s2638 = ssub.s32 32, 32
      %2639 = vsyncadd [#allocation3], %s2638
      %s2641 = sshll.u32 [#allocation2], 4
      %s2642 = int_to_ptr.vmem [resolvable:$true] %s2641
      %2644 = dma.vmem_to_hbm [thread:$0]  %s2642, 32, %s7, [#allocation3]
    $region33: #{pointnet_forward.3} parent=1 // pred_fallthru
      _
    // Predicated region
    $region34: #{pointnet_forward.3} parent=1 // pred_check
      _
    $region35: #{pointnet_forward.3} parent=1 // pred_check_branch
      %2646 = sbr.rel (0) target = $region37
    $region36: #{pointnet_forward.3} parent=1 // pred_region
      %2647 = dma.done [#allocation3], 32
    $region37: #{pointnet_forward.3} parent=1 // pred_fallthru
      _
    %2648 = vsyncpa [#allocation3], 1

</llo_original>
